<compile_context>
chip_gen: v5e
topology: v5e:2x2
jax: 0.10.0
libtpu: 0.0.40
codegen_flags: <defaults>
</compile_context>

<pallas_src>
import math
import numpy as np

import jax
import jax.numpy as jnp
from jax import lax
from jax.experimental import pallas as pl
from jax.experimental.pallas import tpu as pltpu

# ---- constants matching the PyTorch module -------------------------------
IN_CHANNELS = 25
N_TRAJ = 6
TL = 80
DT = 0.1
MAX_STEER = 37.0 * math.pi / 180.0
MIN_STEER = -MAX_STEER
MIN_ACC = -2.001
MAX_ACC = 2.001
NUM_CLASSES = N_TRAJ * 2 * TL + N_TRAJ  # 966

NT_TL = N_TRAJ * TL    # 480: traj-major, time-contiguous slab width
CONF_PAD = 128         # conf head padded to a full lane group (lane-dense store)
COEF = 0.4             # lr / (lr + lf) = 0.24 L / 0.60 L == 0.4 exactly


# ---------------------------------------------------------------------------
# Fused kernel: GAP + linear head + kinematic bicycle rollout (BB rows / step)
# ---------------------------------------------------------------------------
def _fused_kernel(x_ref, wc_ref, ws_ref, wa_ref, bc_ref, bs_ref, ba_ref,
                  tri_ref, invlr_ref, v0_ref,
                  conf_ref, x_out_ref, y_out_ref):
    # ---- head: global average pool over spatial (lane axis), then linear --
    feats = jnp.mean(x_ref[...], axis=-1)                          # (BB, C)

    conf_ref[...] = (jnp.dot(feats, wc_ref[...],
                             preferred_element_type=jnp.float32)
                     + bc_ref[...])                                 # (BB, 128)

    # One matmul per quantity against pre-packed (C, N_TRAJ*TL) slabs.
    steer = (jnp.dot(feats, ws_ref[...], preferred_element_type=jnp.float32)
             + bs_ref[...])                                         # (BB, 480)
    acc = (jnp.dot(feats, wa_ref[...], preferred_element_type=jnp.float32)
           + ba_ref[...])                                           # (BB, 480)

    steer = jnp.clip(steer, MIN_STEER, MAX_STEER)
    acc = jnp.clip(acc, MIN_ACC, MAX_ACC)

    inv_lr = invlr_ref[...]                                         # (BB, 1)
    v0 = v0_ref[...]                                                # (BB, 1)

    # Beta = atan(COEF * tan(steer)); exact identities:
    #   sin(atan t) = t / sqrt(1 + t^2),  cos(atan t) = 1 / sqrt(1 + t^2)
    t = COEF * (jnp.sin(steer) / jnp.cos(steer))
    inv = lax.rsqrt(1.0 + t * t)
    sin_b = t * inv
    cos_b = inv

    # Block-diagonal upper-triangular cumsum matrix, resident in VMEM.
    tri = tri_ref[...]                                              # (480, 480)

    vel = v0 + DT * jnp.dot(acc, tri, preferred_element_type=jnp.float32)
    heading = jnp.dot(vel * sin_b * (DT * inv_lr), tri,
                      preferred_element_type=jnp.float32)

    ch = jnp.cos(heading)
    sh = jnp.sin(heading)
    cos_hb = ch * cos_b - sh * sin_b                    # cos(heading + Beta)
    sin_hb = sh * cos_b + ch * sin_b                    # sin(heading + Beta)

    x_out_ref[...] = jnp.dot(vel * cos_hb * DT, tri,
                             preferred_element_type=jnp.float32)    # (BB, 480)
    y_out_ref[...] = jnp.dot(vel * sin_hb * DT, tri,
                             preferred_element_type=jnp.float32)    # (BB, 480)


# ---------------------------------------------------------------------------
# One-time weight reorganization (outside the hot path)
# ---------------------------------------------------------------------------
def prepare_head_params(w, b):
    """Split the (C, NUM_CLASSES) head into a lane-padded conf block and
    traj-major / time-contiguous steer & acc weight slabs, plus the resident
    block-diagonal cumsum matrix."""
    C = w.shape[0]
    w = w.astype(jnp.float32)
    b = jnp.reshape(b, (NUM_CLASSES,)).astype(jnp.float32)

    # conf head padded to 128 lanes -> unmasked lane-dense store in-kernel
    w_conf = jnp.zeros((C, CONF_PAD), jnp.float32).at[:, :N_TRAJ].set(w[:, :N_TRAJ])
    b_conf = jnp.zeros((1, CONF_PAD), jnp.float32).at[0, :N_TRAJ].set(b[:N_TRAJ])

    # steer / acc slabs: columns ordered (traj, time), time contiguous
    w_rest = w[:, N_TRAJ:].reshape(C, N_TRAJ, TL, 2)
    w_steer = w_rest[..., 0].reshape(C, NT_TL)
    w_acc = w_rest[..., 1].reshape(C, NT_TL)

    b_rest = b[N_TRAJ:].reshape(N_TRAJ, TL, 2)
    b_steer = b_rest[..., 0].reshape(1, NT_TL)
    b_acc = b_rest[..., 1].reshape(1, NT_TL)

    # Block-diagonal upper-triangular (six 80x80 blocks): tri[k, j] = 1 iff
    # same trajectory and k <= j -> inclusive cumsum over time as a matmul.
    idx = np.arange(NT_TL)
    blk = idx // TL
    tt = idx % TL
    tri_bd = ((blk[:, None] == blk[None, :]) & (tt[:, None] <= tt[None, :]))
    tri_bd = jnp.asarray(tri_bd.astype(np.float32))                 # (480, 480)

    return w_conf, w_steer, w_acc, b_conf, b_steer, b_acc, tri_bd


def _choose_block_batch(B, bb_max=64):
    """Batch rows per grid step: a multiple of 8 (sublane tile), capped at
    bb_max, and small enough that the grid has >= 2 steps whenever B allows
    it (so both v7x TensorCores are used under 'parallel')."""
    half = ((B + 1) // 2 + 7) // 8 * 8     # ceil(B/2) rounded up to 8
    return int(max(8, min(bb_max, half)))


# ---------------------------------------------------------------------------
# Forward wrapper: one fused pallas_call, minimal XLA glue
# ---------------------------------------------------------------------------
def model_forward(x, current_state, head_params, *, bb_max=64):
    """current_state = [misc, lengths, velocities] mirroring the torch List[Tensor]."""
    B, C, H, W = x.shape
    HW = H * W
    w_conf, w_steer, w_acc, b_conf, b_steer, b_acc, tri_bd = head_params
    lengths = current_state[1].astype(jnp.float32)
    velocities = current_state[2].astype(jnp.float32)

    bb = _choose_block_batch(B, bb_max)
    grid = pl.cdiv(B, bb)
    B_pad = grid * bb
    pad = B_pad - B

    # Pure reshape (no transpose, no copy): channels on sublanes, HW on lanes.
    x3 = x.reshape(B, C, HW).astype(jnp.float32)
    inv_lr = (1.0 / (lengths * (0.6 * 0.4))).reshape(B, 1)   # scalar math in wrapper
    v0 = velocities.reshape(B, 1)

    if pad:
        x3 = jnp.pad(x3, ((0, pad), (0, 0), (0, 0)))
        inv_lr = jnp.pad(inv_lr, ((0, pad), (0, 0)))
        v0 = jnp.pad(v0, ((0, pad), (0, 0)))

    conf_pad, traj_x, traj_y = pl.pallas_call(
        _fused_kernel,
        out_shape=(jax.ShapeDtypeStruct((B_pad, CONF_PAD), jnp.float32),
                   jax.ShapeDtypeStruct((B_pad, NT_TL), jnp.float32),
                   jax.ShapeDtypeStruct((B_pad, NT_TL), jnp.float32)),
        grid=(grid,),
        in_specs=[
            pl.BlockSpec((bb, C, HW), lambda g: (g, 0, 0)),        # x (batch block)
            pl.BlockSpec((C, CONF_PAD), lambda g: (0, 0)),         # w_conf
            pl.BlockSpec((C, NT_TL), lambda g: (0, 0)),            # w_steer slab
            pl.BlockSpec((C, NT_TL), lambda g: (0, 0)),            # w_acc slab
            pl.BlockSpec((1, CONF_PAD), lambda g: (0, 0)),         # b_conf
            pl.BlockSpec((1, NT_TL), lambda g: (0, 0)),            # b_steer
            pl.BlockSpec((1, NT_TL), lambda g: (0, 0)),            # b_acc
            pl.BlockSpec((NT_TL, NT_TL), lambda g: (0, 0)),        # tri (resident)
            pl.BlockSpec((bb, 1), lambda g: (g, 0)),               # 1/lr column
            pl.BlockSpec((bb, 1), lambda g: (g, 0)),               # v0 column
        ],
        out_specs=(pl.BlockSpec((bb, CONF_PAD), lambda g: (g, 0)),
                   pl.BlockSpec((bb, NT_TL), lambda g: (g, 0)),
                   pl.BlockSpec((bb, NT_TL), lambda g: (g, 0))),
        compiler_params=pltpu.CompilerParams(
            dimension_semantics=("parallel",)),   # both TCs on v7x; no-op on v5e/v6e
    )(x3, w_conf, w_steer, w_acc, b_conf, b_steer, b_acc, tri_bd, inv_lr, v0)

    conf = conf_pad[:B, :N_TRAJ]
    traj = jnp.stack([traj_x[:B].reshape(B, N_TRAJ, TL),
                      traj_y[:B].reshape(B, N_TRAJ, TL)], axis=-1)   # (B, N_TRAJ, TL, 2)
    return conf, traj


# ---------------------------------------------------------------------------
# Pure-python reference of the rollout (mirrors the PyTorch loops) for checking
# ---------------------------------------------------------------------------
def _reference_rollout(outputs, lengths, velocities):
    B = velocities.shape[0]
    logits = outputs[:, N_TRAJ:].reshape(B, N_TRAJ, TL, 2).astype(np.float64)
    temp = np.zeros((B, N_TRAJ, TL, 2), np.float64)
    for bs in range(B):
        lr = float(lengths[bs]) * 0.6 * 0.4
        lf = float(lengths[bs]) * 0.6 * 0.6
        for i in range(N_TRAJ):
            v = float(velocities[bs])
            heading = 0.0
            xx = 0.0
            yy = 0.0
            for j in range(TL):
                sa = float(np.clip(logits[bs, i, j, 0], MIN_STEER, MAX_STEER))
                ac = float(np.clip(logits[bs, i, j, 1], MIN_ACC, MAX_ACC))
                beta = math.atan(lr / (lr + lf) * math.tan(sa))
                v = v + ac * DT
                heading = heading + v / lr * math.sin(beta) * DT
                xx = xx + v * math.cos(heading + beta) * DT
                yy = yy + v * math.sin(heading + beta) * DT
                temp[bs, i, j, 0] = xx
                temp[bs, i, j, 1] = yy
    return temp


if __name__ == "__main__":
    # B=12 exercises batch-blocking (BB=8), last-block padding, and a 2-step grid.
    B, C, H, W = 12, IN_CHANNELS, 16, 16

    key = jax.random.PRNGKey(0)
    kx, kl, kv, kw = jax.random.split(key, 4)

    x = jax.random.normal(kx, (B, C, H, W), jnp.float32)
    lengths = jax.random.uniform(kl, (B,), jnp.float32, 3.0, 5.0)      # vehicle length
    velocities = jax.random.uniform(kv, (B,), jnp.float32, 0.0, 10.0)  # initial speed
    current_state = [jnp.zeros((B,), jnp.float32), lengths, velocities]

    # deterministic head parameters (shapes implied by num_classes in __init__)
    w = jax.random.normal(kw, (C, NUM_CLASSES), jnp.float32)
    b = jnp.linspace(-0.1, 0.1, NUM_CLASSES, dtype=jnp.float32)

    head_params = prepare_head_params(w, b)   # one-time weight reorganization
    forward = jax.jit(model_forward)

    conf, traj = jax.block_until_ready(forward(x, current_state, head_params))
    assert conf.shape == (B, N_TRAJ)
    assert traj.shape == (B, N_TRAJ, TL, 2)

    # ---- correctness checks against a float64 numpy reference --------------
    feats_np = np.asarray(x, np.float64).reshape(B, C, -1).mean(axis=-1)
    outputs_ref = feats_np @ np.asarray(w, np.float64) + np.asarray(b, np.float64)[None, :]
    conf_ref = outputs_ref[:, :N_TRAJ]
    traj_ref = _reference_rollout(outputs_ref, np.asarray(lengths), np.asarray(velocities))

    np.testing.assert_allclose(np.asarray(conf), conf_ref, rtol=1e-3, atol=1e-3)
    np.testing.assert_allclose(np.asarray(traj), traj_ref, rtol=1e-2, atol=1e-2)

    print("KERNEL_OK")
</pallas_src>

<mosaic_0001>
module attributes {stable_mosaic.version = 11 : i64} {
  func.func @_fused_kernel(%arg0: i32, %arg1: memref<8x25x256xf32, #tpu.memory_space<vmem>>, %arg2: memref<25x128xf32, #tpu.memory_space<vmem>>, %arg3: memref<25x480xf32, #tpu.memory_space<vmem>>, %arg4: memref<25x480xf32, #tpu.memory_space<vmem>>, %arg5: memref<1x128xf32, #tpu.memory_space<vmem>>, %arg6: memref<1x480xf32, #tpu.memory_space<vmem>>, %arg7: memref<1x480xf32, #tpu.memory_space<vmem>>, %arg8: memref<480x480xf32, #tpu.memory_space<vmem>>, %arg9: memref<8x1xf32, #tpu.memory_space<vmem>>, %arg10: memref<8x1xf32, #tpu.memory_space<vmem>>, %arg11: memref<8x128xf32, #tpu.memory_space<vmem>>, %arg12: memref<8x480xf32, #tpu.memory_space<vmem>>, %arg13: memref<8x480xf32, #tpu.memory_space<vmem>>) attributes {dimension_semantics = [#tpu.dimension_semantics<parallel>], iteration_bounds = array<i64: 2>, scalar_prefetch = 0 : i64, scratch_operands = 0 : i64, tpu.core_type = #tpu.core_type<tc>, window_params = [{transform_indices = @transform_0, window_bounds = array<i64: 8, 25, 256>}, {pipeline_mode = #tpu.pipeline_mode<synchronous>, transform_indices = @transform_1, window_bounds = array<i64: 25, 128>}, {pipeline_mode = #tpu.pipeline_mode<synchronous>, transform_indices = @transform_2, window_bounds = array<i64: 25, 480>}, {pipeline_mode = #tpu.pipeline_mode<synchronous>, transform_indices = @transform_3, window_bounds = array<i64: 25, 480>}, {pipeline_mode = #tpu.pipeline_mode<synchronous>, transform_indices = @transform_4, window_bounds = array<i64: 1, 128>}, {pipeline_mode = #tpu.pipeline_mode<synchronous>, transform_indices = @transform_5, window_bounds = array<i64: 1, 480>}, {pipeline_mode = #tpu.pipeline_mode<synchronous>, transform_indices = @transform_6, window_bounds = array<i64: 1, 480>}, {pipeline_mode = #tpu.pipeline_mode<synchronous>, transform_indices = @transform_7, window_bounds = array<i64: 480, 480>}, {transform_indices = @transform_8, window_bounds = array<i64: 8, 1>}, {transform_indices = @transform_9, window_bounds = array<i64: 8, 1>}, {transform_indices = @transform_10, window_bounds = array<i64: 8, 128>}, {transform_indices = @transform_11, window_bounds = array<i64: 8, 480>}, {transform_indices = @transform_12, window_bounds = array<i64: 8, 480>}]} {
    %c0 = arith.constant 0 : index
    %c0_0 = arith.constant 0 : index
    %c0_1 = arith.constant 0 : index
    %0 = vector.load %arg1[%c0, %c0_0, %c0_1] : memref<8x25x256xf32, #tpu.memory_space<vmem>>, vector<8x25x256xf32>
    %cst = arith.constant dense<0.000000e+00> : vector<8x25xf32>
    %1 = vector.multi_reduction <add>, %0, %cst [2] : vector<8x25x256xf32> to vector<8x25xf32>
    %cst_2 = arith.constant 2.560000e+02 : f32
    %2 = vector.broadcast %cst_2 : f32 to vector<8x25xf32>
    %3 = arith.divf %1, %2 : vector<8x25xf32>
    %c0_3 = arith.constant 0 : index
    %c0_4 = arith.constant 0 : index
    %4 = vector.load %arg2[%c0_3, %c0_4] : memref<25x128xf32, #tpu.memory_space<vmem>>, vector<25x128xf32>
    %cst_5 = arith.constant dense<0.000000e+00> : vector<8x128xf32>
    %5 = tpu.matmul %3, %4, %cst_5 {dimension_numbers = #tpu.dot_dimension_numbers<[1], [0], [0], [1], [0, 0, 1, 1], [], []>} : vector<8x25xf32>, vector<25x128xf32>, vector<8x128xf32> -> vector<8x128xf32>
    %c0_6 = arith.constant 0 : index
    %c0_7 = arith.constant 0 : index
    %6 = vector.load %arg5[%c0_6, %c0_7] : memref<1x128xf32, #tpu.memory_space<vmem>>, vector<1x128xf32>
    %7 = vector.broadcast %6 : vector<1x128xf32> to vector<8x128xf32>
    %8 = arith.addf %5, %7 : vector<8x128xf32>
    %c0_8 = arith.constant 0 : index
    %c0_9 = arith.constant 0 : index
    %9 = vector.load %arg11[%c0_8, %c0_9] : memref<8x128xf32, #tpu.memory_space<vmem>>, vector<8x128xf32>
    tpu.vector_store %arg11[%c0_8, %c0_9], %8 {strides = array<i32>} : memref<8x128xf32, #tpu.memory_space<vmem>>, vector<8x128xf32>,
    %c0_10 = arith.constant 0 : index
    %c0_11 = arith.constant 0 : index
    %10 = vector.load %arg3[%c0_10, %c0_11] : memref<25x480xf32, #tpu.memory_space<vmem>>, vector<25x480xf32>
    %cst_12 = arith.constant dense<0.000000e+00> : vector<8x480xf32>
    %11 = tpu.matmul %3, %10, %cst_12 {dimension_numbers = #tpu.dot_dimension_numbers<[1], [0], [0], [1], [0, 0, 1, 1], [], []>} : vector<8x25xf32>, vector<25x480xf32>, vector<8x480xf32> -> vector<8x480xf32>
    %c0_13 = arith.constant 0 : index
    %c0_14 = arith.constant 0 : index
    %12 = vector.load %arg6[%c0_13, %c0_14] : memref<1x480xf32, #tpu.memory_space<vmem>>, vector<1x480xf32>
    %13 = vector.broadcast %12 : vector<1x480xf32> to vector<8x480xf32>
    %14 = arith.addf %11, %13 : vector<8x480xf32>
    %c0_15 = arith.constant 0 : index
    %c0_16 = arith.constant 0 : index
    %15 = vector.load %arg4[%c0_15, %c0_16] : memref<25x480xf32, #tpu.memory_space<vmem>>, vector<25x480xf32>
    %cst_17 = arith.constant dense<0.000000e+00> : vector<8x480xf32>
    %16 = tpu.matmul %3, %15, %cst_17 {dimension_numbers = #tpu.dot_dimension_numbers<[1], [0], [0], [1], [0, 0, 1, 1], [], []>} : vector<8x25xf32>, vector<25x480xf32>, vector<8x480xf32> -> vector<8x480xf32>
    %c0_18 = arith.constant 0 : index
    %c0_19 = arith.constant 0 : index
    %17 = vector.load %arg7[%c0_18, %c0_19] : memref<1x480xf32, #tpu.memory_space<vmem>>, vector<1x480xf32>
    %18 = vector.broadcast %17 : vector<1x480xf32> to vector<8x480xf32>
    %19 = arith.addf %16, %18 : vector<8x480xf32>
    %cst_20 = arith.constant -0.645771801 : f32
    %cst_21 = arith.constant 0.645771801 : f32
    %20 = vector.broadcast %cst_20 : f32 to vector<8x480xf32>
    %21 = arith.maximumf %20, %14 : vector<8x480xf32>
    %22 = vector.broadcast %cst_21 : f32 to vector<8x480xf32>
    %23 = arith.minimumf %22, %21 : vector<8x480xf32>
    %cst_22 = arith.constant -2.001000e+00 : f32
    %cst_23 = arith.constant 2.001000e+00 : f32
    %24 = vector.broadcast %cst_22 : f32 to vector<8x480xf32>
    %25 = arith.maximumf %24, %19 : vector<8x480xf32>
    %26 = vector.broadcast %cst_23 : f32 to vector<8x480xf32>
    %27 = arith.minimumf %26, %25 : vector<8x480xf32>
    %c0_24 = arith.constant 0 : index
    %c0_25 = arith.constant 0 : index
    %28 = vector.load %arg9[%c0_24, %c0_25] : memref<8x1xf32, #tpu.memory_space<vmem>>, vector<8x1xf32>
    %c0_26 = arith.constant 0 : index
    %c0_27 = arith.constant 0 : index
    %29 = vector.load %arg10[%c0_26, %c0_27] : memref<8x1xf32, #tpu.memory_space<vmem>>, vector<8x1xf32>
    %30 = math.sin %23 : vector<8x480xf32>
    %31 = math.cos %23 : vector<8x480xf32>
    %32 = arith.divf %30, %31 : vector<8x480xf32>
    %cst_28 = arith.constant 4.000000e-01 : f32
    %33 = vector.broadcast %cst_28 : f32 to vector<8x480xf32>
    %34 = arith.mulf %33, %32 : vector<8x480xf32>
    %35 = arith.mulf %34, %34 : vector<8x480xf32>
    %cst_29 = arith.constant 1.000000e+00 : f32
    %36 = vector.broadcast %cst_29 : f32 to vector<8x480xf32>
    %37 = arith.addf %36, %35 : vector<8x480xf32>
    %38 = math.rsqrt %37 : vector<8x480xf32>
    %39 = arith.mulf %34, %38 : vector<8x480xf32>
    %c0_30 = arith.constant 0 : index
    %c0_31 = arith.constant 0 : index
    %40 = vector.load %arg8[%c0_30, %c0_31] : memref<480x480xf32, #tpu.memory_space<vmem>>, vector<480x480xf32>
    %cst_32 = arith.constant dense<0.000000e+00> : vector<8x480xf32>
    %41 = tpu.matmul %27, %40, %cst_32 {dimension_numbers = #tpu.dot_dimension_numbers<[1], [0], [0], [1], [0, 0, 1, 1], [], []>} : vector<8x480xf32>, vector<480x480xf32>, vector<8x480xf32> -> vector<8x480xf32>
    %cst_33 = arith.constant 1.000000e-01 : f32
    %42 = vector.broadcast %cst_33 : f32 to vector<8x480xf32>
    %43 = arith.mulf %42, %41 : vector<8x480xf32>
    %44 = vector.broadcast %29 : vector<8x1xf32> to vector<8x480xf32>
    %45 = arith.addf %44, %43 : vector<8x480xf32>
    %46 = arith.mulf %45, %39 : vector<8x480xf32>
    %cst_34 = arith.constant 1.000000e-01 : f32
    %47 = vector.broadcast %cst_34 : f32 to vector<8x1xf32>
    %48 = arith.mulf %47, %28 : vector<8x1xf32>
    %49 = vector.broadcast %48 : vector<8x1xf32> to vector<8x480xf32>
    %50 = arith.mulf %46, %49 : vector<8x480xf32>
    %cst_35 = arith.constant dense<0.000000e+00> : vector<8x480xf32>
    %51 = tpu.matmul %50, %40, %cst_35 {dimension_numbers = #tpu.dot_dimension_numbers<[1], [0], [0], [1], [0, 0, 1, 1], [], []>} : vector<8x480xf32>, vector<480x480xf32>, vector<8x480xf32> -> vector<8x480xf32>
    %52 = math.cos %51 : vector<8x480xf32>
    %53 = math.sin %51 : vector<8x480xf32>
    %54 = arith.mulf %52, %38 : vector<8x480xf32>
    %55 = arith.mulf %53, %39 : vector<8x480xf32>
    %56 = arith.subf %54, %55 : vector<8x480xf32>
    %57 = arith.mulf %53, %38 : vector<8x480xf32>
    %58 = arith.mulf %52, %39 : vector<8x480xf32>
    %59 = arith.addf %57, %58 : vector<8x480xf32>
    %60 = arith.mulf %45, %56 : vector<8x480xf32>
    %cst_36 = arith.constant 1.000000e-01 : f32
    %61 = vector.broadcast %cst_36 : f32 to vector<8x480xf32>
    %62 = arith.mulf %60, %61 : vector<8x480xf32>
    %cst_37 = arith.constant dense<0.000000e+00> : vector<8x480xf32>
    %63 = tpu.matmul %62, %40, %cst_37 {dimension_numbers = #tpu.dot_dimension_numbers<[1], [0], [0], [1], [0, 0, 1, 1], [], []>} : vector<8x480xf32>, vector<480x480xf32>, vector<8x480xf32> -> vector<8x480xf32>
    %c0_38 = arith.constant 0 : index
    %c0_39 = arith.constant 0 : index
    %64 = vector.load %arg12[%c0_38, %c0_39] : memref<8x480xf32, #tpu.memory_space<vmem>>, vector<8x480xf32>
    tpu.vector_store %arg12[%c0_38, %c0_39], %63 {strides = array<i32>} : memref<8x480xf32, #tpu.memory_space<vmem>>, vector<8x480xf32>,
    %65 = arith.mulf %45, %59 : vector<8x480xf32>
    %cst_40 = arith.constant 1.000000e-01 : f32
    %66 = vector.broadcast %cst_40 : f32 to vector<8x480xf32>
    %67 = arith.mulf %65, %66 : vector<8x480xf32>
    %cst_41 = arith.constant dense<0.000000e+00> : vector<8x480xf32>
    %68 = tpu.matmul %67, %40, %cst_41 {dimension_numbers = #tpu.dot_dimension_numbers<[1], [0], [0], [1], [0, 0, 1, 1], [], []>} : vector<8x480xf32>, vector<480x480xf32>, vector<8x480xf32> -> vector<8x480xf32>
    %c0_42 = arith.constant 0 : index
    %c0_43 = arith.constant 0 : index
    %69 = vector.load %arg13[%c0_42, %c0_43] : memref<8x480xf32, #tpu.memory_space<vmem>>, vector<8x480xf32>
    tpu.vector_store %arg13[%c0_42, %c0_43], %68 {strides = array<i32>} : memref<8x480xf32, #tpu.memory_space<vmem>>, vector<8x480xf32>,
    return
  }
  func.func @transform_0(%arg0: i32) -> (i32, i32, i32) {
    %c0_i32 = arith.constant 0 : i32
    %c0_i32_0 = arith.constant 0 : i32
    %c0_i32_1 = arith.constant 0 : i32
    return %arg0, %c0_i32, %c0_i32_0 : i32, i32, i32
  }
  func.func @transform_1(%arg0: i32) -> (i32, i32) {
    %c0_i32 = arith.constant 0 : i32
    %c0_i32_0 = arith.constant 0 : i32
    %c0_i32_1 = arith.constant 0 : i32
    return %c0_i32, %c0_i32_0 : i32, i32
  }
  func.func @transform_2(%arg0: i32) -> (i32, i32) {
    %c0_i32 = arith.constant 0 : i32
    %c0_i32_0 = arith.constant 0 : i32
    %c0_i32_1 = arith.constant 0 : i32
    return %c0_i32, %c0_i32_0 : i32, i32
  }
  func.func @transform_3(%arg0: i32) -> (i32, i32) {
    %c0_i32 = arith.constant 0 : i32
    %c0_i32_0 = arith.constant 0 : i32
    %c0_i32_1 = arith.constant 0 : i32
    return %c0_i32, %c0_i32_0 : i32, i32
  }
  func.func @transform_4(%arg0: i32) -> (i32, i32) {
    %c0_i32 = arith.constant 0 : i32
    %c0_i32_0 = arith.constant 0 : i32
    %c0_i32_1 = arith.constant 0 : i32
    return %c0_i32, %c0_i32_0 : i32, i32
  }
  func.func @transform_5(%arg0: i32) -> (i32, i32) {
    %c0_i32 = arith.constant 0 : i32
    %c0_i32_0 = arith.constant 0 : i32
    %c0_i32_1 = arith.constant 0 : i32
    return %c0_i32, %c0_i32_0 : i32, i32
  }
  func.func @transform_6(%arg0: i32) -> (i32, i32) {
    %c0_i32 = arith.constant 0 : i32
    %c0_i32_0 = arith.constant 0 : i32
    %c0_i32_1 = arith.constant 0 : i32
    return %c0_i32, %c0_i32_0 : i32, i32
  }
  func.func @transform_7(%arg0: i32) -> (i32, i32) {
    %c0_i32 = arith.constant 0 : i32
    %c0_i32_0 = arith.constant 0 : i32
    %c0_i32_1 = arith.constant 0 : i32
    return %c0_i32, %c0_i32_0 : i32, i32
  }
  func.func @transform_8(%arg0: i32) -> (i32, i32) {
    %c0_i32 = arith.constant 0 : i32
    %c0_i32_0 = arith.constant 0 : i32
    return %arg0, %c0_i32 : i32, i32
  }
  func.func @transform_9(%arg0: i32) -> (i32, i32) {
    %c0_i32 = arith.constant 0 : i32
    %c0_i32_0 = arith.constant 0 : i32
    return %arg0, %c0_i32 : i32, i32
  }
  func.func @transform_10(%arg0: i32) -> (i32, i32) {
    %c0_i32 = arith.constant 0 : i32
    %c0_i32_0 = arith.constant 0 : i32
    return %arg0, %c0_i32 : i32, i32
  }
  func.func @transform_11(%arg0: i32) -> (i32, i32) {
    %c0_i32 = arith.constant 0 : i32
    %c0_i32_0 = arith.constant 0 : i32
    return %arg0, %c0_i32 : i32, i32
  }
  func.func @transform_12(%arg0: i32) -> (i32, i32) {
    %c0_i32 = arith.constant 0 : i32
    %c0_i32_0 = arith.constant 0 : i32
    return %arg0, %c0_i32 : i32, i32
  }
}

</mosaic_0001>

<llo_original>
// kernel: model_forward.1
$region0: #{model_forward.1}
  #allocation0 [shape = 'u32[]', space=smem, size = 0x4, offset = 0x4, fixed_abs, tag = 'smem constant byte address 0x4 - core index']
  #allocation1 [shape = 'u32[72,128]{1,0:T(1,128)}', space=vmem, size = 0x9000, scoped, tag = 'internal scratch']
  %s0 = inlined_call_operand.vmem [shape: f32[16,25,256], index: 0, kind: input, shape index: {}]
  %s1 = inlined_call_operand.vmem [shape: f32[25,128], index: 1, kind: input, shape index: {}]
  %s2 = inlined_call_operand.vmem [shape: f32[25,480], index: 2, kind: input, shape index: {}]
  %s3 = inlined_call_operand.vmem [shape: f32[25,480], index: 3, kind: input, shape index: {}]
  %s4 = inlined_call_operand.vmem [shape: f32[1,128], index: 4, kind: input, shape index: {}]
  %s5 = inlined_call_operand.vmem [shape: f32[1,480], index: 5, kind: input, shape index: {}]
  %s6 = inlined_call_operand.vmem [shape: f32[1,480], index: 6, kind: input, shape index: {}]
  %s7 = inlined_call_operand.vmem [shape: f32[480,480], index: 7, kind: input, shape index: {}]
  %s8 = inlined_call_operand.vmem [shape: f32[16,1], index: 8, kind: input, shape index: {}]
  %s9 = inlined_call_operand.vmem [shape: f32[16,1], index: 9, kind: input, shape index: {}]
  %s10 = inlined_call_operand.vmem [shape: f32[16,128], index: 10, kind: output, shape index: {0}]
  %s11 = inlined_call_operand.vmem [shape: f32[16,480], index: 11, kind: output, shape index: {1}]
  %s12 = inlined_call_operand.vmem [shape: f32[16,480], index: 12, kind: output, shape index: {2}]
  %13 = xla_tuple %s10, %s11, %s12
  %s14 = sld [smem:[#allocation0]]
  $region89: #{model_forward.1} parent=0
    _
  %s16 = ssub.s32 1, %s14
  %s17 = scalar_select 0, %s16, %s14
  loop: start=0, step=1, limit=4
  $region2: #{model_forward.1} parent=0 // loop_pre_header
    _
  $region3: #{model_forward.1} parent=0 // loop_header
    %s19 = sphi 0, %s23
    %p20 = scmp.ge.s32.totalorder %s19, 4
    %s29 = sphi 0, %s31
    %s32 = sphi 0, %s29
    %s33 = sphi 0, %s32
    %s49 = sphi 0, %s33
    %s53 = sphi 0, %s53
    %s55 = sphi 0, %s53
    %s56 = sphi 0, %s55
    %s70 = sphi 0, %s56
    %s74 = sphi 0, %s74
    %s76 = sphi 0, %s74
    %s77 = sphi 0, %s76
    %s91 = sphi 0, %s77
    %s95 = sphi 0, %s95
    %s97 = sphi 0, %s95
    %s98 = sphi 0, %s97
    %s112 = sphi 0, %s98
    %s116 = sphi 0, %s116
    %s118 = sphi 0, %s116
    %s119 = sphi 0, %s118
    %s133 = sphi 0, %s119
    %s137 = sphi 0, %s137
    %s139 = sphi 0, %s137
    %s140 = sphi 0, %s139
    %s154 = sphi 0, %s140
    %s158 = sphi 0, %s158
    %s160 = sphi 0, %s158
    %s161 = sphi 0, %s160
    %s175 = sphi 0, %s161
    %s179 = sphi 0, %s179
    %s181 = sphi 0, %s179
    %s182 = sphi 0, %s181
    %s196 = sphi 0, %s182
    %s202 = sphi 0, %s204
    %s205 = sphi 0, %s202
    %s206 = sphi 0, %s205
    %s222 = sphi 0, %s206
    %s228 = sphi 0, %s230
    %s231 = sphi 0, %s228
    %s232 = sphi 0, %s231
    %s248 = sphi 0, %s232
    %s254 = sphi 0, %s256
    %s257 = sphi 0, %s254
    %s258 = sphi 0, %s257
    %s274 = sphi 0, %s258
    %s280 = sphi 0, %s282
    %s283 = sphi 0, %s280
    %s284 = sphi 0, %s283
    %s300 = sphi 0, %s284
    %s306 = sphi 0, %s308
    %s309 = sphi 0, %s306
    %s310 = sphi 0, %s309
    %s326 = sphi 0, %s310
  $region4: #{model_forward.1} parent=0 // loop_header_branch
    %22 = sbr.rel (%p20) target = $region8
  $region5: #{model_forward.1} parent=0 // loop_body
    %s24 = ssub.s32 %s19, 1
    %s25 = ssub.s32 %s19, 2
    %s26 = sadd.s32 %s19, 1
    %s27 = ssub.s32 %s19, %s26
    %p28 = scmp.eq.s32.totalorder %s27, 0
    %s30 = sadd.s32 %s29, 1
    %s31 = scalar_select %p28, %s29, %s30
    %p34 = pneg %p28
    %p35 = scmp.eq.s32.totalorder %s19, 1
    %p36 = por %p34, %p35
    %p37 = scmp.ne.s32.totalorder %s29, %s32
    %p38 = scmp.eq.s32.totalorder %s19, 0
    %p39 = por %p37, %p38
    %p40 = scmp.ne.s32.totalorder %s29, %s32
    %p41 = scmp.eq.s32.totalorder %s24, 1
    %p42 = por %p40, %p41
    %p43 = scmp.ne.s32.totalorder %s32, %s33
    %p44 = scmp.eq.s32.totalorder %s24, 0
    %p45 = por %p43, %p44
    %p46 = scmp.ne.s32.totalorder %s32, %s33
    %p47 = scmp.eq.s32.totalorder %s25, 1
    %p48 = por %p46, %p47
    %p50 = scmp.ne.s32.totalorder %s33, %s49
    %p51 = scmp.eq.s32.totalorder %s25, 0
    %p52 = por %p50, %p51
    %s54 = sadd.s32 %s53, 1
    %p57 = scmp.eq.s32.totalorder %s19, 1
    %p58 = scmp.ne.s32.totalorder %s53, %s55
    %p59 = scmp.eq.s32.totalorder %s19, 0
    %p60 = por %p58, %p59
    %p61 = scmp.ne.s32.totalorder %s53, %s55
    %p62 = scmp.eq.s32.totalorder %s24, 1
    %p63 = por %p61, %p62
    %p64 = scmp.ne.s32.totalorder %s55, %s56
    %p65 = scmp.eq.s32.totalorder %s24, 0
    %p66 = por %p64, %p65
    %p67 = scmp.ne.s32.totalorder %s55, %s56
    %p68 = scmp.eq.s32.totalorder %s25, 1
    %p69 = por %p67, %p68
    %p71 = scmp.ne.s32.totalorder %s56, %s70
    %p72 = scmp.eq.s32.totalorder %s25, 0
    %p73 = por %p71, %p72
    %s75 = sadd.s32 %s74, 1
    %p78 = scmp.eq.s32.totalorder %s19, 1
    %p79 = scmp.ne.s32.totalorder %s74, %s76
    %p80 = scmp.eq.s32.totalorder %s19, 0
    %p81 = por %p79, %p80
    %p82 = scmp.ne.s32.totalorder %s74, %s76
    %p83 = scmp.eq.s32.totalorder %s24, 1
    %p84 = por %p82, %p83
    %p85 = scmp.ne.s32.totalorder %s76, %s77
    %p86 = scmp.eq.s32.totalorder %s24, 0
    %p87 = por %p85, %p86
    %p88 = scmp.ne.s32.totalorder %s76, %s77
    %p89 = scmp.eq.s32.totalorder %s25, 1
    %p90 = por %p88, %p89
    %p92 = scmp.ne.s32.totalorder %s77, %s91
    %p93 = scmp.eq.s32.totalorder %s25, 0
    %p94 = por %p92, %p93
    %s96 = sadd.s32 %s95, 1
    %p99 = scmp.eq.s32.totalorder %s19, 1
    %p100 = scmp.ne.s32.totalorder %s95, %s97
    %p101 = scmp.eq.s32.totalorder %s19, 0
    %p102 = por %p100, %p101
    %p103 = scmp.ne.s32.totalorder %s95, %s97
    %p104 = scmp.eq.s32.totalorder %s24, 1
    %p105 = por %p103, %p104
    %p106 = scmp.ne.s32.totalorder %s97, %s98
    %p107 = scmp.eq.s32.totalorder %s24, 0
    %p108 = por %p106, %p107
    %p109 = scmp.ne.s32.totalorder %s97, %s98
    %p110 = scmp.eq.s32.totalorder %s25, 1
    %p111 = por %p109, %p110
    %p113 = scmp.ne.s32.totalorder %s98, %s112
    %p114 = scmp.eq.s32.totalorder %s25, 0
    %p115 = por %p113, %p114
    %s117 = sadd.s32 %s116, 1
    %p120 = scmp.eq.s32.totalorder %s19, 1
    %p121 = scmp.ne.s32.totalorder %s116, %s118
    %p122 = scmp.eq.s32.totalorder %s19, 0
    %p123 = por %p121, %p122
    %p124 = scmp.ne.s32.totalorder %s116, %s118
    %p125 = scmp.eq.s32.totalorder %s24, 1
    %p126 = por %p124, %p125
    %p127 = scmp.ne.s32.totalorder %s118, %s119
    %p128 = scmp.eq.s32.totalorder %s24, 0
    %p129 = por %p127, %p128
    %p130 = scmp.ne.s32.totalorder %s118, %s119
    %p131 = scmp.eq.s32.totalorder %s25, 1
    %p132 = por %p130, %p131
    %p134 = scmp.ne.s32.totalorder %s119, %s133
    %p135 = scmp.eq.s32.totalorder %s25, 0
    %p136 = por %p134, %p135
    %s138 = sadd.s32 %s137, 1
    %p141 = scmp.eq.s32.totalorder %s19, 1
    %p142 = scmp.ne.s32.totalorder %s137, %s139
    %p143 = scmp.eq.s32.totalorder %s19, 0
    %p144 = por %p142, %p143
    %p145 = scmp.ne.s32.totalorder %s137, %s139
    %p146 = scmp.eq.s32.totalorder %s24, 1
    %p147 = por %p145, %p146
    %p148 = scmp.ne.s32.totalorder %s139, %s140
    %p149 = scmp.eq.s32.totalorder %s24, 0
    %p150 = por %p148, %p149
    %p151 = scmp.ne.s32.totalorder %s139, %s140
    %p152 = scmp.eq.s32.totalorder %s25, 1
    %p153 = por %p151, %p152
    %p155 = scmp.ne.s32.totalorder %s140, %s154
    %p156 = scmp.eq.s32.totalorder %s25, 0
    %p157 = por %p155, %p156
    %s159 = sadd.s32 %s158, 1
    %p162 = scmp.eq.s32.totalorder %s19, 1
    %p163 = scmp.ne.s32.totalorder %s158, %s160
    %p164 = scmp.eq.s32.totalorder %s19, 0
    %p165 = por %p163, %p164
    %p166 = scmp.ne.s32.totalorder %s158, %s160
    %p167 = scmp.eq.s32.totalorder %s24, 1
    %p168 = por %p166, %p167
    %p169 = scmp.ne.s32.totalorder %s160, %s161
    %p170 = scmp.eq.s32.totalorder %s24, 0
    %p171 = por %p169, %p170
    %p172 = scmp.ne.s32.totalorder %s160, %s161
    %p173 = scmp.eq.s32.totalorder %s25, 1
    %p174 = por %p172, %p173
    %p176 = scmp.ne.s32.totalorder %s161, %s175
    %p177 = scmp.eq.s32.totalorder %s25, 0
    %p178 = por %p176, %p177
    %s180 = sadd.s32 %s179, 1
    %p183 = scmp.eq.s32.totalorder %s19, 1
    %p184 = scmp.ne.s32.totalorder %s179, %s181
    %p185 = scmp.eq.s32.totalorder %s19, 0
    %p186 = por %p184, %p185
    %p187 = scmp.ne.s32.totalorder %s179, %s181
    %p188 = scmp.eq.s32.totalorder %s24, 1
    %p189 = por %p187, %p188
    %p190 = scmp.ne.s32.totalorder %s181, %s182
    %p191 = scmp.eq.s32.totalorder %s24, 0
    %p192 = por %p190, %p191
    %p193 = scmp.ne.s32.totalorder %s181, %s182
    %p194 = scmp.eq.s32.totalorder %s25, 1
    %p195 = por %p193, %p194
    %p197 = scmp.ne.s32.totalorder %s182, %s196
    %p198 = scmp.eq.s32.totalorder %s25, 0
    %p199 = por %p197, %p198
    %s200 = ssub.s32 %s19, %s26
    %p201 = scmp.eq.s32.totalorder %s200, 0
    %s203 = sadd.s32 %s202, 1
    %s204 = scalar_select %p201, %s202, %s203
    %p207 = pneg %p201
    %p208 = scmp.eq.s32.totalorder %s19, 1
    %p209 = por %p207, %p208
    %p210 = scmp.ne.s32.totalorder %s202, %s205
    %p211 = scmp.eq.s32.totalorder %s19, 0
    %p212 = por %p210, %p211
    %p213 = scmp.ne.s32.totalorder %s202, %s205
    %p214 = scmp.eq.s32.totalorder %s24, 1
    %p215 = por %p213, %p214
    %p216 = scmp.ne.s32.totalorder %s205, %s206
    %p217 = scmp.eq.s32.totalorder %s24, 0
    %p218 = por %p216, %p217
    %p219 = scmp.ne.s32.totalorder %s205, %s206
    %p220 = scmp.eq.s32.totalorder %s25, 1
    %p221 = por %p219, %p220
    %p223 = scmp.ne.s32.totalorder %s206, %s222
    %p224 = scmp.eq.s32.totalorder %s25, 0
    %p225 = por %p223, %p224
    %s226 = ssub.s32 %s19, %s26
    %p227 = scmp.eq.s32.totalorder %s226, 0
    %s229 = sadd.s32 %s228, 1
    %s230 = scalar_select %p227, %s228, %s229
    %p233 = pneg %p227
    %p234 = scmp.eq.s32.totalorder %s19, 1
    %p235 = por %p233, %p234
    %p236 = scmp.ne.s32.totalorder %s228, %s231
    %p237 = scmp.eq.s32.totalorder %s19, 0
    %p238 = por %p236, %p237
    %p239 = scmp.ne.s32.totalorder %s228, %s231
    %p240 = scmp.eq.s32.totalorder %s24, 1
    %p241 = por %p239, %p240
    %p242 = scmp.ne.s32.totalorder %s231, %s232
    %p243 = scmp.eq.s32.totalorder %s24, 0
    %p244 = por %p242, %p243
    %p245 = scmp.ne.s32.totalorder %s231, %s232
    %p246 = scmp.eq.s32.totalorder %s25, 1
    %p247 = por %p245, %p246
    %p249 = scmp.ne.s32.totalorder %s232, %s248
    %p250 = scmp.eq.s32.totalorder %s25, 0
    %p251 = por %p249, %p250
    %s252 = ssub.s32 %s19, %s26
    %p253 = scmp.eq.s32.totalorder %s252, 0
    %s255 = sadd.s32 %s254, 1
    %s256 = scalar_select %p253, %s254, %s255
    %p259 = pneg %p253
    %p260 = scmp.eq.s32.totalorder %s19, 1
    %p261 = por %p259, %p260
    %p262 = scmp.ne.s32.totalorder %s254, %s257
    %p263 = scmp.eq.s32.totalorder %s19, 0
    %p264 = por %p262, %p263
    %p265 = scmp.ne.s32.totalorder %s254, %s257
    %p266 = scmp.eq.s32.totalorder %s24, 1
    %p267 = por %p265, %p266
    %p268 = scmp.ne.s32.totalorder %s257, %s258
    %p269 = scmp.eq.s32.totalorder %s24, 0
    %p270 = por %p268, %p269
    %p271 = scmp.ne.s32.totalorder %s257, %s258
    %p272 = scmp.eq.s32.totalorder %s25, 1
    %p273 = por %p271, %p272
    %p275 = scmp.ne.s32.totalorder %s258, %s274
    %p276 = scmp.eq.s32.totalorder %s25, 0
    %p277 = por %p275, %p276
    %s278 = ssub.s32 %s19, %s26
    %p279 = scmp.eq.s32.totalorder %s278, 0
    %s281 = sadd.s32 %s280, 1
    %s282 = scalar_select %p279, %s280, %s281
    %p285 = pneg %p279
    %p286 = scmp.eq.s32.totalorder %s19, 1
    %p287 = por %p285, %p286
    %p288 = scmp.ne.s32.totalorder %s280, %s283
    %p289 = scmp.eq.s32.totalorder %s19, 0
    %p290 = por %p288, %p289
    %p291 = scmp.ne.s32.totalorder %s280, %s283
    %p292 = scmp.eq.s32.totalorder %s24, 1
    %p293 = por %p291, %p292
    %p294 = scmp.ne.s32.totalorder %s283, %s284
    %p295 = scmp.eq.s32.totalorder %s24, 0
    %p296 = por %p294, %p295
    %p297 = scmp.ne.s32.totalorder %s283, %s284
    %p298 = scmp.eq.s32.totalorder %s25, 1
    %p299 = por %p297, %p298
    %p301 = scmp.ne.s32.totalorder %s284, %s300
    %p302 = scmp.eq.s32.totalorder %s25, 0
    %p303 = por %p301, %p302
    %s304 = ssub.s32 %s19, %s26
    %p305 = scmp.eq.s32.totalorder %s304, 0
    %s307 = sadd.s32 %s306, 1
    %s308 = scalar_select %p305, %s306, %s307
    %p311 = pneg %p305
    %p312 = scmp.eq.s32.totalorder %s19, 1
    %p313 = por %p311, %p312
    %p314 = scmp.ne.s32.totalorder %s306, %s309
    %p315 = scmp.eq.s32.totalorder %s19, 0
    %p316 = por %p314, %p315
    %p317 = scmp.ne.s32.totalorder %s306, %s309
    %p318 = scmp.eq.s32.totalorder %s24, 1
    %p319 = por %p317, %p318
    %p320 = scmp.ne.s32.totalorder %s309, %s310
    %p321 = scmp.eq.s32.totalorder %s24, 0
    %p322 = por %p320, %p321
    %p323 = scmp.ne.s32.totalorder %s309, %s310
    %p324 = scmp.eq.s32.totalorder %s25, 1
    %p325 = por %p323, %p324
    %p327 = scmp.ne.s32.totalorder %s310, %s326
    %p328 = scmp.eq.s32.totalorder %s25, 0
    %p329 = por %p327, %p328
    %p330 = scmp.le.s32.totalorder 1, %s19
    %p331 = scmp.lt.s32.totalorder %s19, 3
    %p332 = pnand %p330, %p331
    %p333 = pneg %p332
    // Predicated region
    $region9: #{model_forward.1} parent=5 // pred_check
      _
    $region10: #{model_forward.1} parent=5 // pred_check_branch
      %335 = sbr.rel (%p332) target = $region12
    $region11: #{model_forward.1} parent=5 // pred_region
      %s336 = ssub.s32 %s19, 1
      // Predicated region
      $region13: #{model_forward.1} parent=11 // pred_check
        %p337 = pneg %p66
      $region14: #{model_forward.1} parent=11 // pred_check_branch
        %339 = sbr.rel (%p337) target = $region16
      $region15: #{model_forward.1} parent=11 // pred_region
        _
      $region16: #{model_forward.1} parent=11 // pred_fallthru
        _
      // Predicated region
      $region17: #{model_forward.1} parent=11 // pred_check
        %p340 = pneg %p87
      $region18: #{model_forward.1} parent=11 // pred_check_branch
        %342 = sbr.rel (%p340) target = $region20
      $region19: #{model_forward.1} parent=11 // pred_region
        _
      $region20: #{model_forward.1} parent=11 // pred_fallthru
        _
      // Predicated region
      $region21: #{model_forward.1} parent=11 // pred_check
        %p343 = pneg %p108
      $region22: #{model_forward.1} parent=11 // pred_check_branch
        %345 = sbr.rel (%p343) target = $region24
      $region23: #{model_forward.1} parent=11 // pred_region
        _
      $region24: #{model_forward.1} parent=11 // pred_fallthru
        _
      // Predicated region
      $region25: #{model_forward.1} parent=11 // pred_check
        %p346 = pneg %p129
      $region26: #{model_forward.1} parent=11 // pred_check_branch
        %348 = sbr.rel (%p346) target = $region28
      $region27: #{model_forward.1} parent=11 // pred_region
        _
      $region28: #{model_forward.1} parent=11 // pred_fallthru
        _
      // Predicated region
      $region29: #{model_forward.1} parent=11 // pred_check
        %p349 = pneg %p150
      $region30: #{model_forward.1} parent=11 // pred_check_branch
        %351 = sbr.rel (%p349) target = $region32
      $region31: #{model_forward.1} parent=11 // pred_region
        _
      $region32: #{model_forward.1} parent=11 // pred_fallthru
        _
      // Predicated region
      $region33: #{model_forward.1} parent=11 // pred_check
        %p352 = pneg %p171
      $region34: #{model_forward.1} parent=11 // pred_check_branch
        %354 = sbr.rel (%p352) target = $region36
      $region35: #{model_forward.1} parent=11 // pred_region
        _
      $region36: #{model_forward.1} parent=11 // pred_fallthru
        _
      // Predicated region
      $region37: #{model_forward.1} parent=11 // pred_check
        %p355 = pneg %p192
      $region38: #{model_forward.1} parent=11 // pred_check_branch
        %357 = sbr.rel (%p355) target = $region40
      $region39: #{model_forward.1} parent=11 // pred_region
        _
      $region40: #{model_forward.1} parent=11 // pred_fallthru
        _
    $region12: #{model_forward.1} parent=5 // pred_fallthru
      _
    %p358 = scmp.lt.s32.totalorder %s19, 2
    // Predicated region
    $region41: #{model_forward.1} parent=5 // pred_check
      %p359 = pneg %p358
    $region42: #{model_forward.1} parent=5 // pred_check_branch
      %361 = sbr.rel (%p359) target = $region44
    $region43: #{model_forward.1} parent=5 // pred_region
      // Predicated region
      $region45: #{model_forward.1} parent=43 // pred_check
        %p362 = pneg %p39
      $region46: #{model_forward.1} parent=43 // pred_check_branch
        %364 = sbr.rel (%p362) target = $region48
      $region47: #{model_forward.1} parent=43 // pred_region
        %s365 = smul.u32 8, %s19
        %p366 = scmp.lt.s32.totalorder %s365, 15
        %s367 = scalar_select %p366, %s365, 15
        %s368 = smul.addr %s367, 8
        %s369 = smul.addr %s368, 8
        %s370 = scalar_lea.vmem %s0, %s369
        %s371 = smul.u32 8, %s19
      $region48: #{model_forward.1} parent=43 // pred_fallthru
        _
      // Predicated region
      $region49: #{model_forward.1} parent=43 // pred_check
        %p372 = pneg %p212
      $region50: #{model_forward.1} parent=43 // pred_check_branch
        %374 = sbr.rel (%p372) target = $region52
      $region51: #{model_forward.1} parent=43 // pred_region
        %p375 = scmp.lt.s32.totalorder %s19, 1
        %s376 = scalar_select %p375, %s19, 1
        %s377 = smul.addr %s376, 8
        %s378 = scalar_lea.vmem %s8, %s377
      $region52: #{model_forward.1} parent=43 // pred_fallthru
        _
      // Predicated region
      $region53: #{model_forward.1} parent=43 // pred_check
        %p379 = pneg %p238
      $region54: #{model_forward.1} parent=43 // pred_check_branch
        %381 = sbr.rel (%p379) target = $region56
      $region55: #{model_forward.1} parent=43 // pred_region
        %p382 = scmp.lt.s32.totalorder %s19, 1
        %s383 = scalar_select %p382, %s19, 1
        %s384 = smul.addr %s383, 8
        %s385 = scalar_lea.vmem %s9, %s384
      $region56: #{model_forward.1} parent=43 // pred_fallthru
        _
    $region44: #{model_forward.1} parent=5 // pred_fallthru
      _
    %p386 = scmp.le.s32.totalorder 1, %s19
    %p387 = scmp.lt.s32.totalorder %s19, 3
    %p388 = pnand %p386, %p387
    %p389 = pneg %p388
    // Predicated region
    $region57: #{model_forward.1} parent=5 // pred_check
      _
    $region58: #{model_forward.1} parent=5 // pred_check_branch
      %391 = sbr.rel (%p388) target = $region60
    $region59: #{model_forward.1} parent=5 // pred_region
      %s392 = ssub.s32 %s19, 1
      %s393 = smul.u32 8, %s24
      %p394 = scmp.lt.s32.totalorder %s393, 15
      %s395 = scalar_select %p394, %s393, 15
      %s396 = smul.addr %s395, 8
      %s397 = smul.addr %s396, 8
      %s398 = scalar_lea.vmem %s0, %s397
      %p399 = pneg %p45
      %p400 = pneg %p42
      %p401 = pneg %p66
      %p402 = pneg %p63
      %p403 = pneg %p87
      %p404 = pneg %p84
      %p405 = pneg %p108
      %p406 = pneg %p105
      %p407 = pneg %p129
      %p408 = pneg %p126
      %p409 = pneg %p150
      %p410 = pneg %p147
      %p411 = pneg %p171
      %p412 = pneg %p168
      %p413 = pneg %p192
      %p414 = pneg %p189
      %p415 = scmp.lt.s32.totalorder %s24, 1
      %s416 = scalar_select %p415, %s24, 1
      %s417 = smul.addr %s416, 8
      %s418 = scalar_lea.vmem %s8, %s417
      %p419 = pneg %p218
      %p420 = pneg %p215
      %p421 = scmp.lt.s32.totalorder %s24, 1
      %s422 = scalar_select %p421, %s24, 1
      %s423 = smul.addr %s422, 8
      %s424 = scalar_lea.vmem %s9, %s423
      %p425 = pneg %p244
      %p426 = pneg %p241
      %p427 = pneg %p270
      %p428 = pneg %p267
      %p429 = scmp.lt.s32.totalorder %s24, 1
      %s430 = scalar_select %p429, %s24, 1
      %s431 = smul.addr %s430, 8
      %s432 = scalar_lea.vmem %s10, %s431
      %p433 = pneg %p296
      %p434 = pneg %p293
      %p435 = scmp.lt.s32.totalorder %s24, 1
      %s436 = scalar_select %p435, %s24, 1
      %s437 = smul.addr %s436, 4
      %s438 = smul.addr %s437, 8
      %s439 = scalar_lea.vmem %s11, %s438
      %p440 = pneg %p322
      %p441 = pneg %p319
      %p442 = scmp.lt.s32.totalorder %s24, 1
      %s443 = scalar_select %p442, %s24, 1
      %s444 = smul.addr %s443, 4
      %s445 = smul.addr %s444, 8
      %s446 = scalar_lea.vmem %s12, %s445
      %s447 = smul.u32 8, %s24
      %p448 = scmp.lt.s32.totalorder %s447, 15
      %s449 = scalar_select %p448, %s447, 15
      %s450 = smul.addr %s449, 8
      %s451 = smul.addr %s450, 8
      %s452 = scalar_lea.vmem %s0, %s451
      %s453 = smul.u32 8, %s24
      %p454 = scmp.lt.s32.totalorder %s24, 1
      %s455 = scalar_select %p454, %s24, 1
      %s456 = smul.addr %s455, 8
      %s457 = scalar_lea.vmem %s8, %s456
      %p458 = scmp.lt.s32.totalorder %s24, 1
      %s459 = scalar_select %p458, %s24, 1
      %s460 = smul.addr %s459, 8
      %s461 = scalar_lea.vmem %s9, %s460
      %p462 = scmp.lt.s32.totalorder %s24, 1
      %s463 = scalar_select %p462, %s24, 1
      %s464 = smul.addr %s463, 8
      %s465 = scalar_lea.vmem %s10, %s464
      %p466 = scmp.lt.s32.totalorder %s24, 1
      %s467 = scalar_select %p466, %s24, 1
      %s468 = smul.addr %s467, 4
      %s469 = smul.addr %s468, 8
      %s470 = scalar_lea.vmem %s11, %s469
      %p471 = scmp.lt.s32.totalorder %s24, 1
      %s472 = scalar_select %p471, %s24, 1
      %s473 = smul.addr %s472, 4
      %s474 = smul.addr %s473, 8
      %s475 = scalar_lea.vmem %s12, %s474
      %v476 = vld [vmem:[%s452] sm:$0xff]
      %v477 = vld [vmem:[%s452 + $0x8] sm:$0xff]
      %v478 = vld [vmem:[%s452 + $0x10] sm:$0xff]
      %v479 = vld [vmem:[%s452 + $0x18] sm:$0xff]
      %v480 = vld [vmem:[%s452 + $0x20] sm:$0xff]
      %v481 = vld [vmem:[%s452 + $0x28] sm:$0xff]
      %v482 = vld [vmem:[%s452 + $0x30] sm:$0x1]
      %v483 = vld [vmem:[%s452 + $0x38] sm:$0x1]
      %v484 = vld [vmem:[%s452 + $0x40] sm:$0xff]
      %v485 = vld [vmem:[%s452 + $0x48] sm:$0xff]
      %v486 = vld [vmem:[%s452 + $0x50] sm:$0xff]
      %v487 = vld [vmem:[%s452 + $0x58] sm:$0xff]
      %v488 = vld [vmem:[%s452 + $0x60] sm:$0xff]
      %v489 = vld [vmem:[%s452 + $0x68] sm:$0xff]
      %v490 = vld [vmem:[%s452 + $0x70] sm:$0x1]
      %v491 = vld [vmem:[%s452 + $0x78] sm:$0x1]
      %v492 = vld [vmem:[%s452 + $0x80] sm:$0xff]
      %v493 = vld [vmem:[%s452 + $0x88] sm:$0xff]
      %v494 = vld [vmem:[%s452 + $0x90] sm:$0xff]
      %v495 = vld [vmem:[%s452 + $0x98] sm:$0xff]
      %v496 = vld [vmem:[%s452 + $0xa0] sm:$0xff]
      %v497 = vld [vmem:[%s452 + $0xa8] sm:$0xff]
      %v498 = vld [vmem:[%s452 + $0xb0] sm:$0x1]
      %v499 = vld [vmem:[%s452 + $0xb8] sm:$0x1]
      %v500 = vld [vmem:[%s452 + $0xc0] sm:$0xff]
      %v501 = vld [vmem:[%s452 + $0xc8] sm:$0xff]
      %v502 = vld [vmem:[%s452 + $0xd0] sm:$0xff]
      %v503 = vld [vmem:[%s452 + $0xd8] sm:$0xff]
      %v504 = vld [vmem:[%s452 + $0xe0] sm:$0xff]
      %v505 = vld [vmem:[%s452 + $0xe8] sm:$0xff]
      %v506 = vld [vmem:[%s452 + $0xf0] sm:$0x1]
      %v507 = vld [vmem:[%s452 + $0xf8] sm:$0x1]
      %v508 = vld [vmem:[%s452 + $0x100] sm:$0xff]
      %v509 = vld [vmem:[%s452 + $0x108] sm:$0xff]
      %v510 = vld [vmem:[%s452 + $0x110] sm:$0xff]
      %v511 = vld [vmem:[%s452 + $0x118] sm:$0xff]
      %v512 = vld [vmem:[%s452 + $0x120] sm:$0xff]
      %v513 = vld [vmem:[%s452 + $0x128] sm:$0xff]
      %v514 = vld [vmem:[%s452 + $0x130] sm:$0x1]
      %v515 = vld [vmem:[%s452 + $0x138] sm:$0x1]
      %v516 = vld [vmem:[%s452 + $0x140] sm:$0xff]
      %v517 = vld [vmem:[%s452 + $0x148] sm:$0xff]
      %v518 = vld [vmem:[%s452 + $0x150] sm:$0xff]
      %v519 = vld [vmem:[%s452 + $0x158] sm:$0xff]
      %v520 = vld [vmem:[%s452 + $0x160] sm:$0xff]
      %v521 = vld [vmem:[%s452 + $0x168] sm:$0xff]
      %v522 = vld [vmem:[%s452 + $0x170] sm:$0x1]
      %v523 = vld [vmem:[%s452 + $0x178] sm:$0x1]
      %v524 = vld [vmem:[%s452 + $0x180] sm:$0xff]
      %v525 = vld [vmem:[%s452 + $0x188] sm:$0xff]
      %v526 = vld [vmem:[%s452 + $0x190] sm:$0xff]
      %v527 = vld [vmem:[%s452 + $0x198] sm:$0xff]
      %v528 = vld [vmem:[%s452 + $0x1a0] sm:$0xff]
      %v529 = vld [vmem:[%s452 + $0x1a8] sm:$0xff]
      %v530 = vld [vmem:[%s452 + $0x1b0] sm:$0x1]
      %v531 = vld [vmem:[%s452 + $0x1b8] sm:$0x1]
      %v532 = vld [vmem:[%s452 + $0x1c0] sm:$0xff]
      %v533 = vld [vmem:[%s452 + $0x1c8] sm:$0xff]
      %v534 = vld [vmem:[%s452 + $0x1d0] sm:$0xff]
      %v535 = vld [vmem:[%s452 + $0x1d8] sm:$0xff]
      %v536 = vld [vmem:[%s452 + $0x1e0] sm:$0xff]
      %v537 = vld [vmem:[%s452 + $0x1e8] sm:$0xff]
      %v538 = vld [vmem:[%s452 + $0x1f0] sm:$0x1]
      %v539 = vld [vmem:[%s452 + $0x1f8] sm:$0x1]
      %v540 = vadd.f32 %v476, %v477
      %541 = vadd.xlane.f32.xlu0 %v540
      %v542 = vpop.xlane.xlu0 %541
      %v543 = vadd.f32 %v478, %v479
      %544 = vadd.xlane.f32.xlu0 %v543
      %v545 = vpop.xlane.xlu0 %544
      %v546 = vadd.f32 %v480, %v481
      %547 = vadd.xlane.f32.xlu0 %v546
      %v548 = vpop.xlane.xlu0 %547
      %vm549 = vcmask 1040384
      %v550 = vsel %vm549, %v482, 0.0
      %v551 = vsel %vm549, %v483, 0.0
      %v552 = vadd.f32 %v550, %v551
      %553 = vadd.xlane.f32.xlu0 %v552
      %v554 = vpop.xlane.xlu0 %553
      %v555 = vadd.f32 %v484, %v485
      %556 = vadd.xlane.f32.xlu0 %v555
      %v557 = vpop.xlane.xlu0 %556
      %v558 = vadd.f32 %v486, %v487
      %559 = vadd.xlane.f32.xlu0 %v558
      %v560 = vpop.xlane.xlu0 %559
      %v561 = vadd.f32 %v488, %v489
      %562 = vadd.xlane.f32.xlu0 %v561
      %v563 = vpop.xlane.xlu0 %562
      %v564 = vsel %vm549, %v490, 0.0
      %v565 = vsel %vm549, %v491, 0.0
      %v566 = vadd.f32 %v564, %v565
      %567 = vadd.xlane.f32.xlu0 %v566
      %v568 = vpop.xlane.xlu0 %567
      %v569 = vadd.f32 %v492, %v493
      %570 = vadd.xlane.f32.xlu0 %v569
      %v571 = vpop.xlane.xlu0 %570
      %v572 = vadd.f32 %v494, %v495
      %573 = vadd.xlane.f32.xlu0 %v572
      %v574 = vpop.xlane.xlu0 %573
      %v575 = vadd.f32 %v496, %v497
      %576 = vadd.xlane.f32.xlu0 %v575
      %v577 = vpop.xlane.xlu0 %576
      %v578 = vsel %vm549, %v498, 0.0
      %v579 = vsel %vm549, %v499, 0.0
      %v580 = vadd.f32 %v578, %v579
      %581 = vadd.xlane.f32.xlu0 %v580
      %v582 = vpop.xlane.xlu0 %581
      %v583 = vadd.f32 %v500, %v501
      %584 = vadd.xlane.f32.xlu0 %v583
      %v585 = vpop.xlane.xlu0 %584
      %v586 = vadd.f32 %v502, %v503
      %587 = vadd.xlane.f32.xlu0 %v586
      %v588 = vpop.xlane.xlu0 %587
      %v589 = vadd.f32 %v504, %v505
      %590 = vadd.xlane.f32.xlu0 %v589
      %v591 = vpop.xlane.xlu0 %590
      %v592 = vsel %vm549, %v506, 0.0
      %v593 = vsel %vm549, %v507, 0.0
      %v594 = vadd.f32 %v592, %v593
      %595 = vadd.xlane.f32.xlu0 %v594
      %v596 = vpop.xlane.xlu0 %595
      %v597 = vadd.f32 %v508, %v509
      %598 = vadd.xlane.f32.xlu0 %v597
      %v599 = vpop.xlane.xlu0 %598
      %v600 = vadd.f32 %v510, %v511
      %601 = vadd.xlane.f32.xlu0 %v600
      %v602 = vpop.xlane.xlu0 %601
      %v603 = vadd.f32 %v512, %v513
      %604 = vadd.xlane.f32.xlu0 %v603
      %v605 = vpop.xlane.xlu0 %604
      %v606 = vsel %vm549, %v514, 0.0
      %v607 = vsel %vm549, %v515, 0.0
      %v608 = vadd.f32 %v606, %v607
      %609 = vadd.xlane.f32.xlu0 %v608
      %v610 = vpop.xlane.xlu0 %609
      %v611 = vadd.f32 %v516, %v517
      %612 = vadd.xlane.f32.xlu0 %v611
      %v613 = vpop.xlane.xlu0 %612
      %v614 = vadd.f32 %v518, %v519
      %615 = vadd.xlane.f32.xlu0 %v614
      %v616 = vpop.xlane.xlu0 %615
      %v617 = vadd.f32 %v520, %v521
      %618 = vadd.xlane.f32.xlu0 %v617
      %v619 = vpop.xlane.xlu0 %618
      %v620 = vsel %vm549, %v522, 0.0
      %v621 = vsel %vm549, %v523, 0.0
      %v622 = vadd.f32 %v620, %v621
      %623 = vadd.xlane.f32.xlu0 %v622
      %v624 = vpop.xlane.xlu0 %623
      %v625 = vadd.f32 %v524, %v525
      %626 = vadd.xlane.f32.xlu0 %v625
      %v627 = vpop.xlane.xlu0 %626
      %v628 = vadd.f32 %v526, %v527
      %629 = vadd.xlane.f32.xlu0 %v628
      %v630 = vpop.xlane.xlu0 %629
      %v631 = vadd.f32 %v528, %v529
      %632 = vadd.xlane.f32.xlu0 %v631
      %v633 = vpop.xlane.xlu0 %632
      %v634 = vsel %vm549, %v530, 0.0
      %v635 = vsel %vm549, %v531, 0.0
      %v636 = vadd.f32 %v634, %v635
      %637 = vadd.xlane.f32.xlu0 %v636
      %v638 = vpop.xlane.xlu0 %637
      %v639 = vadd.f32 %v532, %v533
      %640 = vadd.xlane.f32.xlu0 %v639
      %v641 = vpop.xlane.xlu0 %640
      %v642 = vadd.f32 %v534, %v535
      %643 = vadd.xlane.f32.xlu0 %v642
      %v644 = vpop.xlane.xlu0 %643
      %v645 = vadd.f32 %v536, %v537
      %646 = vadd.xlane.f32.xlu0 %v645
      %v647 = vpop.xlane.xlu0 %646
      %v648 = vsel %vm549, %v538, 0.0
      %v649 = vsel %vm549, %v539, 0.0
      %v650 = vadd.f32 %v648, %v649
      %651 = vadd.xlane.f32.xlu0 %v650
      %v652 = vpop.xlane.xlu0 %651
      %v653 = vrcp.pop 256.0
      %v654 = vmul.f32 256.0, %v653
      %v655 = vsub.f32 1.0, %v654
      %v656 = vmul.f32 %v653, %v655
      %v657 = vadd.f32 %v653, %v656
      %vm658 = vweird.f32 %v653
      %v659 = vsel %vm658, %v653, %v657
      %v660 = vmul.f32 %v542, %v659
      %v661 = vmul.f32 %v545, %v659
      %v662 = vmul.f32 %v548, %v659
      %v663 = vmul.f32 %v554, %v659
      %v664 = vmul.f32 %v557, %v659
      %v665 = vmul.f32 %v560, %v659
      %v666 = vmul.f32 %v563, %v659
      %v667 = vmul.f32 %v568, %v659
      %v668 = vmul.f32 %v571, %v659
      %v669 = vmul.f32 %v574, %v659
      %v670 = vmul.f32 %v577, %v659
      %v671 = vmul.f32 %v582, %v659
      %v672 = vmul.f32 %v585, %v659
      %v673 = vmul.f32 %v588, %v659
      %v674 = vmul.f32 %v591, %v659
      %v675 = vmul.f32 %v596, %v659
      %v676 = vmul.f32 %v599, %v659
      %v677 = vmul.f32 %v602, %v659
      %v678 = vmul.f32 %v605, %v659
      %v679 = vmul.f32 %v610, %v659
      %v680 = vmul.f32 %v613, %v659
      %v681 = vmul.f32 %v616, %v659
      %v682 = vmul.f32 %v619, %v659
      %v683 = vmul.f32 %v624, %v659
      %v684 = vmul.f32 %v627, %v659
      %v685 = vmul.f32 %v630, %v659
      %v686 = vmul.f32 %v633, %v659
      %v687 = vmul.f32 %v638, %v659
      %v688 = vmul.f32 %v641, %v659
      %v689 = vmul.f32 %v644, %v659
      %v690 = vmul.f32 %v647, %v659
      %v691 = vmul.f32 %v652, %v659
      %v692 = vld [vmem:[%s1] sm:$0xff]
      %v693 = vld [vmem:[%s1 + $0x8] sm:$0xff]
      %v694 = vld [vmem:[%s1 + $0x10] sm:$0xff]
      %v695 = vld [vmem:[%s1 + $0x18] sm:$0x1]
      %v696 = vld [vmem:[%s4] sm:$0x1]
      %v698 = vperm.slane %v696, 0
      %v732 = vlaneseq
      %v733 = vand.u32 %v732, 127
      %v734 = vperm.slane %v660, %v733
      %v735 = vadd.s32 %v733, 4294967288
      %v736 = vperm.slane %v661, %v735
      %vm737 = vcmask 130112
      %v738 = vsel %vm737, %v736, %v734
      %v739 = vadd.s32 %v733, 4294967280
      %v740 = vperm.slane %v662, %v739
      %vm741 = vcmask 195712
      %v742 = vsel %vm741, %v740, %v738
      %v743 = vadd.s32 %v733, 4294967272
      %v744 = vperm.slane %v663, %v743
      %vm745 = vcmask 261312
      %v746 = vsel %vm745, %v744, %v742
      %v747 = vperm.slane %v664, %v733
      %v748 = vperm.slane %v665, %v735
      %v749 = vsel %vm737, %v748, %v747
      %v750 = vperm.slane %v666, %v739
      %v751 = vsel %vm741, %v750, %v749
      %v752 = vperm.slane %v667, %v743
      %v753 = vsel %vm745, %v752, %v751
      %v754 = vperm.slane %v668, %v733
      %v755 = vperm.slane %v669, %v735
      %v756 = vsel %vm737, %v755, %v754
      %v757 = vperm.slane %v670, %v739
      %v758 = vsel %vm741, %v757, %v756
      %v759 = vperm.slane %v671, %v743
      %v760 = vsel %vm745, %v759, %v758
      %v761 = vperm.slane %v672, %v733
      %v762 = vperm.slane %v673, %v735
      %v763 = vsel %vm737, %v762, %v761
      %v764 = vperm.slane %v674, %v739
      %v765 = vsel %vm741, %v764, %v763
      %v766 = vperm.slane %v675, %v743
      %v767 = vsel %vm745, %v766, %v765
      %v768 = vperm.slane %v676, %v733
      %v769 = vperm.slane %v677, %v735
      %v770 = vsel %vm737, %v769, %v768
      %v771 = vperm.slane %v678, %v739
      %v772 = vsel %vm741, %v771, %v770
      %v773 = vperm.slane %v679, %v743
      %v774 = vsel %vm745, %v773, %v772
      %v775 = vperm.slane %v680, %v733
      %v776 = vperm.slane %v681, %v735
      %v777 = vsel %vm737, %v776, %v775
      %v778 = vperm.slane %v682, %v739
      %v779 = vsel %vm741, %v778, %v777
      %v780 = vperm.slane %v683, %v743
      %v781 = vsel %vm745, %v780, %v779
      %v782 = vperm.slane %v684, %v733
      %v783 = vperm.slane %v685, %v735
      %v784 = vsel %vm737, %v783, %v782
      %v785 = vperm.slane %v686, %v739
      %v786 = vsel %vm741, %v785, %v784
      %v787 = vperm.slane %v687, %v743
      %v788 = vsel %vm745, %v787, %v786
      %v789 = vperm.slane %v688, %v733
      %v790 = vperm.slane %v689, %v735
      %v791 = vsel %vm737, %v790, %v789
      %v792 = vperm.slane %v690, %v739
      %v793 = vsel %vm741, %v792, %v791
      %v794 = vperm.slane %v691, %v743
      %v795 = vsel %vm745, %v794, %v793
      %vm796 = vcmask 1041409
      %v797 = vsel %vm796, %v753, %v746
      %vm798 = vcmask 1042434
      %v799 = vsel %vm798, %v760, %v797
      %vm800 = vcmask 1043459
      %v801 = vsel %vm800, %v767, %v799
      %vm802 = vcmask 1044484
      %v803 = vsel %vm802, %v774, %v801
      %vm804 = vcmask 1045509
      %v805 = vsel %vm804, %v781, %v803
      %vm806 = vcmask 1046534
      %v807 = vsel %vm806, %v788, %v805
      %vm808 = vcmask 1047559
      %v809 = vsel %vm808, %v795, %v807
      %vm810 = vcmask 203776
      %v811 = vsel %vm810, %v809, 0
      %v814 = vsel %vm549, %v695, 0
      %816 = vmatpush.msra.mxu0 0.0
      %817 = vmatpush.msra.mxu0 0.0
      %818 = vmatpush.msra.mxu0 0.0
      %819 = vmatpush.msra.mxu0 0.0
      %820 = vmatpush.msra.mxu0 0.0
      %821 = vmatpush.msra.mxu0 0.0
      %822 = vmatpush.msra.mxu0 0.0
      %823 = vmatpush.msra.mxu0 0.0
      %824 = vmatpush.msra.mxu0 0.0
      %825 = vmatpush.msra.mxu0 0.0
      %826 = vmatpush.msra.mxu0 0.0
      %827 = vmatpush.msra.mxu0 0.0
      %828 = vmatpush.msra.mxu0 %v814
      %829 = vmatpush.msra.mxu0 %v694
      %830 = vmatpush.msra.mxu0 %v693
      %831 = vmatpush.msra.mxu0 %v692
      %832 = vmatmul.f32.gmra.mxu0 %v811
      %v833 = vpop.f32.mrf.mxu0
      %v834 = vadd.f32 %v698, %v833
      %835 = vdwg.mxu0
      %836 = vst [vmem:[%s465] sm:$0xff] %v834
      %v837 = vld [vmem:[%s2] sm:$0xff]
      %v838 = vld [vmem:[%s2 + $0x8] sm:$0xff]
      %v839 = vld [vmem:[%s2 + $0x10] sm:$0xff]
      %v840 = vld [vmem:[%s2 + $0x18] sm:$0xff]
      %v841 = vld [vmem:[%s2 + $0x20] sm:$0xff]
      %v842 = vld [vmem:[%s2 + $0x28] sm:$0xff]
      %v843 = vld [vmem:[%s2 + $0x30] sm:$0xff]
      %v844 = vld [vmem:[%s2 + $0x38] sm:$0xff]
      %v845 = vld [vmem:[%s2 + $0x40] sm:$0xff]
      %v846 = vld [vmem:[%s2 + $0x48] sm:$0xff]
      %v847 = vld [vmem:[%s2 + $0x50] sm:$0xff]
      %v848 = vld [vmem:[%s2 + $0x58] sm:$0xff]
      %v849 = vld [vmem:[%s2 + $0x60] sm:$0x1]
      %v850 = vld [vmem:[%s2 + $0x68] sm:$0x1]
      %v851 = vld [vmem:[%s2 + $0x70] sm:$0x1]
      %v852 = vld [vmem:[%s2 + $0x78] sm:$0x1]
      %v853 = vld [vmem:[%s5] sm:$0xf]
      %v855 = vperm.slane %v853, 0
      %v856 = vperm.slane %v853, 1
      %v857 = vperm.slane %v853, 2
      %v858 = vperm.slane %v853, 3
      %v864 = vsel %vm549, %v849, 0
      %v867 = vsel %vm549, %v850, 0
      %v870 = vsel %vm549, %v851, 0
      %v873 = vsel %vm549, %v852, 0
      %875 = vmatpush.msra.mxu0 0.0
      %876 = vmatpush.msra.mxu0 0.0
      %877 = vmatpush.msra.mxu0 0.0
      %878 = vmatpush.msra.mxu0 0.0
      %879 = vmatpush.msra.mxu0 0.0
      %880 = vmatpush.msra.mxu0 0.0
      %881 = vmatpush.msra.mxu0 0.0
      %882 = vmatpush.msra.mxu0 0.0
      %883 = vmatpush.msra.mxu0 0.0
      %884 = vmatpush.msra.mxu0 0.0
      %885 = vmatpush.msra.mxu0 0.0
      %886 = vmatpush.msra.mxu0 0.0
      %887 = vmatpush.msra.mxu0 %v864
      %888 = vmatpush.msra.mxu0 %v845
      %889 = vmatpush.msra.mxu0 %v841
      %890 = vmatpush.msra.mxu0 %v837
      %891 = vmatmul.f32.gmra.mxu0 %v811
      %v892 = vpop.f32.mrf.mxu0
      %v893 = vadd.f32 %v855, %v892
      %894 = vdwg.mxu0
      %895 = vmatpush.msra.mxu0 0.0
      %896 = vmatpush.msra.mxu0 0.0
      %897 = vmatpush.msra.mxu0 0.0
      %898 = vmatpush.msra.mxu0 0.0
      %899 = vmatpush.msra.mxu0 0.0
      %900 = vmatpush.msra.mxu0 0.0
      %901 = vmatpush.msra.mxu0 0.0
      %902 = vmatpush.msra.mxu0 0.0
      %903 = vmatpush.msra.mxu0 0.0
      %904 = vmatpush.msra.mxu0 0.0
      %905 = vmatpush.msra.mxu0 0.0
      %906 = vmatpush.msra.mxu0 0.0
      %907 = vmatpush.msra.mxu0 %v867
      %908 = vmatpush.msra.mxu0 %v846
      %909 = vmatpush.msra.mxu0 %v842
      %910 = vmatpush.msra.mxu0 %v838
      %911 = vmatmul.f32.gmra.mxu0 %v811
      %v912 = vpop.f32.mrf.mxu0
      %v913 = vadd.f32 %v856, %v912
      %914 = vdwg.mxu0
      %915 = vmatpush.msra.mxu0 0.0
      %916 = vmatpush.msra.mxu0 0.0
      %917 = vmatpush.msra.mxu0 0.0
      %918 = vmatpush.msra.mxu0 0.0
      %919 = vmatpush.msra.mxu0 0.0
      %920 = vmatpush.msra.mxu0 0.0
      %921 = vmatpush.msra.mxu0 0.0
      %922 = vmatpush.msra.mxu0 0.0
      %923 = vmatpush.msra.mxu0 0.0
      %924 = vmatpush.msra.mxu0 0.0
      %925 = vmatpush.msra.mxu0 0.0
      %926 = vmatpush.msra.mxu0 0.0
      %927 = vmatpush.msra.mxu0 %v870
      %928 = vmatpush.msra.mxu0 %v847
      %929 = vmatpush.msra.mxu0 %v843
      %930 = vmatpush.msra.mxu0 %v839
      %931 = vmatmul.f32.gmra.mxu0 %v811
      %v932 = vpop.f32.mrf.mxu0
      %v933 = vadd.f32 %v857, %v932
      %934 = vdwg.mxu0
      %935 = vmatpush.msra.mxu0 0.0
      %936 = vmatpush.msra.mxu0 0.0
      %937 = vmatpush.msra.mxu0 0.0
      %938 = vmatpush.msra.mxu0 0.0
      %939 = vmatpush.msra.mxu0 0.0
      %940 = vmatpush.msra.mxu0 0.0
      %941 = vmatpush.msra.mxu0 0.0
      %942 = vmatpush.msra.mxu0 0.0
      %943 = vmatpush.msra.mxu0 0.0
      %944 = vmatpush.msra.mxu0 0.0
      %945 = vmatpush.msra.mxu0 0.0
      %946 = vmatpush.msra.mxu0 0.0
      %947 = vmatpush.msra.mxu0 %v873
      %948 = vmatpush.msra.mxu0 %v848
      %949 = vmatpush.msra.mxu0 %v844
      %950 = vmatpush.msra.mxu0 %v840
      %951 = vmatmul.f32.gmra.mxu0 %v811
      %v952 = vpop.f32.mrf.mxu0
      %v953 = vadd.f32 %v858, %v952
      %954 = vdwg.mxu0
      %v955 = vld [vmem:[%s3] sm:$0xff]
      %v956 = vld [vmem:[%s3 + $0x8] sm:$0xff]
      %v957 = vld [vmem:[%s3 + $0x10] sm:$0xff]
      %v958 = vld [vmem:[%s3 + $0x18] sm:$0xff]
      %v959 = vld [vmem:[%s3 + $0x20] sm:$0xff]
      %v960 = vld [vmem:[%s3 + $0x28] sm:$0xff]
      %v961 = vld [vmem:[%s3 + $0x30] sm:$0xff]
      %v962 = vld [vmem:[%s3 + $0x38] sm:$0xff]
      %v963 = vld [vmem:[%s3 + $0x40] sm:$0xff]
      %v964 = vld [vmem:[%s3 + $0x48] sm:$0xff]
      %v965 = vld [vmem:[%s3 + $0x50] sm:$0xff]
      %v966 = vld [vmem:[%s3 + $0x58] sm:$0xff]
      %v967 = vld [vmem:[%s3 + $0x60] sm:$0x1]
      %v968 = vld [vmem:[%s3 + $0x68] sm:$0x1]
      %v969 = vld [vmem:[%s3 + $0x70] sm:$0x1]
      %v970 = vld [vmem:[%s3 + $0x78] sm:$0x1]
      %v971 = vld [vmem:[%s6] sm:$0xf]
      %v973 = vperm.slane %v971, 0
      %v974 = vperm.slane %v971, 1
      %v975 = vperm.slane %v971, 2
      %v976 = vperm.slane %v971, 3
      %v982 = vsel %vm549, %v967, 0
      %v985 = vsel %vm549, %v968, 0
      %v988 = vsel %vm549, %v969, 0
      %v991 = vsel %vm549, %v970, 0
      %993 = vmatpush.msra.mxu0 0.0
      %994 = vmatpush.msra.mxu0 0.0
      %995 = vmatpush.msra.mxu0 0.0
      %996 = vmatpush.msra.mxu0 0.0
      %997 = vmatpush.msra.mxu0 0.0
      %998 = vmatpush.msra.mxu0 0.0
      %999 = vmatpush.msra.mxu0 0.0
      %1000 = vmatpush.msra.mxu0 0.0
      %1001 = vmatpush.msra.mxu0 0.0
      %1002 = vmatpush.msra.mxu0 0.0
      %1003 = vmatpush.msra.mxu0 0.0
      %1004 = vmatpush.msra.mxu0 0.0
      %1005 = vmatpush.msra.mxu0 %v982
      %1006 = vmatpush.msra.mxu0 %v963
      %1007 = vmatpush.msra.mxu0 %v959
      %1008 = vmatpush.msra.mxu0 %v955
      %1009 = vmatmul.f32.gmra.mxu0 %v811
      %v1010 = vpop.f32.mrf.mxu0
      %v1011 = vadd.f32 %v973, %v1010
      %1012 = vdwg.mxu0
      %1013 = vmatpush.msra.mxu0 0.0
      %1014 = vmatpush.msra.mxu0 0.0
      %1015 = vmatpush.msra.mxu0 0.0
      %1016 = vmatpush.msra.mxu0 0.0
      %1017 = vmatpush.msra.mxu0 0.0
      %1018 = vmatpush.msra.mxu0 0.0
      %1019 = vmatpush.msra.mxu0 0.0
      %1020 = vmatpush.msra.mxu0 0.0
      %1021 = vmatpush.msra.mxu0 0.0
      %1022 = vmatpush.msra.mxu0 0.0
      %1023 = vmatpush.msra.mxu0 0.0
      %1024 = vmatpush.msra.mxu0 0.0
      %1025 = vmatpush.msra.mxu0 %v985
      %1026 = vmatpush.msra.mxu0 %v964
      %1027 = vmatpush.msra.mxu0 %v960
      %1028 = vmatpush.msra.mxu0 %v956
      %1029 = vmatmul.f32.gmra.mxu0 %v811
      %v1030 = vpop.f32.mrf.mxu0
      %v1031 = vadd.f32 %v974, %v1030
      %1032 = vdwg.mxu0
      %1033 = vmatpush.msra.mxu0 0.0
      %1034 = vmatpush.msra.mxu0 0.0
      %1035 = vmatpush.msra.mxu0 0.0
      %1036 = vmatpush.msra.mxu0 0.0
      %1037 = vmatpush.msra.mxu0 0.0
      %1038 = vmatpush.msra.mxu0 0.0
      %1039 = vmatpush.msra.mxu0 0.0
      %1040 = vmatpush.msra.mxu0 0.0
      %1041 = vmatpush.msra.mxu0 0.0
      %1042 = vmatpush.msra.mxu0 0.0
      %1043 = vmatpush.msra.mxu0 0.0
      %1044 = vmatpush.msra.mxu0 0.0
      %1045 = vmatpush.msra.mxu0 %v988
      %1046 = vmatpush.msra.mxu0 %v965
      %1047 = vmatpush.msra.mxu0 %v961
      %1048 = vmatpush.msra.mxu0 %v957
      %1049 = vmatmul.f32.gmra.mxu0 %v811
      %v1050 = vpop.f32.mrf.mxu0
      %v1051 = vadd.f32 %v975, %v1050
      %1052 = vdwg.mxu0
      %1053 = vmatpush.msra.mxu0 0.0
      %1054 = vmatpush.msra.mxu0 0.0
      %1055 = vmatpush.msra.mxu0 0.0
      %1056 = vmatpush.msra.mxu0 0.0
      %1057 = vmatpush.msra.mxu0 0.0
      %1058 = vmatpush.msra.mxu0 0.0
      %1059 = vmatpush.msra.mxu0 0.0
      %1060 = vmatpush.msra.mxu0 0.0
      %1061 = vmatpush.msra.mxu0 0.0
      %1062 = vmatpush.msra.mxu0 0.0
      %1063 = vmatpush.msra.mxu0 0.0
      %1064 = vmatpush.msra.mxu0 0.0
      %1065 = vmatpush.msra.mxu0 %v991
      %1066 = vmatpush.msra.mxu0 %v966
      %1067 = vmatpush.msra.mxu0 %v962
      %1068 = vmatpush.msra.mxu0 %v958
      %1069 = vmatmul.f32.gmra.mxu0 %v811
      %v1070 = vpop.f32.mrf.mxu0
      %v1071 = vadd.f32 %v976, %v1070
      %1072 = vdwg.mxu0
      %v1073 = vmax.f32 %v893, -0.6457718
      %v1074 = vmax.f32 %v913, -0.6457718
      %v1075 = vmax.f32 %v933, -0.6457718
      %v1076 = vmax.f32 %v953, -0.6457718
      %v1077 = vmin.f32 %v1073, 0.6457718
      %v1078 = vmin.f32 %v1074, 0.6457718
      %v1079 = vmin.f32 %v1075, 0.6457718
      %v1080 = vmin.f32 %v1076, 0.6457718
      %v1081 = vmax.f32 %v1011, -2.001
      %v1082 = vmax.f32 %v1031, -2.001
      %v1083 = vmax.f32 %v1051, -2.001
      %v1084 = vmax.f32 %v1071, -2.001
      %v1085 = vmin.f32 %v1081, 2.001
      %v1086 = vmin.f32 %v1082, 2.001
      %v1087 = vmin.f32 %v1083, 2.001
      %v1088 = vmin.f32 %v1084, 2.001
      %v1089 = vld [vmem:[%s457] sm:$0xff]
      %v1090 = vld [vmem:[%s461] sm:$0xff]
      %v1091 = vand.u32 2147483647, %v1077
      %vm1092 = vcmp.le.f32.partialorder %v1091, 0.7853982
      %vm1093 = vcmp.lt.s32.totalorder %v1077, 0
      %v1094 = vand.u32 %v1077, 2139095040
      %v1095 = vshrl.u32 %v1094, 23
      %v1096 = vsub.s32 %v1095, 127
      %v1097 = vand.u32 2147483647, %v1077
      %v1098 = vand.u32 %v1097, 8388607
      %v1099 = vor.u32 %v1098, 8388608
      %v1100 = vsub.s32 0, %v1099
      %v1101 = vadd.s32 %v1096, 1
      %vm1102 = vcmp.gt.s32.totalorder %v1101, 0
      %v1103 = vsel %vm1102, %v1101, 0
      %v1104 = vshrl.u32 %v1103, 5
      %v1105 = vand.u32 %v1103, 31
      %v1106 = vsub.s32 32, %v1105
      %v1107 = vshrl.u32 683565275, %v1106
      %v1108 = vshll.u32 683565275, %v1105
      %v1109 = vshrl.u32 2475754826, %v1106
      %v1110 = vor.u32 %v1108, %v1109
      %v1111 = vshll.u32 2475754826, %v1105
      %v1112 = vshrl.u32 2131351028, %v1106
      %v1113 = vor.u32 %v1111, %v1112
      %v1114 = vshll.u32 2131351028, %v1105
      %v1115 = vshrl.u32 2102212464, %v1106
      %v1116 = vor.u32 %v1114, %v1115
      %v1117 = vshll.u32 2102212464, %v1105
      %v1118 = vshrl.u32 920167782, %v1106
      %v1119 = vor.u32 %v1117, %v1118
      %v1120 = vshll.u32 920167782, %v1105
      %v1121 = vshrl.u32 1326507024, %v1106
      %v1122 = vor.u32 %v1120, %v1121
      %vm1123 = vcmp.lt.s32.totalorder %v1104, 1
      %vm1124 = vcmp.lt.s32.totalorder %v1104, 2
      %vm1125 = vcmp.lt.s32.totalorder %v1104, 3
      %vm1126 = vcmp.lt.s32.totalorder %v1104, 4
      %v1127 = vsel %vm1123, %v1107, %v1110
      %v1128 = vsel %vm1126, %v1116, 2102212464
      %v1129 = vsel %vm1125, %v1113, %v1128
      %v1130 = vsel %vm1124, %v1127, %v1129
      %v1131 = vsel %vm1123, %v1110, %v1113
      %v1132 = vsel %vm1126, %v1119, 920167782
      %v1133 = vsel %vm1125, %v1116, %v1132
      %v1134 = vsel %vm1124, %v1131, %v1133
      %v1135 = vsel %vm1123, %v1113, %v1116
      %v1136 = vsel %vm1126, %v1122, 1326507024
      %v1137 = vsel %vm1125, %v1119, %v1136
      %v1138 = vsel %vm1124, %v1135, %v1137
      %v1139 = vshll.u32 %v1099, 8
      %v1140 = vand.u32 %v1139, 65535
      %v1141 = vshrl.u32 %v1139, 16
      %v1142 = vand.u32 %v1138, 65535
      %v1143 = vshrl.u32 %v1138, 16
      %v1144 = vmul.u32 %v1140, %v1142
      %v1145 = vmul.u32 %v1140, %v1143
      %v1146 = vmul.u32 %v1141, %v1142
      %v1147 = vmul.u32 %v1141, %v1143
      %v1148 = vshll.u32 %v1145, 16
      %v1149 = vshrl.u32 %v1145, 16
      %v1150 = vshll.u32 %v1146, 16
      %v1151 = vshrl.u32 %v1146, 16
      %vm1152 = vc.u32 %v1144, %v1148
      %v1153 = vsel %vm1152, 1, 0
      %v1154 = vadd.s32 %v1144, %v1148
      %v1155 = vadd.s32 %v1147, %v1153
      %vm1156 = vc.u32 %v1154, %v1150
      %v1157 = vsel %vm1156, 1, 0
      %v1158 = vadd.s32 %v1154, %v1150
      %v1159 = vadd.s32 %v1155, %v1157
      %v1160 = vadd.s32 %v1159, %v1149
      %v1161 = vadd.s32 %v1160, %v1151
      %v1162 = vand.u32 %v1139, 65535
      %v1163 = vshrl.u32 %v1139, 16
      %v1164 = vand.u32 %v1134, 65535
      %v1165 = vshrl.u32 %v1134, 16
      %v1166 = vmul.u32 %v1162, %v1164
      %v1167 = vmul.u32 %v1162, %v1165
      %v1168 = vmul.u32 %v1163, %v1164
      %v1169 = vmul.u32 %v1163, %v1165
      %v1170 = vshll.u32 %v1167, 16
      %v1171 = vshrl.u32 %v1167, 16
      %v1172 = vshll.u32 %v1168, 16
      %v1173 = vshrl.u32 %v1168, 16
      %vm1174 = vc.u32 %v1166, %v1170
      %v1175 = vsel %vm1174, 1, 0
      %v1176 = vadd.s32 %v1166, %v1170
      %v1177 = vadd.s32 %v1169, %v1175
      %vm1178 = vc.u32 %v1176, %v1172
      %v1179 = vsel %vm1178, 1, 0
      %v1180 = vadd.s32 %v1176, %v1172
      %v1181 = vadd.s32 %v1177, %v1179
      %v1182 = vadd.s32 %v1181, %v1171
      %v1183 = vadd.s32 %v1182, %v1173
      %v1184 = vmul.u32 %v1139, %v1130
      %v1185 = vadd.s32 %v1161, %v1180
      %vm1186 = vc.u32 %v1161, %v1180
      %v1187 = vadd.s32 %v1183, 1
      %v1188 = vsel %vm1186, %v1187, %v1183
      %v1189 = vadd.s32 %v1184, %v1188
      %v1190 = vadd.s32 %v1189, 536870912
      %v1191 = vshrl.u32 %v1190, 30
      %v1192 = vshll.u32 %v1191, 30
      %v1193 = vsub.s32 %v1189, %v1192
      %vm1194 = vcmp.lt.s32.totalorder %v1193, 0
      %v1195 = vsub.s32 0, %v1193
      %v1196 = vsel %vm1194, %v1195, %v1193
      %v1197 = vclz %v1196
      %v1198 = vsub.s32 %v1197, 2
      %vm1199 = vcmp.gt.s32.totalorder 0, %v1198
      %v1200 = vsel %vm1199, 0, %v1198
      %v1201 = vsub.s32 32, %v1200
      %v1202 = vshll.u32 %v1193, %v1200
      %v1203 = vshrl.u32 %v1185, %v1201
      %v1204 = vor.u32 %v1202, %v1203
      %v1205 = vsub.s32 4294967266, %v1200
      %v1206 = vadd.s32 %v1205, 127
      %v1207 = vshll.u32 %v1206, 23
      %v1208 = vor.u32 4788187, %v1207
      %v1209 = vand.u32 2147483647, %v1208
      %v1211 = vcvt.s32.f32 %v1204
      %v1212 = vmul.f32 %v1211, %v1209
      %v1213 = vxor.u32 %v1212, 2147483648
      %v1214 = vsel %vm1093, %v1213, %v1212
      %v1215 = vsub.s32 4, %v1191
      %v1216 = vsel %vm1093, %v1215, %v1191
      %v1217 = vsel %vm1092, %v1077, %v1214
      %v1218 = vsel %vm1092, 0, %v1216
      %v1219 = vmul.f32 %v1217, %v1217
      %v1220 = vmul.f32 %v1219, -0.001358992
      %v1221 = vadd.f32 %v1220, 0.041655596
      %v1222 = vmul.f32 %v1219, %v1221
      %v1223 = vadd.f32 %v1222, -0.4999988
      %v1224 = vmul.f32 %v1219, %v1223
      %v1225 = vadd.f32 1.0, %v1224
      %v1226 = vmul.f32 %v1217, %v1217
      %v1227 = vmul.f32 %v1226, -0.00019511016
      %v1228 = vadd.f32 %v1227, 0.008332121
      %v1229 = vmul.f32 %v1226, %v1228
      %v1230 = vadd.f32 %v1229, -0.16666654
      %v1231 = vmul.f32 %v1226, %v1230
      %v1232 = vadd.f32 %v1231, 1.0
      %v1233 = vmul.f32 %v1232, %v1217
      %vm1234 = vweird.f32 %v1077
      %v1235 = vadd.s32 %v1218, 3
      %v1236 = vand.u32 %v1235, 3
      %vm1237 = vcmp.lt.s32.totalorder %v1236, 2
      %vm1238 = vcmp.eq.s32.totalorder %v1236, 0
      %v1239 = vxor.u32 %v1233, 2147483648
      %v1240 = vsel %vm1238, %v1225, %v1239
      %vm1241 = vcmp.eq.s32.totalorder %v1236, 2
      %v1242 = vxor.u32 %v1225, 2147483648
      %v1243 = vsel %vm1241, %v1242, %v1233
      %v1244 = vsel %vm1237, %v1240, %v1243
      %v1245 = vsel %vm1234, nan, %v1244
      %v1246 = vand.u32 2147483647, %v1078
      %vm1247 = vcmp.le.f32.partialorder %v1246, 0.7853982
      %vm1248 = vcmp.lt.s32.totalorder %v1078, 0
      %v1249 = vand.u32 %v1078, 2139095040
      %v1250 = vshrl.u32 %v1249, 23
      %v1251 = vsub.s32 %v1250, 127
      %v1252 = vand.u32 2147483647, %v1078
      %v1253 = vand.u32 %v1252, 8388607
      %v1254 = vor.u32 %v1253, 8388608
      %v1255 = vsub.s32 0, %v1254
      %v1256 = vadd.s32 %v1251, 1
      %vm1257 = vcmp.gt.s32.totalorder %v1256, 0
      %v1258 = vsel %vm1257, %v1256, 0
      %v1259 = vshrl.u32 %v1258, 5
      %v1260 = vand.u32 %v1258, 31
      %v1261 = vsub.s32 32, %v1260
      %v1262 = vshrl.u32 683565275, %v1261
      %v1263 = vshll.u32 683565275, %v1260
      %v1264 = vshrl.u32 2475754826, %v1261
      %v1265 = vor.u32 %v1263, %v1264
      %v1266 = vshll.u32 2475754826, %v1260
      %v1267 = vshrl.u32 2131351028, %v1261
      %v1268 = vor.u32 %v1266, %v1267
      %v1269 = vshll.u32 2131351028, %v1260
      %v1270 = vshrl.u32 2102212464, %v1261
      %v1271 = vor.u32 %v1269, %v1270
      %v1272 = vshll.u32 2102212464, %v1260
      %v1273 = vshrl.u32 920167782, %v1261
      %v1274 = vor.u32 %v1272, %v1273
      %v1275 = vshll.u32 920167782, %v1260
      %v1276 = vshrl.u32 1326507024, %v1261
      %v1277 = vor.u32 %v1275, %v1276
      %vm1278 = vcmp.lt.s32.totalorder %v1259, 1
      %vm1279 = vcmp.lt.s32.totalorder %v1259, 2
      %vm1280 = vcmp.lt.s32.totalorder %v1259, 3
      %vm1281 = vcmp.lt.s32.totalorder %v1259, 4
      %v1282 = vsel %vm1278, %v1262, %v1265
      %v1283 = vsel %vm1281, %v1271, 2102212464
      %v1284 = vsel %vm1280, %v1268, %v1283
      %v1285 = vsel %vm1279, %v1282, %v1284
      %v1286 = vsel %vm1278, %v1265, %v1268
      %v1287 = vsel %vm1281, %v1274, 920167782
      %v1288 = vsel %vm1280, %v1271, %v1287
      %v1289 = vsel %vm1279, %v1286, %v1288
      %v1290 = vsel %vm1278, %v1268, %v1271
      %v1291 = vsel %vm1281, %v1277, 1326507024
      %v1292 = vsel %vm1280, %v1274, %v1291
      %v1293 = vsel %vm1279, %v1290, %v1292
      %v1294 = vshll.u32 %v1254, 8
      %v1295 = vand.u32 %v1294, 65535
      %v1296 = vshrl.u32 %v1294, 16
      %v1297 = vand.u32 %v1293, 65535
      %v1298 = vshrl.u32 %v1293, 16
      %v1299 = vmul.u32 %v1295, %v1297
      %v1300 = vmul.u32 %v1295, %v1298
      %v1301 = vmul.u32 %v1296, %v1297
      %v1302 = vmul.u32 %v1296, %v1298
      %v1303 = vshll.u32 %v1300, 16
      %v1304 = vshrl.u32 %v1300, 16
      %v1305 = vshll.u32 %v1301, 16
      %v1306 = vshrl.u32 %v1301, 16
      %vm1307 = vc.u32 %v1299, %v1303
      %v1308 = vsel %vm1307, 1, 0
      %v1309 = vadd.s32 %v1299, %v1303
      %v1310 = vadd.s32 %v1302, %v1308
      %vm1311 = vc.u32 %v1309, %v1305
      %v1312 = vsel %vm1311, 1, 0
      %v1313 = vadd.s32 %v1309, %v1305
      %v1314 = vadd.s32 %v1310, %v1312
      %v1315 = vadd.s32 %v1314, %v1304
      %v1316 = vadd.s32 %v1315, %v1306
      %v1317 = vand.u32 %v1294, 65535
      %v1318 = vshrl.u32 %v1294, 16
      %v1319 = vand.u32 %v1289, 65535
      %v1320 = vshrl.u32 %v1289, 16
      %v1321 = vmul.u32 %v1317, %v1319
      %v1322 = vmul.u32 %v1317, %v1320
      %v1323 = vmul.u32 %v1318, %v1319
      %v1324 = vmul.u32 %v1318, %v1320
      %v1325 = vshll.u32 %v1322, 16
      %v1326 = vshrl.u32 %v1322, 16
      %v1327 = vshll.u32 %v1323, 16
      %v1328 = vshrl.u32 %v1323, 16
      %vm1329 = vc.u32 %v1321, %v1325
      %v1330 = vsel %vm1329, 1, 0
      %v1331 = vadd.s32 %v1321, %v1325
      %v1332 = vadd.s32 %v1324, %v1330
      %vm1333 = vc.u32 %v1331, %v1327
      %v1334 = vsel %vm1333, 1, 0
      %v1335 = vadd.s32 %v1331, %v1327
      %v1336 = vadd.s32 %v1332, %v1334
      %v1337 = vadd.s32 %v1336, %v1326
      %v1338 = vadd.s32 %v1337, %v1328
      %v1339 = vmul.u32 %v1294, %v1285
      %v1340 = vadd.s32 %v1316, %v1335
      %vm1341 = vc.u32 %v1316, %v1335
      %v1342 = vadd.s32 %v1338, 1
      %v1343 = vsel %vm1341, %v1342, %v1338
      %v1344 = vadd.s32 %v1339, %v1343
      %v1345 = vadd.s32 %v1344, 536870912
      %v1346 = vshrl.u32 %v1345, 30
      %v1347 = vshll.u32 %v1346, 30
      %v1348 = vsub.s32 %v1344, %v1347
      %vm1349 = vcmp.lt.s32.totalorder %v1348, 0
      %v1350 = vsub.s32 0, %v1348
      %v1351 = vsel %vm1349, %v1350, %v1348
      %v1352 = vclz %v1351
      %v1353 = vsub.s32 %v1352, 2
      %vm1354 = vcmp.gt.s32.totalorder 0, %v1353
      %v1355 = vsel %vm1354, 0, %v1353
      %v1356 = vsub.s32 32, %v1355
      %v1357 = vshll.u32 %v1348, %v1355
      %v1358 = vshrl.u32 %v1340, %v1356
      %v1359 = vor.u32 %v1357, %v1358
      %v1360 = vsub.s32 4294967266, %v1355
      %v1361 = vadd.s32 %v1360, 127
      %v1362 = vshll.u32 %v1361, 23
      %v1363 = vor.u32 4788187, %v1362
      %v1364 = vand.u32 2147483647, %v1363
      %v1366 = vcvt.s32.f32 %v1359
      %v1367 = vmul.f32 %v1366, %v1364
      %v1368 = vxor.u32 %v1367, 2147483648
      %v1369 = vsel %vm1248, %v1368, %v1367
      %v1370 = vsub.s32 4, %v1346
      %v1371 = vsel %vm1248, %v1370, %v1346
      %v1372 = vsel %vm1247, %v1078, %v1369
      %v1373 = vsel %vm1247, 0, %v1371
      %v1374 = vmul.f32 %v1372, %v1372
      %v1375 = vmul.f32 %v1374, -0.001358992
      %v1376 = vadd.f32 %v1375, 0.041655596
      %v1377 = vmul.f32 %v1374, %v1376
      %v1378 = vadd.f32 %v1377, -0.4999988
      %v1379 = vmul.f32 %v1374, %v1378
      %v1380 = vadd.f32 1.0, %v1379
      %v1381 = vmul.f32 %v1372, %v1372
      %v1382 = vmul.f32 %v1381, -0.00019511016
      %v1383 = vadd.f32 %v1382, 0.008332121
      %v1384 = vmul.f32 %v1381, %v1383
      %v1385 = vadd.f32 %v1384, -0.16666654
      %v1386 = vmul.f32 %v1381, %v1385
      %v1387 = vadd.f32 %v1386, 1.0
      %v1388 = vmul.f32 %v1387, %v1372
      %vm1389 = vweird.f32 %v1078
      %v1390 = vadd.s32 %v1373, 3
      %v1391 = vand.u32 %v1390, 3
      %vm1392 = vcmp.lt.s32.totalorder %v1391, 2
      %vm1393 = vcmp.eq.s32.totalorder %v1391, 0
      %v1394 = vxor.u32 %v1388, 2147483648
      %v1395 = vsel %vm1393, %v1380, %v1394
      %vm1396 = vcmp.eq.s32.totalorder %v1391, 2
      %v1397 = vxor.u32 %v1380, 2147483648
      %v1398 = vsel %vm1396, %v1397, %v1388
      %v1399 = vsel %vm1392, %v1395, %v1398
      %v1400 = vsel %vm1389, nan, %v1399
      %v1401 = vand.u32 2147483647, %v1079
      %vm1402 = vcmp.le.f32.partialorder %v1401, 0.7853982
      %vm1403 = vcmp.lt.s32.totalorder %v1079, 0
      %v1404 = vand.u32 %v1079, 2139095040
      %v1405 = vshrl.u32 %v1404, 23
      %v1406 = vsub.s32 %v1405, 127
      %v1407 = vand.u32 2147483647, %v1079
      %v1408 = vand.u32 %v1407, 8388607
      %v1409 = vor.u32 %v1408, 8388608
      %v1410 = vsub.s32 0, %v1409
      %v1411 = vadd.s32 %v1406, 1
      %vm1412 = vcmp.gt.s32.totalorder %v1411, 0
      %v1413 = vsel %vm1412, %v1411, 0
      %v1414 = vshrl.u32 %v1413, 5
      %v1415 = vand.u32 %v1413, 31
      %v1416 = vsub.s32 32, %v1415
      %v1417 = vshrl.u32 683565275, %v1416
      %v1418 = vshll.u32 683565275, %v1415
      %v1419 = vshrl.u32 2475754826, %v1416
      %v1420 = vor.u32 %v1418, %v1419
      %v1421 = vshll.u32 2475754826, %v1415
      %v1422 = vshrl.u32 2131351028, %v1416
      %v1423 = vor.u32 %v1421, %v1422
      %v1424 = vshll.u32 2131351028, %v1415
      %v1425 = vshrl.u32 2102212464, %v1416
      %v1426 = vor.u32 %v1424, %v1425
      %v1427 = vshll.u32 2102212464, %v1415
      %v1428 = vshrl.u32 920167782, %v1416
      %v1429 = vor.u32 %v1427, %v1428
      %v1430 = vshll.u32 920167782, %v1415
      %v1431 = vshrl.u32 1326507024, %v1416
      %v1432 = vor.u32 %v1430, %v1431
      %vm1433 = vcmp.lt.s32.totalorder %v1414, 1
      %vm1434 = vcmp.lt.s32.totalorder %v1414, 2
      %vm1435 = vcmp.lt.s32.totalorder %v1414, 3
      %vm1436 = vcmp.lt.s32.totalorder %v1414, 4
      %v1437 = vsel %vm1433, %v1417, %v1420
      %v1438 = vsel %vm1436, %v1426, 2102212464
      %v1439 = vsel %vm1435, %v1423, %v1438
      %v1440 = vsel %vm1434, %v1437, %v1439
      %v1441 = vsel %vm1433, %v1420, %v1423
      %v1442 = vsel %vm1436, %v1429, 920167782
      %v1443 = vsel %vm1435, %v1426, %v1442
      %v1444 = vsel %vm1434, %v1441, %v1443
      %v1445 = vsel %vm1433, %v1423, %v1426
      %v1446 = vsel %vm1436, %v1432, 1326507024
      %v1447 = vsel %vm1435, %v1429, %v1446
      %v1448 = vsel %vm1434, %v1445, %v1447
      %v1449 = vshll.u32 %v1409, 8
      %v1450 = vand.u32 %v1449, 65535
      %v1451 = vshrl.u32 %v1449, 16
      %v1452 = vand.u32 %v1448, 65535
      %v1453 = vshrl.u32 %v1448, 16
      %v1454 = vmul.u32 %v1450, %v1452
      %v1455 = vmul.u32 %v1450, %v1453
      %v1456 = vmul.u32 %v1451, %v1452
      %v1457 = vmul.u32 %v1451, %v1453
      %v1458 = vshll.u32 %v1455, 16
      %v1459 = vshrl.u32 %v1455, 16
      %v1460 = vshll.u32 %v1456, 16
      %v1461 = vshrl.u32 %v1456, 16
      %vm1462 = vc.u32 %v1454, %v1458
      %v1463 = vsel %vm1462, 1, 0
      %v1464 = vadd.s32 %v1454, %v1458
      %v1465 = vadd.s32 %v1457, %v1463
      %vm1466 = vc.u32 %v1464, %v1460
      %v1467 = vsel %vm1466, 1, 0
      %v1468 = vadd.s32 %v1464, %v1460
      %v1469 = vadd.s32 %v1465, %v1467
      %v1470 = vadd.s32 %v1469, %v1459
      %v1471 = vadd.s32 %v1470, %v1461
      %v1472 = vand.u32 %v1449, 65535
      %v1473 = vshrl.u32 %v1449, 16
      %v1474 = vand.u32 %v1444, 65535
      %v1475 = vshrl.u32 %v1444, 16
      %v1476 = vmul.u32 %v1472, %v1474
      %v1477 = vmul.u32 %v1472, %v1475
      %v1478 = vmul.u32 %v1473, %v1474
      %v1479 = vmul.u32 %v1473, %v1475
      %v1480 = vshll.u32 %v1477, 16
      %v1481 = vshrl.u32 %v1477, 16
      %v1482 = vshll.u32 %v1478, 16
      %v1483 = vshrl.u32 %v1478, 16
      %vm1484 = vc.u32 %v1476, %v1480
      %v1485 = vsel %vm1484, 1, 0
      %v1486 = vadd.s32 %v1476, %v1480
      %v1487 = vadd.s32 %v1479, %v1485
      %vm1488 = vc.u32 %v1486, %v1482
      %v1489 = vsel %vm1488, 1, 0
      %v1490 = vadd.s32 %v1486, %v1482
      %v1491 = vadd.s32 %v1487, %v1489
      %v1492 = vadd.s32 %v1491, %v1481
      %v1493 = vadd.s32 %v1492, %v1483
      %v1494 = vmul.u32 %v1449, %v1440
      %v1495 = vadd.s32 %v1471, %v1490
      %vm1496 = vc.u32 %v1471, %v1490
      %v1497 = vadd.s32 %v1493, 1
      %v1498 = vsel %vm1496, %v1497, %v1493
      %v1499 = vadd.s32 %v1494, %v1498
      %v1500 = vadd.s32 %v1499, 536870912
      %v1501 = vshrl.u32 %v1500, 30
      %v1502 = vshll.u32 %v1501, 30
      %v1503 = vsub.s32 %v1499, %v1502
      %vm1504 = vcmp.lt.s32.totalorder %v1503, 0
      %v1505 = vsub.s32 0, %v1503
      %v1506 = vsel %vm1504, %v1505, %v1503
      %v1507 = vclz %v1506
      %v1508 = vsub.s32 %v1507, 2
      %vm1509 = vcmp.gt.s32.totalorder 0, %v1508
      %v1510 = vsel %vm1509, 0, %v1508
      %v1511 = vsub.s32 32, %v1510
      %v1512 = vshll.u32 %v1503, %v1510
      %v1513 = vshrl.u32 %v1495, %v1511
      %v1514 = vor.u32 %v1512, %v1513
      %v1515 = vsub.s32 4294967266, %v1510
      %v1516 = vadd.s32 %v1515, 127
      %v1517 = vshll.u32 %v1516, 23
      %v1518 = vor.u32 4788187, %v1517
      %v1519 = vand.u32 2147483647, %v1518
      %v1521 = vcvt.s32.f32 %v1514
      %v1522 = vmul.f32 %v1521, %v1519
      %v1523 = vxor.u32 %v1522, 2147483648
      %v1524 = vsel %vm1403, %v1523, %v1522
      %v1525 = vsub.s32 4, %v1501
      %v1526 = vsel %vm1403, %v1525, %v1501
      %v1527 = vsel %vm1402, %v1079, %v1524
      %v1528 = vsel %vm1402, 0, %v1526
      %v1529 = vmul.f32 %v1527, %v1527
      %v1530 = vmul.f32 %v1529, -0.001358992
      %v1531 = vadd.f32 %v1530, 0.041655596
      %v1532 = vmul.f32 %v1529, %v1531
      %v1533 = vadd.f32 %v1532, -0.4999988
      %v1534 = vmul.f32 %v1529, %v1533
      %v1535 = vadd.f32 1.0, %v1534
      %v1536 = vmul.f32 %v1527, %v1527
      %v1537 = vmul.f32 %v1536, -0.00019511016
      %v1538 = vadd.f32 %v1537, 0.008332121
      %v1539 = vmul.f32 %v1536, %v1538
      %v1540 = vadd.f32 %v1539, -0.16666654
      %v1541 = vmul.f32 %v1536, %v1540
      %v1542 = vadd.f32 %v1541, 1.0
      %v1543 = vmul.f32 %v1542, %v1527
      %vm1544 = vweird.f32 %v1079
      %v1545 = vadd.s32 %v1528, 3
      %v1546 = vand.u32 %v1545, 3
      %vm1547 = vcmp.lt.s32.totalorder %v1546, 2
      %vm1548 = vcmp.eq.s32.totalorder %v1546, 0
      %v1549 = vxor.u32 %v1543, 2147483648
      %v1550 = vsel %vm1548, %v1535, %v1549
      %vm1551 = vcmp.eq.s32.totalorder %v1546, 2
      %v1552 = vxor.u32 %v1535, 2147483648
      %v1553 = vsel %vm1551, %v1552, %v1543
      %v1554 = vsel %vm1547, %v1550, %v1553
      %v1555 = vsel %vm1544, nan, %v1554
      %v1556 = vand.u32 2147483647, %v1080
      %vm1557 = vcmp.le.f32.partialorder %v1556, 0.7853982
      %vm1558 = vcmp.lt.s32.totalorder %v1080, 0
      %v1559 = vand.u32 %v1080, 2139095040
      %v1560 = vshrl.u32 %v1559, 23
      %v1561 = vsub.s32 %v1560, 127
      %v1562 = vand.u32 2147483647, %v1080
      %v1563 = vand.u32 %v1562, 8388607
      %v1564 = vor.u32 %v1563, 8388608
      %v1565 = vsub.s32 0, %v1564
      %v1566 = vadd.s32 %v1561, 1
      %vm1567 = vcmp.gt.s32.totalorder %v1566, 0
      %v1568 = vsel %vm1567, %v1566, 0
      %v1569 = vshrl.u32 %v1568, 5
      %v1570 = vand.u32 %v1568, 31
      %v1571 = vsub.s32 32, %v1570
      %v1572 = vshrl.u32 683565275, %v1571
      %v1573 = vshll.u32 683565275, %v1570
      %v1574 = vshrl.u32 2475754826, %v1571
      %v1575 = vor.u32 %v1573, %v1574
      %v1576 = vshll.u32 2475754826, %v1570
      %v1577 = vshrl.u32 2131351028, %v1571
      %v1578 = vor.u32 %v1576, %v1577
      %v1579 = vshll.u32 2131351028, %v1570
      %v1580 = vshrl.u32 2102212464, %v1571
      %v1581 = vor.u32 %v1579, %v1580
      %v1582 = vshll.u32 2102212464, %v1570
      %v1583 = vshrl.u32 920167782, %v1571
      %v1584 = vor.u32 %v1582, %v1583
      %v1585 = vshll.u32 920167782, %v1570
      %v1586 = vshrl.u32 1326507024, %v1571
      %v1587 = vor.u32 %v1585, %v1586
      %vm1588 = vcmp.lt.s32.totalorder %v1569, 1
      %vm1589 = vcmp.lt.s32.totalorder %v1569, 2
      %vm1590 = vcmp.lt.s32.totalorder %v1569, 3
      %vm1591 = vcmp.lt.s32.totalorder %v1569, 4
      %v1592 = vsel %vm1588, %v1572, %v1575
      %v1593 = vsel %vm1591, %v1581, 2102212464
      %v1594 = vsel %vm1590, %v1578, %v1593
      %v1595 = vsel %vm1589, %v1592, %v1594
      %v1596 = vsel %vm1588, %v1575, %v1578
      %v1597 = vsel %vm1591, %v1584, 920167782
      %v1598 = vsel %vm1590, %v1581, %v1597
      %v1599 = vsel %vm1589, %v1596, %v1598
      %v1600 = vsel %vm1588, %v1578, %v1581
      %v1601 = vsel %vm1591, %v1587, 1326507024
      %v1602 = vsel %vm1590, %v1584, %v1601
      %v1603 = vsel %vm1589, %v1600, %v1602
      %v1604 = vshll.u32 %v1564, 8
      %v1605 = vand.u32 %v1604, 65535
      %v1606 = vshrl.u32 %v1604, 16
      %v1607 = vand.u32 %v1603, 65535
      %v1608 = vshrl.u32 %v1603, 16
      %v1609 = vmul.u32 %v1605, %v1607
      %v1610 = vmul.u32 %v1605, %v1608
      %v1611 = vmul.u32 %v1606, %v1607
      %v1612 = vmul.u32 %v1606, %v1608
      %v1613 = vshll.u32 %v1610, 16
      %v1614 = vshrl.u32 %v1610, 16
      %v1615 = vshll.u32 %v1611, 16
      %v1616 = vshrl.u32 %v1611, 16
      %vm1617 = vc.u32 %v1609, %v1613
      %v1618 = vsel %vm1617, 1, 0
      %v1619 = vadd.s32 %v1609, %v1613
      %v1620 = vadd.s32 %v1612, %v1618
      %vm1621 = vc.u32 %v1619, %v1615
      %v1622 = vsel %vm1621, 1, 0
      %v1623 = vadd.s32 %v1619, %v1615
      %v1624 = vadd.s32 %v1620, %v1622
      %v1625 = vadd.s32 %v1624, %v1614
      %v1626 = vadd.s32 %v1625, %v1616
      %v1627 = vand.u32 %v1604, 65535
      %v1628 = vshrl.u32 %v1604, 16
      %v1629 = vand.u32 %v1599, 65535
      %v1630 = vshrl.u32 %v1599, 16
      %v1631 = vmul.u32 %v1627, %v1629
      %v1632 = vmul.u32 %v1627, %v1630
      %v1633 = vmul.u32 %v1628, %v1629
      %v1634 = vmul.u32 %v1628, %v1630
      %v1635 = vshll.u32 %v1632, 16
      %v1636 = vshrl.u32 %v1632, 16
      %v1637 = vshll.u32 %v1633, 16
      %v1638 = vshrl.u32 %v1633, 16
      %vm1639 = vc.u32 %v1631, %v1635
      %v1640 = vsel %vm1639, 1, 0
      %v1641 = vadd.s32 %v1631, %v1635
      %v1642 = vadd.s32 %v1634, %v1640
      %vm1643 = vc.u32 %v1641, %v1637
      %v1644 = vsel %vm1643, 1, 0
      %v1645 = vadd.s32 %v1641, %v1637
      %v1646 = vadd.s32 %v1642, %v1644
      %v1647 = vadd.s32 %v1646, %v1636
      %v1648 = vadd.s32 %v1647, %v1638
      %v1649 = vmul.u32 %v1604, %v1595
      %v1650 = vadd.s32 %v1626, %v1645
      %vm1651 = vc.u32 %v1626, %v1645
      %v1652 = vadd.s32 %v1648, 1
      %v1653 = vsel %vm1651, %v1652, %v1648
      %v1654 = vadd.s32 %v1649, %v1653
      %v1655 = vadd.s32 %v1654, 536870912
      %v1656 = vshrl.u32 %v1655, 30
      %v1657 = vshll.u32 %v1656, 30
      %v1658 = vsub.s32 %v1654, %v1657
      %vm1659 = vcmp.lt.s32.totalorder %v1658, 0
      %v1660 = vsub.s32 0, %v1658
      %v1661 = vsel %vm1659, %v1660, %v1658
      %v1662 = vclz %v1661
      %v1663 = vsub.s32 %v1662, 2
      %vm1664 = vcmp.gt.s32.totalorder 0, %v1663
      %v1665 = vsel %vm1664, 0, %v1663
      %v1666 = vsub.s32 32, %v1665
      %v1667 = vshll.u32 %v1658, %v1665
      %v1668 = vshrl.u32 %v1650, %v1666
      %v1669 = vor.u32 %v1667, %v1668
      %v1670 = vsub.s32 4294967266, %v1665
      %v1671 = vadd.s32 %v1670, 127
      %v1672 = vshll.u32 %v1671, 23
      %v1673 = vor.u32 4788187, %v1672
      %v1674 = vand.u32 2147483647, %v1673
      %v1676 = vcvt.s32.f32 %v1669
      %v1677 = vmul.f32 %v1676, %v1674
      %v1678 = vxor.u32 %v1677, 2147483648
      %v1679 = vsel %vm1558, %v1678, %v1677
      %v1680 = vsub.s32 4, %v1656
      %v1681 = vsel %vm1558, %v1680, %v1656
      %v1682 = vsel %vm1557, %v1080, %v1679
      %v1683 = vsel %vm1557, 0, %v1681
      %v1684 = vmul.f32 %v1682, %v1682
      %v1685 = vmul.f32 %v1684, -0.001358992
      %v1686 = vadd.f32 %v1685, 0.041655596
      %v1687 = vmul.f32 %v1684, %v1686
      %v1688 = vadd.f32 %v1687, -0.4999988
      %v1689 = vmul.f32 %v1684, %v1688
      %v1690 = vadd.f32 1.0, %v1689
      %v1691 = vmul.f32 %v1682, %v1682
      %v1692 = vmul.f32 %v1691, -0.00019511016
      %v1693 = vadd.f32 %v1692, 0.008332121
      %v1694 = vmul.f32 %v1691, %v1693
      %v1695 = vadd.f32 %v1694, -0.16666654
      %v1696 = vmul.f32 %v1691, %v1695
      %v1697 = vadd.f32 %v1696, 1.0
      %v1698 = vmul.f32 %v1697, %v1682
      %vm1699 = vweird.f32 %v1080
      %v1700 = vadd.s32 %v1683, 3
      %v1701 = vand.u32 %v1700, 3
      %vm1702 = vcmp.lt.s32.totalorder %v1701, 2
      %vm1703 = vcmp.eq.s32.totalorder %v1701, 0
      %v1704 = vxor.u32 %v1698, 2147483648
      %v1705 = vsel %vm1703, %v1690, %v1704
      %vm1706 = vcmp.eq.s32.totalorder %v1701, 2
      %v1707 = vxor.u32 %v1690, 2147483648
      %v1708 = vsel %vm1706, %v1707, %v1698
      %v1709 = vsel %vm1702, %v1705, %v1708
      %v1710 = vsel %vm1699, nan, %v1709
      %v1711 = vand.u32 2147483647, %v1077
      %vm1712 = vcmp.le.f32.partialorder %v1711, 0.7853982
      %vm1713 = vcmp.lt.s32.totalorder %v1077, 0
      %v1714 = vand.u32 %v1077, 2139095040
      %v1715 = vshrl.u32 %v1714, 23
      %v1716 = vsub.s32 %v1715, 127
      %v1717 = vand.u32 2147483647, %v1077
      %v1718 = vand.u32 %v1717, 8388607
      %v1719 = vor.u32 %v1718, 8388608
      %v1720 = vsub.s32 0, %v1719
      %v1721 = vadd.s32 %v1716, 1
      %vm1722 = vcmp.gt.s32.totalorder %v1721, 0
      %v1723 = vsel %vm1722, %v1721, 0
      %v1724 = vshrl.u32 %v1723, 5
      %v1725 = vand.u32 %v1723, 31
      %v1726 = vsub.s32 32, %v1725
      %v1727 = vshrl.u32 683565275, %v1726
      %v1728 = vshll.u32 683565275, %v1725
      %v1729 = vshrl.u32 2475754826, %v1726
      %v1730 = vor.u32 %v1728, %v1729
      %v1731 = vshll.u32 2475754826, %v1725
      %v1732 = vshrl.u32 2131351028, %v1726
      %v1733 = vor.u32 %v1731, %v1732
      %v1734 = vshll.u32 2131351028, %v1725
      %v1735 = vshrl.u32 2102212464, %v1726
      %v1736 = vor.u32 %v1734, %v1735
      %v1737 = vshll.u32 2102212464, %v1725
      %v1738 = vshrl.u32 920167782, %v1726
      %v1739 = vor.u32 %v1737, %v1738
      %v1740 = vshll.u32 920167782, %v1725
      %v1741 = vshrl.u32 1326507024, %v1726
      %v1742 = vor.u32 %v1740, %v1741
      %vm1743 = vcmp.lt.s32.totalorder %v1724, 1
      %vm1744 = vcmp.lt.s32.totalorder %v1724, 2
      %vm1745 = vcmp.lt.s32.totalorder %v1724, 3
      %vm1746 = vcmp.lt.s32.totalorder %v1724, 4
      %v1747 = vsel %vm1743, %v1727, %v1730
      %v1748 = vsel %vm1746, %v1736, 2102212464
      %v1749 = vsel %vm1745, %v1733, %v1748
      %v1750 = vsel %vm1744, %v1747, %v1749
      %v1751 = vsel %vm1743, %v1730, %v1733
      %v1752 = vsel %vm1746, %v1739, 920167782
      %v1753 = vsel %vm1745, %v1736, %v1752
      %v1754 = vsel %vm1744, %v1751, %v1753
      %v1755 = vsel %vm1743, %v1733, %v1736
      %v1756 = vsel %vm1746, %v1742, 1326507024
      %v1757 = vsel %vm1745, %v1739, %v1756
      %v1758 = vsel %vm1744, %v1755, %v1757
      %v1759 = vshll.u32 %v1719, 8
      %v1760 = vand.u32 %v1759, 65535
      %v1761 = vshrl.u32 %v1759, 16
      %v1762 = vand.u32 %v1758, 65535
      %v1763 = vshrl.u32 %v1758, 16
      %v1764 = vmul.u32 %v1760, %v1762
      %v1765 = vmul.u32 %v1760, %v1763
      %v1766 = vmul.u32 %v1761, %v1762
      %v1767 = vmul.u32 %v1761, %v1763
      %v1768 = vshll.u32 %v1765, 16
      %v1769 = vshrl.u32 %v1765, 16
      %v1770 = vshll.u32 %v1766, 16
      %v1771 = vshrl.u32 %v1766, 16
      %vm1772 = vc.u32 %v1764, %v1768
      %v1773 = vsel %vm1772, 1, 0
      %v1774 = vadd.s32 %v1764, %v1768
      %v1775 = vadd.s32 %v1767, %v1773
      %vm1776 = vc.u32 %v1774, %v1770
      %v1777 = vsel %vm1776, 1, 0
      %v1778 = vadd.s32 %v1774, %v1770
      %v1779 = vadd.s32 %v1775, %v1777
      %v1780 = vadd.s32 %v1779, %v1769
      %v1781 = vadd.s32 %v1780, %v1771
      %v1782 = vand.u32 %v1759, 65535
      %v1783 = vshrl.u32 %v1759, 16
      %v1784 = vand.u32 %v1754, 65535
      %v1785 = vshrl.u32 %v1754, 16
      %v1786 = vmul.u32 %v1782, %v1784
      %v1787 = vmul.u32 %v1782, %v1785
      %v1788 = vmul.u32 %v1783, %v1784
      %v1789 = vmul.u32 %v1783, %v1785
      %v1790 = vshll.u32 %v1787, 16
      %v1791 = vshrl.u32 %v1787, 16
      %v1792 = vshll.u32 %v1788, 16
      %v1793 = vshrl.u32 %v1788, 16
      %vm1794 = vc.u32 %v1786, %v1790
      %v1795 = vsel %vm1794, 1, 0
      %v1796 = vadd.s32 %v1786, %v1790
      %v1797 = vadd.s32 %v1789, %v1795
      %vm1798 = vc.u32 %v1796, %v1792
      %v1799 = vsel %vm1798, 1, 0
      %v1800 = vadd.s32 %v1796, %v1792
      %v1801 = vadd.s32 %v1797, %v1799
      %v1802 = vadd.s32 %v1801, %v1791
      %v1803 = vadd.s32 %v1802, %v1793
      %v1804 = vmul.u32 %v1759, %v1750
      %v1805 = vadd.s32 %v1781, %v1800
      %vm1806 = vc.u32 %v1781, %v1800
      %v1807 = vadd.s32 %v1803, 1
      %v1808 = vsel %vm1806, %v1807, %v1803
      %v1809 = vadd.s32 %v1804, %v1808
      %v1810 = vadd.s32 %v1809, 536870912
      %v1811 = vshrl.u32 %v1810, 30
      %v1812 = vshll.u32 %v1811, 30
      %v1813 = vsub.s32 %v1809, %v1812
      %vm1814 = vcmp.lt.s32.totalorder %v1813, 0
      %v1815 = vsub.s32 0, %v1813
      %v1816 = vsel %vm1814, %v1815, %v1813
      %v1817 = vclz %v1816
      %v1818 = vsub.s32 %v1817, 2
      %vm1819 = vcmp.gt.s32.totalorder 0, %v1818
      %v1820 = vsel %vm1819, 0, %v1818
      %v1821 = vsub.s32 32, %v1820
      %v1822 = vshll.u32 %v1813, %v1820
      %v1823 = vshrl.u32 %v1805, %v1821
      %v1824 = vor.u32 %v1822, %v1823
      %v1825 = vsub.s32 4294967266, %v1820
      %v1826 = vadd.s32 %v1825, 127
      %v1827 = vshll.u32 %v1826, 23
      %v1828 = vor.u32 4788187, %v1827
      %v1829 = vand.u32 2147483647, %v1828
      %v1831 = vcvt.s32.f32 %v1824
      %v1832 = vmul.f32 %v1831, %v1829
      %v1833 = vxor.u32 %v1832, 2147483648
      %v1834 = vsel %vm1713, %v1833, %v1832
      %v1835 = vsub.s32 4, %v1811
      %v1836 = vsel %vm1713, %v1835, %v1811
      %v1837 = vsel %vm1712, %v1077, %v1834
      %v1838 = vsel %vm1712, 0, %v1836
      %v1839 = vmul.f32 %v1837, %v1837
      %v1840 = vmul.f32 %v1839, -0.001358992
      %v1841 = vadd.f32 %v1840, 0.041655596
      %v1842 = vmul.f32 %v1839, %v1841
      %v1843 = vadd.f32 %v1842, -0.4999988
      %v1844 = vmul.f32 %v1839, %v1843
      %v1845 = vadd.f32 1.0, %v1844
      %v1846 = vmul.f32 %v1837, %v1837
      %v1847 = vmul.f32 %v1846, -0.00019511016
      %v1848 = vadd.f32 %v1847, 0.008332121
      %v1849 = vmul.f32 %v1846, %v1848
      %v1850 = vadd.f32 %v1849, -0.16666654
      %v1851 = vmul.f32 %v1846, %v1850
      %v1852 = vadd.f32 %v1851, 1.0
      %v1853 = vmul.f32 %v1852, %v1837
      %vm1854 = vweird.f32 %v1077
      %v1855 = vand.u32 %v1838, 3
      %vm1856 = vcmp.lt.s32.totalorder %v1855, 2
      %vm1857 = vcmp.eq.s32.totalorder %v1855, 0
      %v1858 = vxor.u32 %v1853, 2147483648
      %v1859 = vsel %vm1857, %v1845, %v1858
      %vm1860 = vcmp.eq.s32.totalorder %v1855, 2
      %v1861 = vxor.u32 %v1845, 2147483648
      %v1862 = vsel %vm1860, %v1861, %v1853
      %v1863 = vsel %vm1856, %v1859, %v1862
      %v1864 = vsel %vm1854, nan, %v1863
      %v1865 = vand.u32 2147483647, %v1078
      %vm1866 = vcmp.le.f32.partialorder %v1865, 0.7853982
      %vm1867 = vcmp.lt.s32.totalorder %v1078, 0
      %v1868 = vand.u32 %v1078, 2139095040
      %v1869 = vshrl.u32 %v1868, 23
      %v1870 = vsub.s32 %v1869, 127
      %v1871 = vand.u32 2147483647, %v1078
      %v1872 = vand.u32 %v1871, 8388607
      %v1873 = vor.u32 %v1872, 8388608
      %v1874 = vsub.s32 0, %v1873
      %v1875 = vadd.s32 %v1870, 1
      %vm1876 = vcmp.gt.s32.totalorder %v1875, 0
      %v1877 = vsel %vm1876, %v1875, 0
      %v1878 = vshrl.u32 %v1877, 5
      %v1879 = vand.u32 %v1877, 31
      %v1880 = vsub.s32 32, %v1879
      %v1881 = vshrl.u32 683565275, %v1880
      %v1882 = vshll.u32 683565275, %v1879
      %v1883 = vshrl.u32 2475754826, %v1880
      %v1884 = vor.u32 %v1882, %v1883
      %v1885 = vshll.u32 2475754826, %v1879
      %v1886 = vshrl.u32 2131351028, %v1880
      %v1887 = vor.u32 %v1885, %v1886
      %v1888 = vshll.u32 2131351028, %v1879
      %v1889 = vshrl.u32 2102212464, %v1880
      %v1890 = vor.u32 %v1888, %v1889
      %v1891 = vshll.u32 2102212464, %v1879
      %v1892 = vshrl.u32 920167782, %v1880
      %v1893 = vor.u32 %v1891, %v1892
      %v1894 = vshll.u32 920167782, %v1879
      %v1895 = vshrl.u32 1326507024, %v1880
      %v1896 = vor.u32 %v1894, %v1895
      %vm1897 = vcmp.lt.s32.totalorder %v1878, 1
      %vm1898 = vcmp.lt.s32.totalorder %v1878, 2
      %vm1899 = vcmp.lt.s32.totalorder %v1878, 3
      %vm1900 = vcmp.lt.s32.totalorder %v1878, 4
      %v1901 = vsel %vm1897, %v1881, %v1884
      %v1902 = vsel %vm1900, %v1890, 2102212464
      %v1903 = vsel %vm1899, %v1887, %v1902
      %v1904 = vsel %vm1898, %v1901, %v1903
      %v1905 = vsel %vm1897, %v1884, %v1887
      %v1906 = vsel %vm1900, %v1893, 920167782
      %v1907 = vsel %vm1899, %v1890, %v1906
      %v1908 = vsel %vm1898, %v1905, %v1907
      %v1909 = vsel %vm1897, %v1887, %v1890
      %v1910 = vsel %vm1900, %v1896, 1326507024
      %v1911 = vsel %vm1899, %v1893, %v1910
      %v1912 = vsel %vm1898, %v1909, %v1911
      %v1913 = vshll.u32 %v1873, 8
      %v1914 = vand.u32 %v1913, 65535
      %v1915 = vshrl.u32 %v1913, 16
      %v1916 = vand.u32 %v1912, 65535
      %v1917 = vshrl.u32 %v1912, 16
      %v1918 = vmul.u32 %v1914, %v1916
      %v1919 = vmul.u32 %v1914, %v1917
      %v1920 = vmul.u32 %v1915, %v1916
      %v1921 = vmul.u32 %v1915, %v1917
      %v1922 = vshll.u32 %v1919, 16
      %v1923 = vshrl.u32 %v1919, 16
      %v1924 = vshll.u32 %v1920, 16
      %v1925 = vshrl.u32 %v1920, 16
      %vm1926 = vc.u32 %v1918, %v1922
      %v1927 = vsel %vm1926, 1, 0
      %v1928 = vadd.s32 %v1918, %v1922
      %v1929 = vadd.s32 %v1921, %v1927
      %vm1930 = vc.u32 %v1928, %v1924
      %v1931 = vsel %vm1930, 1, 0
      %v1932 = vadd.s32 %v1928, %v1924
      %v1933 = vadd.s32 %v1929, %v1931
      %v1934 = vadd.s32 %v1933, %v1923
      %v1935 = vadd.s32 %v1934, %v1925
      %v1936 = vand.u32 %v1913, 65535
      %v1937 = vshrl.u32 %v1913, 16
      %v1938 = vand.u32 %v1908, 65535
      %v1939 = vshrl.u32 %v1908, 16
      %v1940 = vmul.u32 %v1936, %v1938
      %v1941 = vmul.u32 %v1936, %v1939
      %v1942 = vmul.u32 %v1937, %v1938
      %v1943 = vmul.u32 %v1937, %v1939
      %v1944 = vshll.u32 %v1941, 16
      %v1945 = vshrl.u32 %v1941, 16
      %v1946 = vshll.u32 %v1942, 16
      %v1947 = vshrl.u32 %v1942, 16
      %vm1948 = vc.u32 %v1940, %v1944
      %v1949 = vsel %vm1948, 1, 0
      %v1950 = vadd.s32 %v1940, %v1944
      %v1951 = vadd.s32 %v1943, %v1949
      %vm1952 = vc.u32 %v1950, %v1946
      %v1953 = vsel %vm1952, 1, 0
      %v1954 = vadd.s32 %v1950, %v1946
      %v1955 = vadd.s32 %v1951, %v1953
      %v1956 = vadd.s32 %v1955, %v1945
      %v1957 = vadd.s32 %v1956, %v1947
      %v1958 = vmul.u32 %v1913, %v1904
      %v1959 = vadd.s32 %v1935, %v1954
      %vm1960 = vc.u32 %v1935, %v1954
      %v1961 = vadd.s32 %v1957, 1
      %v1962 = vsel %vm1960, %v1961, %v1957
      %v1963 = vadd.s32 %v1958, %v1962
      %v1964 = vadd.s32 %v1963, 536870912
      %v1965 = vshrl.u32 %v1964, 30
      %v1966 = vshll.u32 %v1965, 30
      %v1967 = vsub.s32 %v1963, %v1966
      %vm1968 = vcmp.lt.s32.totalorder %v1967, 0
      %v1969 = vsub.s32 0, %v1967
      %v1970 = vsel %vm1968, %v1969, %v1967
      %v1971 = vclz %v1970
      %v1972 = vsub.s32 %v1971, 2
      %vm1973 = vcmp.gt.s32.totalorder 0, %v1972
      %v1974 = vsel %vm1973, 0, %v1972
      %v1975 = vsub.s32 32, %v1974
      %v1976 = vshll.u32 %v1967, %v1974
      %v1977 = vshrl.u32 %v1959, %v1975
      %v1978 = vor.u32 %v1976, %v1977
      %v1979 = vsub.s32 4294967266, %v1974
      %v1980 = vadd.s32 %v1979, 127
      %v1981 = vshll.u32 %v1980, 23
      %v1982 = vor.u32 4788187, %v1981
      %v1983 = vand.u32 2147483647, %v1982
      %v1985 = vcvt.s32.f32 %v1978
      %v1986 = vmul.f32 %v1985, %v1983
      %v1987 = vxor.u32 %v1986, 2147483648
      %v1988 = vsel %vm1867, %v1987, %v1986
      %v1989 = vsub.s32 4, %v1965
      %v1990 = vsel %vm1867, %v1989, %v1965
      %v1991 = vsel %vm1866, %v1078, %v1988
      %v1992 = vsel %vm1866, 0, %v1990
      %v1993 = vmul.f32 %v1991, %v1991
      %v1994 = vmul.f32 %v1993, -0.001358992
      %v1995 = vadd.f32 %v1994, 0.041655596
      %v1996 = vmul.f32 %v1993, %v1995
      %v1997 = vadd.f32 %v1996, -0.4999988
      %v1998 = vmul.f32 %v1993, %v1997
      %v1999 = vadd.f32 1.0, %v1998
      %v2000 = vmul.f32 %v1991, %v1991
      %v2001 = vmul.f32 %v2000, -0.00019511016
      %v2002 = vadd.f32 %v2001, 0.008332121
      %v2003 = vmul.f32 %v2000, %v2002
      %v2004 = vadd.f32 %v2003, -0.16666654
      %v2005 = vmul.f32 %v2000, %v2004
      %v2006 = vadd.f32 %v2005, 1.0
      %v2007 = vmul.f32 %v2006, %v1991
      %vm2008 = vweird.f32 %v1078
      %v2009 = vand.u32 %v1992, 3
      %vm2010 = vcmp.lt.s32.totalorder %v2009, 2
      %vm2011 = vcmp.eq.s32.totalorder %v2009, 0
      %v2012 = vxor.u32 %v2007, 2147483648
      %v2013 = vsel %vm2011, %v1999, %v2012
      %vm2014 = vcmp.eq.s32.totalorder %v2009, 2
      %v2015 = vxor.u32 %v1999, 2147483648
      %v2016 = vsel %vm2014, %v2015, %v2007
      %v2017 = vsel %vm2010, %v2013, %v2016
      %v2018 = vsel %vm2008, nan, %v2017
      %v2019 = vand.u32 2147483647, %v1079
      %vm2020 = vcmp.le.f32.partialorder %v2019, 0.7853982
      %vm2021 = vcmp.lt.s32.totalorder %v1079, 0
      %v2022 = vand.u32 %v1079, 2139095040
      %v2023 = vshrl.u32 %v2022, 23
      %v2024 = vsub.s32 %v2023, 127
      %v2025 = vand.u32 2147483647, %v1079
      %v2026 = vand.u32 %v2025, 8388607
      %v2027 = vor.u32 %v2026, 8388608
      %v2028 = vsub.s32 0, %v2027
      %v2029 = vadd.s32 %v2024, 1
      %vm2030 = vcmp.gt.s32.totalorder %v2029, 0
      %v2031 = vsel %vm2030, %v2029, 0
      %v2032 = vshrl.u32 %v2031, 5
      %v2033 = vand.u32 %v2031, 31
      %v2034 = vsub.s32 32, %v2033
      %v2035 = vshrl.u32 683565275, %v2034
      %v2036 = vshll.u32 683565275, %v2033
      %v2037 = vshrl.u32 2475754826, %v2034
      %v2038 = vor.u32 %v2036, %v2037
      %v2039 = vshll.u32 2475754826, %v2033
      %v2040 = vshrl.u32 2131351028, %v2034
      %v2041 = vor.u32 %v2039, %v2040
      %v2042 = vshll.u32 2131351028, %v2033
      %v2043 = vshrl.u32 2102212464, %v2034
      %v2044 = vor.u32 %v2042, %v2043
      %v2045 = vshll.u32 2102212464, %v2033
      %v2046 = vshrl.u32 920167782, %v2034
      %v2047 = vor.u32 %v2045, %v2046
      %v2048 = vshll.u32 920167782, %v2033
      %v2049 = vshrl.u32 1326507024, %v2034
      %v2050 = vor.u32 %v2048, %v2049
      %vm2051 = vcmp.lt.s32.totalorder %v2032, 1
      %vm2052 = vcmp.lt.s32.totalorder %v2032, 2
      %vm2053 = vcmp.lt.s32.totalorder %v2032, 3
      %vm2054 = vcmp.lt.s32.totalorder %v2032, 4
      %v2055 = vsel %vm2051, %v2035, %v2038
      %v2056 = vsel %vm2054, %v2044, 2102212464
      %v2057 = vsel %vm2053, %v2041, %v2056
      %v2058 = vsel %vm2052, %v2055, %v2057
      %v2059 = vsel %vm2051, %v2038, %v2041
      %v2060 = vsel %vm2054, %v2047, 920167782
      %v2061 = vsel %vm2053, %v2044, %v2060
      %v2062 = vsel %vm2052, %v2059, %v2061
      %v2063 = vsel %vm2051, %v2041, %v2044
      %v2064 = vsel %vm2054, %v2050, 1326507024
      %v2065 = vsel %vm2053, %v2047, %v2064
      %v2066 = vsel %vm2052, %v2063, %v2065
      %v2067 = vshll.u32 %v2027, 8
      %v2068 = vand.u32 %v2067, 65535
      %v2069 = vshrl.u32 %v2067, 16
      %v2070 = vand.u32 %v2066, 65535
      %v2071 = vshrl.u32 %v2066, 16
      %v2072 = vmul.u32 %v2068, %v2070
      %v2073 = vmul.u32 %v2068, %v2071
      %v2074 = vmul.u32 %v2069, %v2070
      %v2075 = vmul.u32 %v2069, %v2071
      %v2076 = vshll.u32 %v2073, 16
      %v2077 = vshrl.u32 %v2073, 16
      %v2078 = vshll.u32 %v2074, 16
      %v2079 = vshrl.u32 %v2074, 16
      %vm2080 = vc.u32 %v2072, %v2076
      %v2081 = vsel %vm2080, 1, 0
      %v2082 = vadd.s32 %v2072, %v2076
      %v2083 = vadd.s32 %v2075, %v2081
      %vm2084 = vc.u32 %v2082, %v2078
      %v2085 = vsel %vm2084, 1, 0
      %v2086 = vadd.s32 %v2082, %v2078
      %v2087 = vadd.s32 %v2083, %v2085
      %v2088 = vadd.s32 %v2087, %v2077
      %v2089 = vadd.s32 %v2088, %v2079
      %v2090 = vand.u32 %v2067, 65535
      %v2091 = vshrl.u32 %v2067, 16
      %v2092 = vand.u32 %v2062, 65535
      %v2093 = vshrl.u32 %v2062, 16
      %v2094 = vmul.u32 %v2090, %v2092
      %v2095 = vmul.u32 %v2090, %v2093
      %v2096 = vmul.u32 %v2091, %v2092
      %v2097 = vmul.u32 %v2091, %v2093
      %v2098 = vshll.u32 %v2095, 16
      %v2099 = vshrl.u32 %v2095, 16
      %v2100 = vshll.u32 %v2096, 16
      %v2101 = vshrl.u32 %v2096, 16
      %vm2102 = vc.u32 %v2094, %v2098
      %v2103 = vsel %vm2102, 1, 0
      %v2104 = vadd.s32 %v2094, %v2098
      %v2105 = vadd.s32 %v2097, %v2103
      %vm2106 = vc.u32 %v2104, %v2100
      %v2107 = vsel %vm2106, 1, 0
      %v2108 = vadd.s32 %v2104, %v2100
      %v2109 = vadd.s32 %v2105, %v2107
      %v2110 = vadd.s32 %v2109, %v2099
      %v2111 = vadd.s32 %v2110, %v2101
      %v2112 = vmul.u32 %v2067, %v2058
      %v2113 = vadd.s32 %v2089, %v2108
      %vm2114 = vc.u32 %v2089, %v2108
      %v2115 = vadd.s32 %v2111, 1
      %v2116 = vsel %vm2114, %v2115, %v2111
      %v2117 = vadd.s32 %v2112, %v2116
      %v2118 = vadd.s32 %v2117, 536870912
      %v2119 = vshrl.u32 %v2118, 30
      %v2120 = vshll.u32 %v2119, 30
      %v2121 = vsub.s32 %v2117, %v2120
      %vm2122 = vcmp.lt.s32.totalorder %v2121, 0
      %v2123 = vsub.s32 0, %v2121
      %v2124 = vsel %vm2122, %v2123, %v2121
      %v2125 = vclz %v2124
      %v2126 = vsub.s32 %v2125, 2
      %vm2127 = vcmp.gt.s32.totalorder 0, %v2126
      %v2128 = vsel %vm2127, 0, %v2126
      %v2129 = vsub.s32 32, %v2128
      %v2130 = vshll.u32 %v2121, %v2128
      %v2131 = vshrl.u32 %v2113, %v2129
      %v2132 = vor.u32 %v2130, %v2131
      %v2133 = vsub.s32 4294967266, %v2128
      %v2134 = vadd.s32 %v2133, 127
      %v2135 = vshll.u32 %v2134, 23
      %v2136 = vor.u32 4788187, %v2135
      %v2137 = vand.u32 2147483647, %v2136
      %v2139 = vcvt.s32.f32 %v2132
      %v2140 = vmul.f32 %v2139, %v2137
      %v2141 = vxor.u32 %v2140, 2147483648
      %v2142 = vsel %vm2021, %v2141, %v2140
      %v2143 = vsub.s32 4, %v2119
      %v2144 = vsel %vm2021, %v2143, %v2119
      %v2145 = vsel %vm2020, %v1079, %v2142
      %v2146 = vsel %vm2020, 0, %v2144
      %v2147 = vmul.f32 %v2145, %v2145
      %v2148 = vmul.f32 %v2147, -0.001358992
      %v2149 = vadd.f32 %v2148, 0.041655596
      %v2150 = vmul.f32 %v2147, %v2149
      %v2151 = vadd.f32 %v2150, -0.4999988
      %v2152 = vmul.f32 %v2147, %v2151
      %v2153 = vadd.f32 1.0, %v2152
      %v2154 = vmul.f32 %v2145, %v2145
      %v2155 = vmul.f32 %v2154, -0.00019511016
      %v2156 = vadd.f32 %v2155, 0.008332121
      %v2157 = vmul.f32 %v2154, %v2156
      %v2158 = vadd.f32 %v2157, -0.16666654
      %v2159 = vmul.f32 %v2154, %v2158
      %v2160 = vadd.f32 %v2159, 1.0
      %v2161 = vmul.f32 %v2160, %v2145
      %vm2162 = vweird.f32 %v1079
      %v2163 = vand.u32 %v2146, 3
      %vm2164 = vcmp.lt.s32.totalorder %v2163, 2
      %vm2165 = vcmp.eq.s32.totalorder %v2163, 0
      %v2166 = vxor.u32 %v2161, 2147483648
      %v2167 = vsel %vm2165, %v2153, %v2166
      %vm2168 = vcmp.eq.s32.totalorder %v2163, 2
      %v2169 = vxor.u32 %v2153, 2147483648
      %v2170 = vsel %vm2168, %v2169, %v2161
      %v2171 = vsel %vm2164, %v2167, %v2170
      %v2172 = vsel %vm2162, nan, %v2171
      %v2173 = vand.u32 2147483647, %v1080
      %vm2174 = vcmp.le.f32.partialorder %v2173, 0.7853982
      %vm2175 = vcmp.lt.s32.totalorder %v1080, 0
      %v2176 = vand.u32 %v1080, 2139095040
      %v2177 = vshrl.u32 %v2176, 23
      %v2178 = vsub.s32 %v2177, 127
      %v2179 = vand.u32 2147483647, %v1080
      %v2180 = vand.u32 %v2179, 8388607
      %v2181 = vor.u32 %v2180, 8388608
      %v2182 = vsub.s32 0, %v2181
      %v2183 = vadd.s32 %v2178, 1
      %vm2184 = vcmp.gt.s32.totalorder %v2183, 0
      %v2185 = vsel %vm2184, %v2183, 0
      %v2186 = vshrl.u32 %v2185, 5
      %v2187 = vand.u32 %v2185, 31
      %v2188 = vsub.s32 32, %v2187
      %v2189 = vshrl.u32 683565275, %v2188
      %v2190 = vshll.u32 683565275, %v2187
      %v2191 = vshrl.u32 2475754826, %v2188
      %v2192 = vor.u32 %v2190, %v2191
      %v2193 = vshll.u32 2475754826, %v2187
      %v2194 = vshrl.u32 2131351028, %v2188
      %v2195 = vor.u32 %v2193, %v2194
      %v2196 = vshll.u32 2131351028, %v2187
      %v2197 = vshrl.u32 2102212464, %v2188
      %v2198 = vor.u32 %v2196, %v2197
      %v2199 = vshll.u32 2102212464, %v2187
      %v2200 = vshrl.u32 920167782, %v2188
      %v2201 = vor.u32 %v2199, %v2200
      %v2202 = vshll.u32 920167782, %v2187
      %v2203 = vshrl.u32 1326507024, %v2188
      %v2204 = vor.u32 %v2202, %v2203
      %vm2205 = vcmp.lt.s32.totalorder %v2186, 1
      %vm2206 = vcmp.lt.s32.totalorder %v2186, 2
      %vm2207 = vcmp.lt.s32.totalorder %v2186, 3
      %vm2208 = vcmp.lt.s32.totalorder %v2186, 4
      %v2209 = vsel %vm2205, %v2189, %v2192
      %v2210 = vsel %vm2208, %v2198, 2102212464
      %v2211 = vsel %vm2207, %v2195, %v2210
      %v2212 = vsel %vm2206, %v2209, %v2211
      %v2213 = vsel %vm2205, %v2192, %v2195
      %v2214 = vsel %vm2208, %v2201, 920167782
      %v2215 = vsel %vm2207, %v2198, %v2214
      %v2216 = vsel %vm2206, %v2213, %v2215
      %v2217 = vsel %vm2205, %v2195, %v2198
      %v2218 = vsel %vm2208, %v2204, 1326507024
      %v2219 = vsel %vm2207, %v2201, %v2218
      %v2220 = vsel %vm2206, %v2217, %v2219
      %v2221 = vshll.u32 %v2181, 8
      %v2222 = vand.u32 %v2221, 65535
      %v2223 = vshrl.u32 %v2221, 16
      %v2224 = vand.u32 %v2220, 65535
      %v2225 = vshrl.u32 %v2220, 16
      %v2226 = vmul.u32 %v2222, %v2224
      %v2227 = vmul.u32 %v2222, %v2225
      %v2228 = vmul.u32 %v2223, %v2224
      %v2229 = vmul.u32 %v2223, %v2225
      %v2230 = vshll.u32 %v2227, 16
      %v2231 = vshrl.u32 %v2227, 16
      %v2232 = vshll.u32 %v2228, 16
      %v2233 = vshrl.u32 %v2228, 16
      %vm2234 = vc.u32 %v2226, %v2230
      %v2235 = vsel %vm2234, 1, 0
      %v2236 = vadd.s32 %v2226, %v2230
      %v2237 = vadd.s32 %v2229, %v2235
      %vm2238 = vc.u32 %v2236, %v2232
      %v2239 = vsel %vm2238, 1, 0
      %v2240 = vadd.s32 %v2236, %v2232
      %v2241 = vadd.s32 %v2237, %v2239
      %v2242 = vadd.s32 %v2241, %v2231
      %v2243 = vadd.s32 %v2242, %v2233
      %v2244 = vand.u32 %v2221, 65535
      %v2245 = vshrl.u32 %v2221, 16
      %v2246 = vand.u32 %v2216, 65535
      %v2247 = vshrl.u32 %v2216, 16
      %v2248 = vmul.u32 %v2244, %v2246
      %v2249 = vmul.u32 %v2244, %v2247
      %v2250 = vmul.u32 %v2245, %v2246
      %v2251 = vmul.u32 %v2245, %v2247
      %v2252 = vshll.u32 %v2249, 16
      %v2253 = vshrl.u32 %v2249, 16
      %v2254 = vshll.u32 %v2250, 16
      %v2255 = vshrl.u32 %v2250, 16
      %vm2256 = vc.u32 %v2248, %v2252
      %v2257 = vsel %vm2256, 1, 0
      %v2258 = vadd.s32 %v2248, %v2252
      %v2259 = vadd.s32 %v2251, %v2257
      %vm2260 = vc.u32 %v2258, %v2254
      %v2261 = vsel %vm2260, 1, 0
      %v2262 = vadd.s32 %v2258, %v2254
      %v2263 = vadd.s32 %v2259, %v2261
      %v2264 = vadd.s32 %v2263, %v2253
      %v2265 = vadd.s32 %v2264, %v2255
      %v2266 = vmul.u32 %v2221, %v2212
      %v2267 = vadd.s32 %v2243, %v2262
      %vm2268 = vc.u32 %v2243, %v2262
      %v2269 = vadd.s32 %v2265, 1
      %v2270 = vsel %vm2268, %v2269, %v2265
      %v2271 = vadd.s32 %v2266, %v2270
      %v2272 = vadd.s32 %v2271, 536870912
      %v2273 = vshrl.u32 %v2272, 30
      %v2274 = vshll.u32 %v2273, 30
      %v2275 = vsub.s32 %v2271, %v2274
      %vm2276 = vcmp.lt.s32.totalorder %v2275, 0
      %v2277 = vsub.s32 0, %v2275
      %v2278 = vsel %vm2276, %v2277, %v2275
      %v2279 = vclz %v2278
      %v2280 = vsub.s32 %v2279, 2
      %vm2281 = vcmp.gt.s32.totalorder 0, %v2280
      %v2282 = vsel %vm2281, 0, %v2280
      %v2283 = vsub.s32 32, %v2282
      %v2284 = vshll.u32 %v2275, %v2282
      %v2285 = vshrl.u32 %v2267, %v2283
      %v2286 = vor.u32 %v2284, %v2285
      %v2287 = vsub.s32 4294967266, %v2282
      %v2288 = vadd.s32 %v2287, 127
      %v2289 = vshll.u32 %v2288, 23
      %v2290 = vor.u32 4788187, %v2289
      %v2291 = vand.u32 2147483647, %v2290
      %v2293 = vcvt.s32.f32 %v2286
      %v2294 = vmul.f32 %v2293, %v2291
      %v2295 = vxor.u32 %v2294, 2147483648
      %v2296 = vsel %vm2175, %v2295, %v2294
      %v2297 = vsub.s32 4, %v2273
      %v2298 = vsel %vm2175, %v2297, %v2273
      %v2299 = vsel %vm2174, %v1080, %v2296
      %v2300 = vsel %vm2174, 0, %v2298
      %v2301 = vmul.f32 %v2299, %v2299
      %v2302 = vmul.f32 %v2301, -0.001358992
      %v2303 = vadd.f32 %v2302, 0.041655596
      %v2304 = vmul.f32 %v2301, %v2303
      %v2305 = vadd.f32 %v2304, -0.4999988
      %v2306 = vmul.f32 %v2301, %v2305
      %v2307 = vadd.f32 1.0, %v2306
      %v2308 = vmul.f32 %v2299, %v2299
      %v2309 = vmul.f32 %v2308, -0.00019511016
      %v2310 = vadd.f32 %v2309, 0.008332121
      %v2311 = vmul.f32 %v2308, %v2310
      %v2312 = vadd.f32 %v2311, -0.16666654
      %v2313 = vmul.f32 %v2308, %v2312
      %v2314 = vadd.f32 %v2313, 1.0
      %v2315 = vmul.f32 %v2314, %v2299
      %vm2316 = vweird.f32 %v1080
      %v2317 = vand.u32 %v2300, 3
      %vm2318 = vcmp.lt.s32.totalorder %v2317, 2
      %vm2319 = vcmp.eq.s32.totalorder %v2317, 0
      %v2320 = vxor.u32 %v2315, 2147483648
      %v2321 = vsel %vm2319, %v2307, %v2320
      %vm2322 = vcmp.eq.s32.totalorder %v2317, 2
      %v2323 = vxor.u32 %v2307, 2147483648
      %v2324 = vsel %vm2322, %v2323, %v2315
      %v2325 = vsel %vm2318, %v2321, %v2324
      %v2326 = vsel %vm2316, nan, %v2325
      %v2327 = vrcp.pop %v1864
      %v2328 = vmul.f32 %v1864, %v2327
      %v2329 = vsub.f32 1.0, %v2328
      %v2330 = vmul.f32 %v2327, %v2329
      %v2331 = vadd.f32 %v2327, %v2330
      %vm2332 = vweird.f32 %v1864
      %vm2333 = vweird.f32 %v2327
      %vm2334 = vmor %vm2332, %vm2333
      %v2335 = vsel %vm2334, %v2327, %v2331
      %v2336 = vand.u32 2147483647, %v1864
      %vm2337 = vcmp.eq.f32.partialorder %v2336, 8.507059e+37
      %v2338 = vand.u32 %v1864, 2147483648
      %v2339 = vor.u32 1.1754944e-38, %v2338
      %v2340 = vsel %vm2337, %v2339, %v2335
      %v2341 = vmul.f32 %v1245, %v2340
      %v2342 = vrcp.pop %v2018
      %v2343 = vmul.f32 %v2018, %v2342
      %v2344 = vsub.f32 1.0, %v2343
      %v2345 = vmul.f32 %v2342, %v2344
      %v2346 = vadd.f32 %v2342, %v2345
      %vm2347 = vweird.f32 %v2018
      %vm2348 = vweird.f32 %v2342
      %vm2349 = vmor %vm2347, %vm2348
      %v2350 = vsel %vm2349, %v2342, %v2346
      %v2351 = vand.u32 2147483647, %v2018
      %vm2352 = vcmp.eq.f32.partialorder %v2351, 8.507059e+37
      %v2353 = vand.u32 %v2018, 2147483648
      %v2354 = vor.u32 1.1754944e-38, %v2353
      %v2355 = vsel %vm2352, %v2354, %v2350
      %v2356 = vmul.f32 %v1400, %v2355
      %v2357 = vrcp.pop %v2172
      %v2358 = vmul.f32 %v2172, %v2357
      %v2359 = vsub.f32 1.0, %v2358
      %v2360 = vmul.f32 %v2357, %v2359
      %v2361 = vadd.f32 %v2357, %v2360
      %vm2362 = vweird.f32 %v2172
      %vm2363 = vweird.f32 %v2357
      %vm2364 = vmor %vm2362, %vm2363
      %v2365 = vsel %vm2364, %v2357, %v2361
      %v2366 = vand.u32 2147483647, %v2172
      %vm2367 = vcmp.eq.f32.partialorder %v2366, 8.507059e+37
      %v2368 = vand.u32 %v2172, 2147483648
      %v2369 = vor.u32 1.1754944e-38, %v2368
      %v2370 = vsel %vm2367, %v2369, %v2365
      %v2371 = vmul.f32 %v1555, %v2370
      %v2372 = vrcp.pop %v2326
      %v2373 = vmul.f32 %v2326, %v2372
      %v2374 = vsub.f32 1.0, %v2373
      %v2375 = vmul.f32 %v2372, %v2374
      %v2376 = vadd.f32 %v2372, %v2375
      %vm2377 = vweird.f32 %v2326
      %vm2378 = vweird.f32 %v2372
      %vm2379 = vmor %vm2377, %vm2378
      %v2380 = vsel %vm2379, %v2372, %v2376
      %v2381 = vand.u32 2147483647, %v2326
      %vm2382 = vcmp.eq.f32.partialorder %v2381, 8.507059e+37
      %v2383 = vand.u32 %v2326, 2147483648
      %v2384 = vor.u32 1.1754944e-38, %v2383
      %v2385 = vsel %vm2382, %v2384, %v2380
      %v2386 = vmul.f32 %v1710, %v2385
      %v2387 = vmul.f32 %v2341, 0.4
      %v2388 = vmul.f32 %v2356, 0.4
      %v2389 = vmul.f32 %v2371, 0.4
      %v2390 = vmul.f32 %v2386, 0.4
      %v2391 = vmul.f32 %v2387, %v2387
      %v2392 = vmul.f32 %v2388, %v2388
      %v2393 = vmul.f32 %v2389, %v2389
      %v2394 = vmul.f32 %v2390, %v2390
      %v2395 = vadd.f32 %v2391, 1.0
      %v2396 = vadd.f32 %v2392, 1.0
      %v2397 = vadd.f32 %v2393, 1.0
      %v2398 = vadd.f32 %v2394, 1.0
      %v2399 = vrsqrt.pop %v2395
      %v2400 = vmul.f32 %v2399, %v2395
      %v2401 = vmul.f32 %v2400, %v2399
      %v2402 = vmul.f32 0.5, %v2401
      %v2403 = vsub.f32 1.5, %v2402
      %v2404 = vmul.f32 %v2399, %v2403
      %vm2405 = vweird.f32 %v2395
      %vm2406 = vweird.f32 %v2399
      %vm2407 = vmor %vm2405, %vm2406
      %v2408 = vsel %vm2407, %v2399, %v2404
      %v2409 = vrsqrt.pop %v2396
      %v2410 = vmul.f32 %v2409, %v2396
      %v2411 = vmul.f32 %v2410, %v2409
      %v2412 = vmul.f32 0.5, %v2411
      %v2413 = vsub.f32 1.5, %v2412
      %v2414 = vmul.f32 %v2409, %v2413
      %vm2415 = vweird.f32 %v2396
      %vm2416 = vweird.f32 %v2409
      %vm2417 = vmor %vm2415, %vm2416
      %v2418 = vsel %vm2417, %v2409, %v2414
      %v2419 = vrsqrt.pop %v2397
      %v2420 = vmul.f32 %v2419, %v2397
      %v2421 = vmul.f32 %v2420, %v2419
      %v2422 = vmul.f32 0.5, %v2421
      %v2423 = vsub.f32 1.5, %v2422
      %v2424 = vmul.f32 %v2419, %v2423
      %vm2425 = vweird.f32 %v2397
      %vm2426 = vweird.f32 %v2419
      %vm2427 = vmor %vm2425, %vm2426
      %v2428 = vsel %vm2427, %v2419, %v2424
      %v2429 = vrsqrt.pop %v2398
      %v2430 = vmul.f32 %v2429, %v2398
      %v2431 = vmul.f32 %v2430, %v2429
      %v2432 = vmul.f32 0.5, %v2431
      %v2433 = vsub.f32 1.5, %v2432
      %v2434 = vmul.f32 %v2429, %v2433
      %vm2435 = vweird.f32 %v2398
      %vm2436 = vweird.f32 %v2429
      %vm2437 = vmor %vm2435, %vm2436
      %v2438 = vsel %vm2437, %v2429, %v2434
      %v2439 = vmul.f32 %v2387, %v2408
      %v2440 = vmul.f32 %v2388, %v2418
      %v2441 = vmul.f32 %v2389, %v2428
      %v2442 = vmul.f32 %v2390, %v2438
      %v2443 = vld [vmem:[%s7] sm:$0xff]
      %v2444 = vld [vmem:[%s7 + $0x8] sm:$0xff]
      %v2445 = vld [vmem:[%s7 + $0x10] sm:$0xff]
      %v2446 = vld [vmem:[%s7 + $0x18] sm:$0xff]
      %v2447 = vld [vmem:[%s7 + $0x20] sm:$0xff]
      %v2448 = vld [vmem:[%s7 + $0x28] sm:$0xff]
      %v2449 = vld [vmem:[%s7 + $0x30] sm:$0xff]
      %v2450 = vld [vmem:[%s7 + $0x38] sm:$0xff]
      %v2451 = vld [vmem:[%s7 + $0x40] sm:$0xff]
      %v2452 = vld [vmem:[%s7 + $0x48] sm:$0xff]
      %v2453 = vld [vmem:[%s7 + $0x50] sm:$0xff]
      %v2454 = vld [vmem:[%s7 + $0x58] sm:$0xff]
      %v2455 = vld [vmem:[%s7 + $0x60] sm:$0xff]
      %v2456 = vld [vmem:[%s7 + $0x68] sm:$0xff]
      %v2457 = vld [vmem:[%s7 + $0x70] sm:$0xff]
      %v2458 = vld [vmem:[%s7 + $0x78] sm:$0xff]
      %v2459 = vld [vmem:[%s7 + $0x80] sm:$0xff]
      %v2460 = vld [vmem:[%s7 + $0x88] sm:$0xff]
      %v2461 = vld [vmem:[%s7 + $0x90] sm:$0xff]
      %v2462 = vld [vmem:[%s7 + $0x98] sm:$0xff]
      %v2463 = vld [vmem:[%s7 + $0xa0] sm:$0xff]
      %v2464 = vld [vmem:[%s7 + $0xa8] sm:$0xff]
      %v2465 = vld [vmem:[%s7 + $0xb0] sm:$0xff]
      %v2466 = vld [vmem:[%s7 + $0xb8] sm:$0xff]
      %v2467 = vld [vmem:[%s7 + $0xc0] sm:$0xff]
      %v2468 = vld [vmem:[%s7 + $0xc8] sm:$0xff]
      %v2469 = vld [vmem:[%s7 + $0xd0] sm:$0xff]
      %v2470 = vld [vmem:[%s7 + $0xd8] sm:$0xff]
      %v2471 = vld [vmem:[%s7 + $0xe0] sm:$0xff]
      %v2472 = vld [vmem:[%s7 + $0xe8] sm:$0xff]
      %v2473 = vld [vmem:[%s7 + $0xf0] sm:$0xff]
      %v2474 = vld [vmem:[%s7 + $0xf8] sm:$0xff]
      %v2475 = vld [vmem:[%s7 + $0x100] sm:$0xff]
      %v2476 = vld [vmem:[%s7 + $0x108] sm:$0xff]
      %v2477 = vld [vmem:[%s7 + $0x110] sm:$0xff]
      %v2478 = vld [vmem:[%s7 + $0x118] sm:$0xff]
      %v2479 = vld [vmem:[%s7 + $0x120] sm:$0xff]
      %v2480 = vld [vmem:[%s7 + $0x128] sm:$0xff]
      %v2481 = vld [vmem:[%s7 + $0x130] sm:$0xff]
      %v2482 = vld [vmem:[%s7 + $0x138] sm:$0xff]
      %v2483 = vld [vmem:[%s7 + $0x140] sm:$0xff]
      %v2484 = vld [vmem:[%s7 + $0x148] sm:$0xff]
      %v2485 = vld [vmem:[%s7 + $0x150] sm:$0xff]
      %v2486 = vld [vmem:[%s7 + $0x158] sm:$0xff]
      %v2487 = vld [vmem:[%s7 + $0x160] sm:$0xff]
      %v2488 = vld [vmem:[%s7 + $0x168] sm:$0xff]
      %v2489 = vld [vmem:[%s7 + $0x170] sm:$0xff]
      %v2490 = vld [vmem:[%s7 + $0x178] sm:$0xff]
      %v2491 = vld [vmem:[%s7 + $0x180] sm:$0xff]
      %v2492 = vld [vmem:[%s7 + $0x188] sm:$0xff]
      %v2493 = vld [vmem:[%s7 + $0x190] sm:$0xff]
      %v2494 = vld [vmem:[%s7 + $0x198] sm:$0xff]
      %v2495 = vld [vmem:[%s7 + $0x1a0] sm:$0xff]
      %v2496 = vld [vmem:[%s7 + $0x1a8] sm:$0xff]
      %v2497 = vld [vmem:[%s7 + $0x1b0] sm:$0xff]
      %v2498 = vld [vmem:[%s7 + $0x1b8] sm:$0xff]
      %v2499 = vld [vmem:[%s7 + $0x1c0] sm:$0xff]
      %v2500 = vld [vmem:[%s7 + $0x1c8] sm:$0xff]
      %v2501 = vld [vmem:[%s7 + $0x1d0] sm:$0xff]
      %v2502 = vld [vmem:[%s7 + $0x1d8] sm:$0xff]
      %v2503 = vld [vmem:[%s7 + $0x1e0] sm:$0xff]
      %v2504 = vld [vmem:[%s7 + $0x1e8] sm:$0xff]
      %v2505 = vld [vmem:[%s7 + $0x1f0] sm:$0xff]
      %v2506 = vld [vmem:[%s7 + $0x1f8] sm:$0xff]
      %v2507 = vld [vmem:[%s7 + $0x200] sm:$0xff]
      %v2508 = vld [vmem:[%s7 + $0x208] sm:$0xff]
      %v2509 = vld [vmem:[%s7 + $0x210] sm:$0xff]
      %v2510 = vld [vmem:[%s7 + $0x218] sm:$0xff]
      %v2511 = vld [vmem:[%s7 + $0x220] sm:$0xff]
      %v2512 = vld [vmem:[%s7 + $0x228] sm:$0xff]
      %v2513 = vld [vmem:[%s7 + $0x230] sm:$0xff]
      %v2514 = vld [vmem:[%s7 + $0x238] sm:$0xff]
      %v2515 = vld [vmem:[%s7 + $0x240] sm:$0xff]
      %v2516 = vld [vmem:[%s7 + $0x248] sm:$0xff]
      %v2517 = vld [vmem:[%s7 + $0x250] sm:$0xff]
      %v2518 = vld [vmem:[%s7 + $0x258] sm:$0xff]
      %v2519 = vld [vmem:[%s7 + $0x260] sm:$0xff]
      %v2520 = vld [vmem:[%s7 + $0x268] sm:$0xff]
      %v2521 = vld [vmem:[%s7 + $0x270] sm:$0xff]
      %v2522 = vld [vmem:[%s7 + $0x278] sm:$0xff]
      %v2523 = vld [vmem:[%s7 + $0x280] sm:$0xff]
      %v2524 = vld [vmem:[%s7 + $0x288] sm:$0xff]
      %v2525 = vld [vmem:[%s7 + $0x290] sm:$0xff]
      %v2526 = vld [vmem:[%s7 + $0x298] sm:$0xff]
      %v2527 = vld [vmem:[%s7 + $0x2a0] sm:$0xff]
      %v2528 = vld [vmem:[%s7 + $0x2a8] sm:$0xff]
      %v2529 = vld [vmem:[%s7 + $0x2b0] sm:$0xff]
      %v2530 = vld [vmem:[%s7 + $0x2b8] sm:$0xff]
      %v2531 = vld [vmem:[%s7 + $0x2c0] sm:$0xff]
      %v2532 = vld [vmem:[%s7 + $0x2c8] sm:$0xff]
      %v2533 = vld [vmem:[%s7 + $0x2d0] sm:$0xff]
      %v2534 = vld [vmem:[%s7 + $0x2d8] sm:$0xff]
      %v2535 = vld [vmem:[%s7 + $0x2e0] sm:$0xff]
      %v2536 = vld [vmem:[%s7 + $0x2e8] sm:$0xff]
      %v2537 = vld [vmem:[%s7 + $0x2f0] sm:$0xff]
      %v2538 = vld [vmem:[%s7 + $0x2f8] sm:$0xff]
      %v2539 = vld [vmem:[%s7 + $0x300] sm:$0xff]
      %v2540 = vld [vmem:[%s7 + $0x308] sm:$0xff]
      %v2541 = vld [vmem:[%s7 + $0x310] sm:$0xff]
      %v2542 = vld [vmem:[%s7 + $0x318] sm:$0xff]
      %v2543 = vld [vmem:[%s7 + $0x320] sm:$0xff]
      %v2544 = vld [vmem:[%s7 + $0x328] sm:$0xff]
      %v2545 = vld [vmem:[%s7 + $0x330] sm:$0xff]
      %v2546 = vld [vmem:[%s7 + $0x338] sm:$0xff]
      %v2547 = vld [vmem:[%s7 + $0x340] sm:$0xff]
      %v2548 = vld [vmem:[%s7 + $0x348] sm:$0xff]
      %v2549 = vld [vmem:[%s7 + $0x350] sm:$0xff]
      %v2550 = vld [vmem:[%s7 + $0x358] sm:$0xff]
      %v2551 = vld [vmem:[%s7 + $0x360] sm:$0xff]
      %v2552 = vld [vmem:[%s7 + $0x368] sm:$0xff]
      %v2553 = vld [vmem:[%s7 + $0x370] sm:$0xff]
      %v2554 = vld [vmem:[%s7 + $0x378] sm:$0xff]
      %v2555 = vld [vmem:[%s7 + $0x380] sm:$0xff]
      %v2556 = vld [vmem:[%s7 + $0x388] sm:$0xff]
      %v2557 = vld [vmem:[%s7 + $0x390] sm:$0xff]
      %v2558 = vld [vmem:[%s7 + $0x398] sm:$0xff]
      %v2559 = vld [vmem:[%s7 + $0x3a0] sm:$0xff]
      %v2560 = vld [vmem:[%s7 + $0x3a8] sm:$0xff]
      %v2561 = vld [vmem:[%s7 + $0x3b0] sm:$0xff]
      %v2562 = vld [vmem:[%s7 + $0x3b8] sm:$0xff]
      %v2563 = vld [vmem:[%s7 + $0x3c0] sm:$0xff]
      %v2564 = vld [vmem:[%s7 + $0x3c8] sm:$0xff]
      %v2565 = vld [vmem:[%s7 + $0x3d0] sm:$0xff]
      %v2566 = vld [vmem:[%s7 + $0x3d8] sm:$0xff]
      %v2567 = vld [vmem:[%s7 + $0x3e0] sm:$0xff]
      %v2568 = vld [vmem:[%s7 + $0x3e8] sm:$0xff]
      %v2569 = vld [vmem:[%s7 + $0x3f0] sm:$0xff]
      %v2570 = vld [vmem:[%s7 + $0x3f8] sm:$0xff]
      %v2571 = vld [vmem:[%s7 + $0x400] sm:$0xff]
      %v2572 = vld [vmem:[%s7 + $0x408] sm:$0xff]
      %v2573 = vld [vmem:[%s7 + $0x410] sm:$0xff]
      %v2574 = vld [vmem:[%s7 + $0x418] sm:$0xff]
      %v2575 = vld [vmem:[%s7 + $0x420] sm:$0xff]
      %v2576 = vld [vmem:[%s7 + $0x428] sm:$0xff]
      %v2577 = vld [vmem:[%s7 + $0x430] sm:$0xff]
      %v2578 = vld [vmem:[%s7 + $0x438] sm:$0xff]
      %v2579 = vld [vmem:[%s7 + $0x440] sm:$0xff]
      %v2580 = vld [vmem:[%s7 + $0x448] sm:$0xff]
      %v2581 = vld [vmem:[%s7 + $0x450] sm:$0xff]
      %v2582 = vld [vmem:[%s7 + $0x458] sm:$0xff]
      %v2583 = vld [vmem:[%s7 + $0x460] sm:$0xff]
      %v2584 = vld [vmem:[%s7 + $0x468] sm:$0xff]
      %v2585 = vld [vmem:[%s7 + $0x470] sm:$0xff]
      %v2586 = vld [vmem:[%s7 + $0x478] sm:$0xff]
      %v2587 = vld [vmem:[%s7 + $0x480] sm:$0xff]
      %v2588 = vld [vmem:[%s7 + $0x488] sm:$0xff]
      %v2589 = vld [vmem:[%s7 + $0x490] sm:$0xff]
      %v2590 = vld [vmem:[%s7 + $0x498] sm:$0xff]
      %v2591 = vld [vmem:[%s7 + $0x4a0] sm:$0xff]
      %v2592 = vld [vmem:[%s7 + $0x4a8] sm:$0xff]
      %v2593 = vld [vmem:[%s7 + $0x4b0] sm:$0xff]
      %v2594 = vld [vmem:[%s7 + $0x4b8] sm:$0xff]
      %v2595 = vld [vmem:[%s7 + $0x4c0] sm:$0xff]
      %v2596 = vld [vmem:[%s7 + $0x4c8] sm:$0xff]
      %v2597 = vld [vmem:[%s7 + $0x4d0] sm:$0xff]
      %v2598 = vld [vmem:[%s7 + $0x4d8] sm:$0xff]
      %v2599 = vld [vmem:[%s7 + $0x4e0] sm:$0xff]
      %v2600 = vld [vmem:[%s7 + $0x4e8] sm:$0xff]
      %v2601 = vld [vmem:[%s7 + $0x4f0] sm:$0xff]
      %v2602 = vld [vmem:[%s7 + $0x4f8] sm:$0xff]
      %v2603 = vld [vmem:[%s7 + $0x500] sm:$0xff]
      %v2604 = vld [vmem:[%s7 + $0x508] sm:$0xff]
      %v2605 = vld [vmem:[%s7 + $0x510] sm:$0xff]
      %v2606 = vld [vmem:[%s7 + $0x518] sm:$0xff]
      %v2607 = vld [vmem:[%s7 + $0x520] sm:$0xff]
      %v2608 = vld [vmem:[%s7 + $0x528] sm:$0xff]
      %v2609 = vld [vmem:[%s7 + $0x530] sm:$0xff]
      %v2610 = vld [vmem:[%s7 + $0x538] sm:$0xff]
      %v2611 = vld [vmem:[%s7 + $0x540] sm:$0xff]
      %v2612 = vld [vmem:[%s7 + $0x548] sm:$0xff]
      %v2613 = vld [vmem:[%s7 + $0x550] sm:$0xff]
      %v2614 = vld [vmem:[%s7 + $0x558] sm:$0xff]
      %v2615 = vld [vmem:[%s7 + $0x560] sm:$0xff]
      %v2616 = vld [vmem:[%s7 + $0x568] sm:$0xff]
      %v2617 = vld [vmem:[%s7 + $0x570] sm:$0xff]
      %v2618 = vld [vmem:[%s7 + $0x578] sm:$0xff]
      %v2619 = vld [vmem:[%s7 + $0x580] sm:$0xff]
      %v2620 = vld [vmem:[%s7 + $0x588] sm:$0xff]
      %v2621 = vld [vmem:[%s7 + $0x590] sm:$0xff]
      %v2622 = vld [vmem:[%s7 + $0x598] sm:$0xff]
      %v2623 = vld [vmem:[%s7 + $0x5a0] sm:$0xff]
      %v2624 = vld [vmem:[%s7 + $0x5a8] sm:$0xff]
      %v2625 = vld [vmem:[%s7 + $0x5b0] sm:$0xff]
      %v2626 = vld [vmem:[%s7 + $0x5b8] sm:$0xff]
      %v2627 = vld [vmem:[%s7 + $0x5c0] sm:$0xff]
      %v2628 = vld [vmem:[%s7 + $0x5c8] sm:$0xff]
      %v2629 = vld [vmem:[%s7 + $0x5d0] sm:$0xff]
      %v2630 = vld [vmem:[%s7 + $0x5d8] sm:$0xff]
      %v2631 = vld [vmem:[%s7 + $0x5e0] sm:$0xff]
      %v2632 = vld [vmem:[%s7 + $0x5e8] sm:$0xff]
      %v2633 = vld [vmem:[%s7 + $0x5f0] sm:$0xff]
      %v2634 = vld [vmem:[%s7 + $0x5f8] sm:$0xff]
      %v2635 = vld [vmem:[%s7 + $0x600] sm:$0xff]
      %v2636 = vld [vmem:[%s7 + $0x608] sm:$0xff]
      %v2637 = vld [vmem:[%s7 + $0x610] sm:$0xff]
      %v2638 = vld [vmem:[%s7 + $0x618] sm:$0xff]
      %v2639 = vld [vmem:[%s7 + $0x620] sm:$0xff]
      %v2640 = vld [vmem:[%s7 + $0x628] sm:$0xff]
      %v2641 = vld [vmem:[%s7 + $0x630] sm:$0xff]
      %v2642 = vld [vmem:[%s7 + $0x638] sm:$0xff]
      %v2643 = vld [vmem:[%s7 + $0x640] sm:$0xff]
      %v2644 = vld [vmem:[%s7 + $0x648] sm:$0xff]
      %v2645 = vld [vmem:[%s7 + $0x650] sm:$0xff]
      %v2646 = vld [vmem:[%s7 + $0x658] sm:$0xff]
      %v2647 = vld [vmem:[%s7 + $0x660] sm:$0xff]
      %v2648 = vld [vmem:[%s7 + $0x668] sm:$0xff]
      %v2649 = vld [vmem:[%s7 + $0x670] sm:$0xff]
      %v2650 = vld [vmem:[%s7 + $0x678] sm:$0xff]
      %v2651 = vld [vmem:[%s7 + $0x680] sm:$0xff]
      %v2652 = vld [vmem:[%s7 + $0x688] sm:$0xff]
      %v2653 = vld [vmem:[%s7 + $0x690] sm:$0xff]
      %v2654 = vld [vmem:[%s7 + $0x698] sm:$0xff]
      %v2655 = vld [vmem:[%s7 + $0x6a0] sm:$0xff]
      %v2656 = vld [vmem:[%s7 + $0x6a8] sm:$0xff]
      %v2657 = vld [vmem:[%s7 + $0x6b0] sm:$0xff]
      %v2658 = vld [vmem:[%s7 + $0x6b8] sm:$0xff]
      %v2659 = vld [vmem:[%s7 + $0x6c0] sm:$0xff]
      %v2660 = vld [vmem:[%s7 + $0x6c8] sm:$0xff]
      %v2661 = vld [vmem:[%s7 + $0x6d0] sm:$0xff]
      %v2662 = vld [vmem:[%s7 + $0x6d8] sm:$0xff]
      %v2663 = vld [vmem:[%s7 + $0x6e0] sm:$0xff]
      %v2664 = vld [vmem:[%s7 + $0x6e8] sm:$0xff]
      %v2665 = vld [vmem:[%s7 + $0x6f0] sm:$0xff]
      %v2666 = vld [vmem:[%s7 + $0x6f8] sm:$0xff]
      %v2667 = vld [vmem:[%s7 + $0x700] sm:$0xff]
      %v2668 = vld [vmem:[%s7 + $0x708] sm:$0xff]
      %v2669 = vld [vmem:[%s7 + $0x710] sm:$0xff]
      %v2670 = vld [vmem:[%s7 + $0x718] sm:$0xff]
      %v2671 = vld [vmem:[%s7 + $0x720] sm:$0xff]
      %v2672 = vld [vmem:[%s7 + $0x728] sm:$0xff]
      %v2673 = vld [vmem:[%s7 + $0x730] sm:$0xff]
      %v2674 = vld [vmem:[%s7 + $0x738] sm:$0xff]
      %v2675 = vld [vmem:[%s7 + $0x740] sm:$0xff]
      %v2676 = vld [vmem:[%s7 + $0x748] sm:$0xff]
      %v2677 = vld [vmem:[%s7 + $0x750] sm:$0xff]
      %v2678 = vld [vmem:[%s7 + $0x758] sm:$0xff]
      %v2679 = vld [vmem:[%s7 + $0x760] sm:$0xff]
      %v2680 = vld [vmem:[%s7 + $0x768] sm:$0xff]
      %v2681 = vld [vmem:[%s7 + $0x770] sm:$0xff]
      %v2682 = vld [vmem:[%s7 + $0x778] sm:$0xff]
      %vm2683 = vcmask 785408
      %v2685 = vsel %vm2683, %v1088, 0
      %2687 = vmatpush.msra.mxu0 %v2503
      %2688 = vmatpush.msra.mxu0 %v2499
      %2689 = vmatpush.msra.mxu0 %v2495
      %2690 = vmatpush.msra.mxu0 %v2491
      %2691 = vmatpush.msra.mxu0 %v2487
      %2692 = vmatpush.msra.mxu0 %v2483
      %2693 = vmatpush.msra.mxu0 %v2479
      %2694 = vmatpush.msra.mxu0 %v2475
      %2695 = vmatpush.msra.mxu0 %v2471
      %2696 = vmatpush.msra.mxu0 %v2467
      %2697 = vmatpush.msra.mxu0 %v2463
      %2698 = vmatpush.msra.mxu0 %v2459
      %2699 = vmatpush.msra.mxu0 %v2455
      %2700 = vmatpush.msra.mxu0 %v2451
      %2701 = vmatpush.msra.mxu0 %v2447
      %2702 = vmatpush.msra.mxu0 %v2443
      %2703 = vmatmul.f32.gmra.mxu0 %v1085
      %v2704 = vpop.f32.mrf.mxu0
      %v2705 = vadd.f32 0.0, %v2704
      %2706 = vdwg.mxu0
      %2707 = vmatpush.msra.mxu0 %v2567
      %2708 = vmatpush.msra.mxu0 %v2563
      %2709 = vmatpush.msra.mxu0 %v2559
      %2710 = vmatpush.msra.mxu0 %v2555
      %2711 = vmatpush.msra.mxu0 %v2551
      %2712 = vmatpush.msra.mxu0 %v2547
      %2713 = vmatpush.msra.mxu0 %v2543
      %2714 = vmatpush.msra.mxu0 %v2539
      %2715 = vmatpush.msra.mxu0 %v2535
      %2716 = vmatpush.msra.mxu0 %v2531
      %2717 = vmatpush.msra.mxu0 %v2527
      %2718 = vmatpush.msra.mxu0 %v2523
      %2719 = vmatpush.msra.mxu0 %v2519
      %2720 = vmatpush.msra.mxu0 %v2515
      %2721 = vmatpush.msra.mxu0 %v2511
      %2722 = vmatpush.msra.mxu0 %v2507
      %2723 = vmatmul.f32.gmra.mxu0 %v1086
      %v2724 = vpop.f32.mrf.mxu0
      %v2725 = vadd.f32 %v2705, %v2724
      %2726 = vdwg.mxu0
      %2727 = vmatpush.msra.mxu0 %v2631
      %2728 = vmatpush.msra.mxu0 %v2627
      %2729 = vmatpush.msra.mxu0 %v2623
      %2730 = vmatpush.msra.mxu0 %v2619
      %2731 = vmatpush.msra.mxu0 %v2615
      %2732 = vmatpush.msra.mxu0 %v2611
      %2733 = vmatpush.msra.mxu0 %v2607
      %2734 = vmatpush.msra.mxu0 %v2603
      %2735 = vmatpush.msra.mxu0 %v2599
      %2736 = vmatpush.msra.mxu0 %v2595
      %2737 = vmatpush.msra.mxu0 %v2591
      %2738 = vmatpush.msra.mxu0 %v2587
      %2739 = vmatpush.msra.mxu0 %v2583
      %2740 = vmatpush.msra.mxu0 %v2579
      %2741 = vmatpush.msra.mxu0 %v2575
      %2742 = vmatpush.msra.mxu0 %v2571
      %2743 = vmatmul.f32.gmra.mxu0 %v1087
      %v2744 = vpop.f32.mrf.mxu0
      %v2745 = vadd.f32 %v2725, %v2744
      %2746 = vdwg.mxu0
      %2747 = vmatpush.msra.mxu0 0.0
      %2748 = vmatpush.msra.mxu0 0.0
      %2749 = vmatpush.msra.mxu0 0.0
      %2750 = vmatpush.msra.mxu0 0.0
      %2751 = vmatpush.msra.mxu0 %v2679
      %2752 = vmatpush.msra.mxu0 %v2675
      %2753 = vmatpush.msra.mxu0 %v2671
      %2754 = vmatpush.msra.mxu0 %v2667
      %2755 = vmatpush.msra.mxu0 %v2663
      %2756 = vmatpush.msra.mxu0 %v2659
      %2757 = vmatpush.msra.mxu0 %v2655
      %2758 = vmatpush.msra.mxu0 %v2651
      %2759 = vmatpush.msra.mxu0 %v2647
      %2760 = vmatpush.msra.mxu0 %v2643
      %2761 = vmatpush.msra.mxu0 %v2639
      %2762 = vmatpush.msra.mxu0 %v2635
      %2763 = vmatmul.f32.gmra.mxu0 %v2685
      %v2764 = vpop.f32.mrf.mxu0
      %v2765 = vadd.f32 %v2745, %v2764
      %2766 = vdwg.mxu0
      %2767 = vmatpush.msra.mxu0 %v2504
      %2768 = vmatpush.msra.mxu0 %v2500
      %2769 = vmatpush.msra.mxu0 %v2496
      %2770 = vmatpush.msra.mxu0 %v2492
      %2771 = vmatpush.msra.mxu0 %v2488
      %2772 = vmatpush.msra.mxu0 %v2484
      %2773 = vmatpush.msra.mxu0 %v2480
      %2774 = vmatpush.msra.mxu0 %v2476
      %2775 = vmatpush.msra.mxu0 %v2472
      %2776 = vmatpush.msra.mxu0 %v2468
      %2777 = vmatpush.msra.mxu0 %v2464
      %2778 = vmatpush.msra.mxu0 %v2460
      %2779 = vmatpush.msra.mxu0 %v2456
      %2780 = vmatpush.msra.mxu0 %v2452
      %2781 = vmatpush.msra.mxu0 %v2448
      %2782 = vmatpush.msra.mxu0 %v2444
      %2783 = vmatmul.f32.gmra.mxu0 %v1085
      %v2784 = vpop.f32.mrf.mxu0
      %v2785 = vadd.f32 0.0, %v2784
      %2786 = vdwg.mxu0
      %2787 = vmatpush.msra.mxu0 %v2568
      %2788 = vmatpush.msra.mxu0 %v2564
      %2789 = vmatpush.msra.mxu0 %v2560
      %2790 = vmatpush.msra.mxu0 %v2556
      %2791 = vmatpush.msra.mxu0 %v2552
      %2792 = vmatpush.msra.mxu0 %v2548
      %2793 = vmatpush.msra.mxu0 %v2544
      %2794 = vmatpush.msra.mxu0 %v2540
      %2795 = vmatpush.msra.mxu0 %v2536
      %2796 = vmatpush.msra.mxu0 %v2532
      %2797 = vmatpush.msra.mxu0 %v2528
      %2798 = vmatpush.msra.mxu0 %v2524
      %2799 = vmatpush.msra.mxu0 %v2520
      %2800 = vmatpush.msra.mxu0 %v2516
      %2801 = vmatpush.msra.mxu0 %v2512
      %2802 = vmatpush.msra.mxu0 %v2508
      %2803 = vmatmul.f32.gmra.mxu0 %v1086
      %v2804 = vpop.f32.mrf.mxu0
      %v2805 = vadd.f32 %v2785, %v2804
      %2806 = vdwg.mxu0
      %2807 = vmatpush.msra.mxu0 %v2632
      %2808 = vmatpush.msra.mxu0 %v2628
      %2809 = vmatpush.msra.mxu0 %v2624
      %2810 = vmatpush.msra.mxu0 %v2620
      %2811 = vmatpush.msra.mxu0 %v2616
      %2812 = vmatpush.msra.mxu0 %v2612
      %2813 = vmatpush.msra.mxu0 %v2608
      %2814 = vmatpush.msra.mxu0 %v2604
      %2815 = vmatpush.msra.mxu0 %v2600
      %2816 = vmatpush.msra.mxu0 %v2596
      %2817 = vmatpush.msra.mxu0 %v2592
      %2818 = vmatpush.msra.mxu0 %v2588
      %2819 = vmatpush.msra.mxu0 %v2584
      %2820 = vmatpush.msra.mxu0 %v2580
      %2821 = vmatpush.msra.mxu0 %v2576
      %2822 = vmatpush.msra.mxu0 %v2572
      %2823 = vmatmul.f32.gmra.mxu0 %v1087
      %v2824 = vpop.f32.mrf.mxu0
      %v2825 = vadd.f32 %v2805, %v2824
      %2826 = vdwg.mxu0
      %2827 = vmatpush.msra.mxu0 0.0
      %2828 = vmatpush.msra.mxu0 0.0
      %2829 = vmatpush.msra.mxu0 0.0
      %2830 = vmatpush.msra.mxu0 0.0
      %2831 = vmatpush.msra.mxu0 %v2680
      %2832 = vmatpush.msra.mxu0 %v2676
      %2833 = vmatpush.msra.mxu0 %v2672
      %2834 = vmatpush.msra.mxu0 %v2668
      %2835 = vmatpush.msra.mxu0 %v2664
      %2836 = vmatpush.msra.mxu0 %v2660
      %2837 = vmatpush.msra.mxu0 %v2656
      %2838 = vmatpush.msra.mxu0 %v2652
      %2839 = vmatpush.msra.mxu0 %v2648
      %2840 = vmatpush.msra.mxu0 %v2644
      %2841 = vmatpush.msra.mxu0 %v2640
      %2842 = vmatpush.msra.mxu0 %v2636
      %2843 = vmatmul.f32.gmra.mxu0 %v2685
      %v2844 = vpop.f32.mrf.mxu0
      %v2845 = vadd.f32 %v2825, %v2844
      %2846 = vdwg.mxu0
      %2847 = vmatpush.msra.mxu0 %v2505
      %2848 = vmatpush.msra.mxu0 %v2501
      %2849 = vmatpush.msra.mxu0 %v2497
      %2850 = vmatpush.msra.mxu0 %v2493
      %2851 = vmatpush.msra.mxu0 %v2489
      %2852 = vmatpush.msra.mxu0 %v2485
      %2853 = vmatpush.msra.mxu0 %v2481
      %2854 = vmatpush.msra.mxu0 %v2477
      %2855 = vmatpush.msra.mxu0 %v2473
      %2856 = vmatpush.msra.mxu0 %v2469
      %2857 = vmatpush.msra.mxu0 %v2465
      %2858 = vmatpush.msra.mxu0 %v2461
      %2859 = vmatpush.msra.mxu0 %v2457
      %2860 = vmatpush.msra.mxu0 %v2453
      %2861 = vmatpush.msra.mxu0 %v2449
      %2862 = vmatpush.msra.mxu0 %v2445
      %2863 = vmatmul.f32.gmra.mxu0 %v1085
      %v2864 = vpop.f32.mrf.mxu0
      %v2865 = vadd.f32 0.0, %v2864
      %2866 = vdwg.mxu0
      %2867 = vmatpush.msra.mxu0 %v2569
      %2868 = vmatpush.msra.mxu0 %v2565
      %2869 = vmatpush.msra.mxu0 %v2561
      %2870 = vmatpush.msra.mxu0 %v2557
      %2871 = vmatpush.msra.mxu0 %v2553
      %2872 = vmatpush.msra.mxu0 %v2549
      %2873 = vmatpush.msra.mxu0 %v2545
      %2874 = vmatpush.msra.mxu0 %v2541
      %2875 = vmatpush.msra.mxu0 %v2537
      %2876 = vmatpush.msra.mxu0 %v2533
      %2877 = vmatpush.msra.mxu0 %v2529
      %2878 = vmatpush.msra.mxu0 %v2525
      %2879 = vmatpush.msra.mxu0 %v2521
      %2880 = vmatpush.msra.mxu0 %v2517
      %2881 = vmatpush.msra.mxu0 %v2513
      %2882 = vmatpush.msra.mxu0 %v2509
      %2883 = vmatmul.f32.gmra.mxu0 %v1086
      %v2884 = vpop.f32.mrf.mxu0
      %v2885 = vadd.f32 %v2865, %v2884
      %2886 = vdwg.mxu0
      %2887 = vmatpush.msra.mxu0 %v2633
      %2888 = vmatpush.msra.mxu0 %v2629
      %2889 = vmatpush.msra.mxu0 %v2625
      %2890 = vmatpush.msra.mxu0 %v2621
      %2891 = vmatpush.msra.mxu0 %v2617
      %2892 = vmatpush.msra.mxu0 %v2613
      %2893 = vmatpush.msra.mxu0 %v2609
      %2894 = vmatpush.msra.mxu0 %v2605
      %2895 = vmatpush.msra.mxu0 %v2601
      %2896 = vmatpush.msra.mxu0 %v2597
      %2897 = vmatpush.msra.mxu0 %v2593
      %2898 = vmatpush.msra.mxu0 %v2589
      %2899 = vmatpush.msra.mxu0 %v2585
      %2900 = vmatpush.msra.mxu0 %v2581
      %2901 = vmatpush.msra.mxu0 %v2577
      %2902 = vmatpush.msra.mxu0 %v2573
      %2903 = vmatmul.f32.gmra.mxu0 %v1087
      %v2904 = vpop.f32.mrf.mxu0
      %v2905 = vadd.f32 %v2885, %v2904
      %2906 = vdwg.mxu0
      %2907 = vmatpush.msra.mxu0 0.0
      %2908 = vmatpush.msra.mxu0 0.0
      %2909 = vmatpush.msra.mxu0 0.0
      %2910 = vmatpush.msra.mxu0 0.0
      %2911 = vmatpush.msra.mxu0 %v2681
      %2912 = vmatpush.msra.mxu0 %v2677
      %2913 = vmatpush.msra.mxu0 %v2673
      %2914 = vmatpush.msra.mxu0 %v2669
      %2915 = vmatpush.msra.mxu0 %v2665
      %2916 = vmatpush.msra.mxu0 %v2661
      %2917 = vmatpush.msra.mxu0 %v2657
      %2918 = vmatpush.msra.mxu0 %v2653
      %2919 = vmatpush.msra.mxu0 %v2649
      %2920 = vmatpush.msra.mxu0 %v2645
      %2921 = vmatpush.msra.mxu0 %v2641
      %2922 = vmatpush.msra.mxu0 %v2637
      %2923 = vmatmul.f32.gmra.mxu0 %v2685
      %v2924 = vpop.f32.mrf.mxu0
      %v2925 = vadd.f32 %v2905, %v2924
      %2926 = vdwg.mxu0
      %2927 = vmatpush.msra.mxu0 %v2506
      %2928 = vmatpush.msra.mxu0 %v2502
      %2929 = vmatpush.msra.mxu0 %v2498
      %2930 = vmatpush.msra.mxu0 %v2494
      %2931 = vmatpush.msra.mxu0 %v2490
      %2932 = vmatpush.msra.mxu0 %v2486
      %2933 = vmatpush.msra.mxu0 %v2482
      %2934 = vmatpush.msra.mxu0 %v2478
      %2935 = vmatpush.msra.mxu0 %v2474
      %2936 = vmatpush.msra.mxu0 %v2470
      %2937 = vmatpush.msra.mxu0 %v2466
      %2938 = vmatpush.msra.mxu0 %v2462
      %2939 = vmatpush.msra.mxu0 %v2458
      %2940 = vmatpush.msra.mxu0 %v2454
      %2941 = vmatpush.msra.mxu0 %v2450
      %2942 = vmatpush.msra.mxu0 %v2446
      %2943 = vmatmul.f32.gmra.mxu0 %v1085
      %v2944 = vpop.f32.mrf.mxu0
      %v2945 = vadd.f32 0.0, %v2944
      %2946 = vdwg.mxu0
      %2947 = vmatpush.msra.mxu0 %v2570
      %2948 = vmatpush.msra.mxu0 %v2566
      %2949 = vmatpush.msra.mxu0 %v2562
      %2950 = vmatpush.msra.mxu0 %v2558
      %2951 = vmatpush.msra.mxu0 %v2554
      %2952 = vmatpush.msra.mxu0 %v2550
      %2953 = vmatpush.msra.mxu0 %v2546
      %2954 = vmatpush.msra.mxu0 %v2542
      %2955 = vmatpush.msra.mxu0 %v2538
      %2956 = vmatpush.msra.mxu0 %v2534
      %2957 = vmatpush.msra.mxu0 %v2530
      %2958 = vmatpush.msra.mxu0 %v2526
      %2959 = vmatpush.msra.mxu0 %v2522
      %2960 = vmatpush.msra.mxu0 %v2518
      %2961 = vmatpush.msra.mxu0 %v2514
      %2962 = vmatpush.msra.mxu0 %v2510
      %2963 = vmatmul.f32.gmra.mxu0 %v1086
      %v2964 = vpop.f32.mrf.mxu0
      %v2965 = vadd.f32 %v2945, %v2964
      %2966 = vdwg.mxu0
      %2967 = vmatpush.msra.mxu0 %v2634
      %2968 = vmatpush.msra.mxu0 %v2630
      %2969 = vmatpush.msra.mxu0 %v2626
      %2970 = vmatpush.msra.mxu0 %v2622
      %2971 = vmatpush.msra.mxu0 %v2618
      %2972 = vmatpush.msra.mxu0 %v2614
      %2973 = vmatpush.msra.mxu0 %v2610
      %2974 = vmatpush.msra.mxu0 %v2606
      %2975 = vmatpush.msra.mxu0 %v2602
      %2976 = vmatpush.msra.mxu0 %v2598
      %2977 = vmatpush.msra.mxu0 %v2594
      %2978 = vmatpush.msra.mxu0 %v2590
      %2979 = vmatpush.msra.mxu0 %v2586
      %2980 = vmatpush.msra.mxu0 %v2582
      %2981 = vmatpush.msra.mxu0 %v2578
      %2982 = vmatpush.msra.mxu0 %v2574
      %2983 = vmatmul.f32.gmra.mxu0 %v1087
      %v2984 = vpop.f32.mrf.mxu0
      %v2985 = vadd.f32 %v2965, %v2984
      %2986 = vdwg.mxu0
      %2987 = vmatpush.msra.mxu0 0.0
      %2988 = vmatpush.msra.mxu0 0.0
      %2989 = vmatpush.msra.mxu0 0.0
      %2990 = vmatpush.msra.mxu0 0.0
      %2991 = vmatpush.msra.mxu0 %v2682
      %2992 = vmatpush.msra.mxu0 %v2678
      %2993 = vmatpush.msra.mxu0 %v2674
      %2994 = vmatpush.msra.mxu0 %v2670
      %2995 = vmatpush.msra.mxu0 %v2666
      %2996 = vmatpush.msra.mxu0 %v2662
      %2997 = vmatpush.msra.mxu0 %v2658
      %2998 = vmatpush.msra.mxu0 %v2654
      %2999 = vmatpush.msra.mxu0 %v2650
      %3000 = vmatpush.msra.mxu0 %v2646
      %3001 = vmatpush.msra.mxu0 %v2642
      %3002 = vmatpush.msra.mxu0 %v2638
      %3003 = vmatmul.f32.gmra.mxu0 %v2685
      %v3004 = vpop.f32.mrf.mxu0
      %v3005 = vadd.f32 %v2985, %v3004
      %3006 = vdwg.mxu0
      %v3007 = vmul.f32 %v2765, 0.1
      %v3008 = vmul.f32 %v2845, 0.1
      %v3009 = vmul.f32 %v2925, 0.1
      %v3010 = vmul.f32 %v3005, 0.1
      %3012 = vset.pattern.permute.xlu0 0
      %3013 = vperm.xlu0 %3012, %v1090
      %v3014 = vpop.permute.xlu0 %3013
      %v3016 = vadd.f32 %v3014, %v3007
      %v3017 = vadd.f32 %v3014, %v3008
      %v3018 = vadd.f32 %v3014, %v3009
      %v3019 = vadd.f32 %v3014, %v3010
      %v3020 = vmul.f32 %v3016, %v2439
      %v3021 = vmul.f32 %v3017, %v2440
      %v3022 = vmul.f32 %v3018, %v2441
      %v3023 = vmul.f32 %v3019, %v2442
      %v3024 = vmul.f32 %v1089, 0.1
      %3026 = vset.pattern.permute.xlu0 0
      %3027 = vperm.xlu0 %3026, %v3024
      %v3028 = vpop.permute.xlu0 %3027
      %v3030 = vmul.f32 %v3020, %v3028
      %v3031 = vmul.f32 %v3021, %v3028
      %v3032 = vmul.f32 %v3022, %v3028
      %v3033 = vmul.f32 %v3023, %v3028
      %v3035 = vsel %vm2683, %v3033, 0
      %3037 = vmatpush.msra.mxu0 %v2503
      %3038 = vmatpush.msra.mxu0 %v2499
      %3039 = vmatpush.msra.mxu0 %v2495
      %3040 = vmatpush.msra.mxu0 %v2491
      %3041 = vmatpush.msra.mxu0 %v2487
      %3042 = vmatpush.msra.mxu0 %v2483
      %3043 = vmatpush.msra.mxu0 %v2479
      %3044 = vmatpush.msra.mxu0 %v2475
      %3045 = vmatpush.msra.mxu0 %v2471
      %3046 = vmatpush.msra.mxu0 %v2467
      %3047 = vmatpush.msra.mxu0 %v2463
      %3048 = vmatpush.msra.mxu0 %v2459
      %3049 = vmatpush.msra.mxu0 %v2455
      %3050 = vmatpush.msra.mxu0 %v2451
      %3051 = vmatpush.msra.mxu0 %v2447
      %3052 = vmatpush.msra.mxu0 %v2443
      %3053 = vmatmul.f32.gmra.mxu0 %v3030
      %v3054 = vpop.f32.mrf.mxu0
      %v3055 = vadd.f32 0.0, %v3054
      %3056 = vdwg.mxu0
      %3057 = vmatpush.msra.mxu0 %v2567
      %3058 = vmatpush.msra.mxu0 %v2563
      %3059 = vmatpush.msra.mxu0 %v2559
      %3060 = vmatpush.msra.mxu0 %v2555
      %3061 = vmatpush.msra.mxu0 %v2551
      %3062 = vmatpush.msra.mxu0 %v2547
      %3063 = vmatpush.msra.mxu0 %v2543
      %3064 = vmatpush.msra.mxu0 %v2539
      %3065 = vmatpush.msra.mxu0 %v2535
      %3066 = vmatpush.msra.mxu0 %v2531
      %3067 = vmatpush.msra.mxu0 %v2527
      %3068 = vmatpush.msra.mxu0 %v2523
      %3069 = vmatpush.msra.mxu0 %v2519
      %3070 = vmatpush.msra.mxu0 %v2515
      %3071 = vmatpush.msra.mxu0 %v2511
      %3072 = vmatpush.msra.mxu0 %v2507
      %3073 = vmatmul.f32.gmra.mxu0 %v3031
      %v3074 = vpop.f32.mrf.mxu0
      %v3075 = vadd.f32 %v3055, %v3074
      %3076 = vdwg.mxu0
      %3077 = vmatpush.msra.mxu0 %v2631
      %3078 = vmatpush.msra.mxu0 %v2627
      %3079 = vmatpush.msra.mxu0 %v2623
      %3080 = vmatpush.msra.mxu0 %v2619
      %3081 = vmatpush.msra.mxu0 %v2615
      %3082 = vmatpush.msra.mxu0 %v2611
      %3083 = vmatpush.msra.mxu0 %v2607
      %3084 = vmatpush.msra.mxu0 %v2603
      %3085 = vmatpush.msra.mxu0 %v2599
      %3086 = vmatpush.msra.mxu0 %v2595
      %3087 = vmatpush.msra.mxu0 %v2591
      %3088 = vmatpush.msra.mxu0 %v2587
      %3089 = vmatpush.msra.mxu0 %v2583
      %3090 = vmatpush.msra.mxu0 %v2579
      %3091 = vmatpush.msra.mxu0 %v2575
      %3092 = vmatpush.msra.mxu0 %v2571
      %3093 = vmatmul.f32.gmra.mxu0 %v3032
      %v3094 = vpop.f32.mrf.mxu0
      %v3095 = vadd.f32 %v3075, %v3094
      %3096 = vdwg.mxu0
      %3097 = vmatpush.msra.mxu0 0.0
      %3098 = vmatpush.msra.mxu0 0.0
      %3099 = vmatpush.msra.mxu0 0.0
      %3100 = vmatpush.msra.mxu0 0.0
      %3101 = vmatpush.msra.mxu0 %v2679
      %3102 = vmatpush.msra.mxu0 %v2675
      %3103 = vmatpush.msra.mxu0 %v2671
      %3104 = vmatpush.msra.mxu0 %v2667
      %3105 = vmatpush.msra.mxu0 %v2663
      %3106 = vmatpush.msra.mxu0 %v2659
      %3107 = vmatpush.msra.mxu0 %v2655
      %3108 = vmatpush.msra.mxu0 %v2651
      %3109 = vmatpush.msra.mxu0 %v2647
      %3110 = vmatpush.msra.mxu0 %v2643
      %3111 = vmatpush.msra.mxu0 %v2639
      %3112 = vmatpush.msra.mxu0 %v2635
      %3113 = vmatmul.f32.gmra.mxu0 %v3035
      %v3114 = vpop.f32.mrf.mxu0
      %v3115 = vadd.f32 %v3095, %v3114
      %3116 = vdwg.mxu0
      %3117 = vmatpush.msra.mxu0 %v2504
      %3118 = vmatpush.msra.mxu0 %v2500
      %3119 = vmatpush.msra.mxu0 %v2496
      %3120 = vmatpush.msra.mxu0 %v2492
      %3121 = vmatpush.msra.mxu0 %v2488
      %3122 = vmatpush.msra.mxu0 %v2484
      %3123 = vmatpush.msra.mxu0 %v2480
      %3124 = vmatpush.msra.mxu0 %v2476
      %3125 = vmatpush.msra.mxu0 %v2472
      %3126 = vmatpush.msra.mxu0 %v2468
      %3127 = vmatpush.msra.mxu0 %v2464
      %3128 = vmatpush.msra.mxu0 %v2460
      %3129 = vmatpush.msra.mxu0 %v2456
      %3130 = vmatpush.msra.mxu0 %v2452
      %3131 = vmatpush.msra.mxu0 %v2448
      %3132 = vmatpush.msra.mxu0 %v2444
      %3133 = vmatmul.f32.gmra.mxu0 %v3030
      %v3134 = vpop.f32.mrf.mxu0
      %v3135 = vadd.f32 0.0, %v3134
      %3136 = vdwg.mxu0
      %3137 = vmatpush.msra.mxu0 %v2568
      %3138 = vmatpush.msra.mxu0 %v2564
      %3139 = vmatpush.msra.mxu0 %v2560
      %3140 = vmatpush.msra.mxu0 %v2556
      %3141 = vmatpush.msra.mxu0 %v2552
      %3142 = vmatpush.msra.mxu0 %v2548
      %3143 = vmatpush.msra.mxu0 %v2544
      %3144 = vmatpush.msra.mxu0 %v2540
      %3145 = vmatpush.msra.mxu0 %v2536
      %3146 = vmatpush.msra.mxu0 %v2532
      %3147 = vmatpush.msra.mxu0 %v2528
      %3148 = vmatpush.msra.mxu0 %v2524
      %3149 = vmatpush.msra.mxu0 %v2520
      %3150 = vmatpush.msra.mxu0 %v2516
      %3151 = vmatpush.msra.mxu0 %v2512
      %3152 = vmatpush.msra.mxu0 %v2508
      %3153 = vmatmul.f32.gmra.mxu0 %v3031
      %v3154 = vpop.f32.mrf.mxu0
      %v3155 = vadd.f32 %v3135, %v3154
      %3156 = vdwg.mxu0
      %3157 = vmatpush.msra.mxu0 %v2632
      %3158 = vmatpush.msra.mxu0 %v2628
      %3159 = vmatpush.msra.mxu0 %v2624
      %3160 = vmatpush.msra.mxu0 %v2620
      %3161 = vmatpush.msra.mxu0 %v2616
      %3162 = vmatpush.msra.mxu0 %v2612
      %3163 = vmatpush.msra.mxu0 %v2608
      %3164 = vmatpush.msra.mxu0 %v2604
      %3165 = vmatpush.msra.mxu0 %v2600
      %3166 = vmatpush.msra.mxu0 %v2596
      %3167 = vmatpush.msra.mxu0 %v2592
      %3168 = vmatpush.msra.mxu0 %v2588
      %3169 = vmatpush.msra.mxu0 %v2584
      %3170 = vmatpush.msra.mxu0 %v2580
      %3171 = vmatpush.msra.mxu0 %v2576
      %3172 = vmatpush.msra.mxu0 %v2572
      %3173 = vmatmul.f32.gmra.mxu0 %v3032
      %v3174 = vpop.f32.mrf.mxu0
      %v3175 = vadd.f32 %v3155, %v3174
      %3176 = vdwg.mxu0
      %3177 = vmatpush.msra.mxu0 0.0
      %3178 = vmatpush.msra.mxu0 0.0
      %3179 = vmatpush.msra.mxu0 0.0
      %3180 = vmatpush.msra.mxu0 0.0
      %3181 = vmatpush.msra.mxu0 %v2680
      %3182 = vmatpush.msra.mxu0 %v2676
      %3183 = vmatpush.msra.mxu0 %v2672
      %3184 = vmatpush.msra.mxu0 %v2668
      %3185 = vmatpush.msra.mxu0 %v2664
      %3186 = vmatpush.msra.mxu0 %v2660
      %3187 = vmatpush.msra.mxu0 %v2656
      %3188 = vmatpush.msra.mxu0 %v2652
      %3189 = vmatpush.msra.mxu0 %v2648
      %3190 = vmatpush.msra.mxu0 %v2644
      %3191 = vmatpush.msra.mxu0 %v2640
      %3192 = vmatpush.msra.mxu0 %v2636
      %3193 = vmatmul.f32.gmra.mxu0 %v3035
      %v3194 = vpop.f32.mrf.mxu0
      %v3195 = vadd.f32 %v3175, %v3194
      %3196 = vdwg.mxu0
      %3197 = vmatpush.msra.mxu0 %v2505
      %3198 = vmatpush.msra.mxu0 %v2501
      %3199 = vmatpush.msra.mxu0 %v2497
      %3200 = vmatpush.msra.mxu0 %v2493
      %3201 = vmatpush.msra.mxu0 %v2489
      %3202 = vmatpush.msra.mxu0 %v2485
      %3203 = vmatpush.msra.mxu0 %v2481
      %3204 = vmatpush.msra.mxu0 %v2477
      %3205 = vmatpush.msra.mxu0 %v2473
      %3206 = vmatpush.msra.mxu0 %v2469
      %3207 = vmatpush.msra.mxu0 %v2465
      %3208 = vmatpush.msra.mxu0 %v2461
      %3209 = vmatpush.msra.mxu0 %v2457
      %3210 = vmatpush.msra.mxu0 %v2453
      %3211 = vmatpush.msra.mxu0 %v2449
      %3212 = vmatpush.msra.mxu0 %v2445
      %3213 = vmatmul.f32.gmra.mxu0 %v3030
      %v3214 = vpop.f32.mrf.mxu0
      %v3215 = vadd.f32 0.0, %v3214
      %3216 = vdwg.mxu0
      %3217 = vmatpush.msra.mxu0 %v2569
      %3218 = vmatpush.msra.mxu0 %v2565
      %3219 = vmatpush.msra.mxu0 %v2561
      %3220 = vmatpush.msra.mxu0 %v2557
      %3221 = vmatpush.msra.mxu0 %v2553
      %3222 = vmatpush.msra.mxu0 %v2549
      %3223 = vmatpush.msra.mxu0 %v2545
      %3224 = vmatpush.msra.mxu0 %v2541
      %3225 = vmatpush.msra.mxu0 %v2537
      %3226 = vmatpush.msra.mxu0 %v2533
      %3227 = vmatpush.msra.mxu0 %v2529
      %3228 = vmatpush.msra.mxu0 %v2525
      %3229 = vmatpush.msra.mxu0 %v2521
      %3230 = vmatpush.msra.mxu0 %v2517
      %3231 = vmatpush.msra.mxu0 %v2513
      %3232 = vmatpush.msra.mxu0 %v2509
      %3233 = vmatmul.f32.gmra.mxu0 %v3031
      %v3234 = vpop.f32.mrf.mxu0
      %v3235 = vadd.f32 %v3215, %v3234
      %3236 = vdwg.mxu0
      %3237 = vmatpush.msra.mxu0 %v2633
      %3238 = vmatpush.msra.mxu0 %v2629
      %3239 = vmatpush.msra.mxu0 %v2625
      %3240 = vmatpush.msra.mxu0 %v2621
      %3241 = vmatpush.msra.mxu0 %v2617
      %3242 = vmatpush.msra.mxu0 %v2613
      %3243 = vmatpush.msra.mxu0 %v2609
      %3244 = vmatpush.msra.mxu0 %v2605
      %3245 = vmatpush.msra.mxu0 %v2601
      %3246 = vmatpush.msra.mxu0 %v2597
      %3247 = vmatpush.msra.mxu0 %v2593
      %3248 = vmatpush.msra.mxu0 %v2589
      %3249 = vmatpush.msra.mxu0 %v2585
      %3250 = vmatpush.msra.mxu0 %v2581
      %3251 = vmatpush.msra.mxu0 %v2577
      %3252 = vmatpush.msra.mxu0 %v2573
      %3253 = vmatmul.f32.gmra.mxu0 %v3032
      %v3254 = vpop.f32.mrf.mxu0
      %v3255 = vadd.f32 %v3235, %v3254
      %3256 = vdwg.mxu0
      %3257 = vmatpush.msra.mxu0 0.0
      %3258 = vmatpush.msra.mxu0 0.0
      %3259 = vmatpush.msra.mxu0 0.0
      %3260 = vmatpush.msra.mxu0 0.0
      %3261 = vmatpush.msra.mxu0 %v2681
      %3262 = vmatpush.msra.mxu0 %v2677
      %3263 = vmatpush.msra.mxu0 %v2673
      %3264 = vmatpush.msra.mxu0 %v2669
      %3265 = vmatpush.msra.mxu0 %v2665
      %3266 = vmatpush.msra.mxu0 %v2661
      %3267 = vmatpush.msra.mxu0 %v2657
      %3268 = vmatpush.msra.mxu0 %v2653
      %3269 = vmatpush.msra.mxu0 %v2649
      %3270 = vmatpush.msra.mxu0 %v2645
      %3271 = vmatpush.msra.mxu0 %v2641
      %3272 = vmatpush.msra.mxu0 %v2637
      %3273 = vmatmul.f32.gmra.mxu0 %v3035
      %v3274 = vpop.f32.mrf.mxu0
      %v3275 = vadd.f32 %v3255, %v3274
      %3276 = vdwg.mxu0
      %3277 = vmatpush.msra.mxu0 %v2506
      %3278 = vmatpush.msra.mxu0 %v2502
      %3279 = vmatpush.msra.mxu0 %v2498
      %3280 = vmatpush.msra.mxu0 %v2494
      %3281 = vmatpush.msra.mxu0 %v2490
      %3282 = vmatpush.msra.mxu0 %v2486
      %3283 = vmatpush.msra.mxu0 %v2482
      %3284 = vmatpush.msra.mxu0 %v2478
      %3285 = vmatpush.msra.mxu0 %v2474
      %3286 = vmatpush.msra.mxu0 %v2470
      %3287 = vmatpush.msra.mxu0 %v2466
      %3288 = vmatpush.msra.mxu0 %v2462
      %3289 = vmatpush.msra.mxu0 %v2458
      %3290 = vmatpush.msra.mxu0 %v2454
      %3291 = vmatpush.msra.mxu0 %v2450
      %3292 = vmatpush.msra.mxu0 %v2446
      %3293 = vmatmul.f32.gmra.mxu0 %v3030
      %v3294 = vpop.f32.mrf.mxu0
      %v3295 = vadd.f32 0.0, %v3294
      %3296 = vdwg.mxu0
      %3297 = vmatpush.msra.mxu0 %v2570
      %3298 = vmatpush.msra.mxu0 %v2566
      %3299 = vmatpush.msra.mxu0 %v2562
      %3300 = vmatpush.msra.mxu0 %v2558
      %3301 = vmatpush.msra.mxu0 %v2554
      %3302 = vmatpush.msra.mxu0 %v2550
      %3303 = vmatpush.msra.mxu0 %v2546
      %3304 = vmatpush.msra.mxu0 %v2542
      %3305 = vmatpush.msra.mxu0 %v2538
      %3306 = vmatpush.msra.mxu0 %v2534
      %3307 = vmatpush.msra.mxu0 %v2530
      %3308 = vmatpush.msra.mxu0 %v2526
      %3309 = vmatpush.msra.mxu0 %v2522
      %3310 = vmatpush.msra.mxu0 %v2518
      %3311 = vmatpush.msra.mxu0 %v2514
      %3312 = vmatpush.msra.mxu0 %v2510
      %3313 = vmatmul.f32.gmra.mxu0 %v3031
      %v3314 = vpop.f32.mrf.mxu0
      %v3315 = vadd.f32 %v3295, %v3314
      %3316 = vdwg.mxu0
      %3317 = vmatpush.msra.mxu0 %v2634
      %3318 = vmatpush.msra.mxu0 %v2630
      %3319 = vmatpush.msra.mxu0 %v2626
      %3320 = vmatpush.msra.mxu0 %v2622
      %3321 = vmatpush.msra.mxu0 %v2618
      %3322 = vmatpush.msra.mxu0 %v2614
      %3323 = vmatpush.msra.mxu0 %v2610
      %3324 = vmatpush.msra.mxu0 %v2606
      %3325 = vmatpush.msra.mxu0 %v2602
      %3326 = vmatpush.msra.mxu0 %v2598
      %3327 = vmatpush.msra.mxu0 %v2594
      %3328 = vmatpush.msra.mxu0 %v2590
      %3329 = vmatpush.msra.mxu0 %v2586
      %3330 = vmatpush.msra.mxu0 %v2582
      %3331 = vmatpush.msra.mxu0 %v2578
      %3332 = vmatpush.msra.mxu0 %v2574
      %3333 = vmatmul.f32.gmra.mxu0 %v3032
      %v3334 = vpop.f32.mrf.mxu0
      %v3335 = vadd.f32 %v3315, %v3334
      %3336 = vdwg.mxu0
      %3337 = vmatpush.msra.mxu0 0.0
      %3338 = vmatpush.msra.mxu0 0.0
      %3339 = vmatpush.msra.mxu0 0.0
      %3340 = vmatpush.msra.mxu0 0.0
      %3341 = vmatpush.msra.mxu0 %v2682
      %3342 = vmatpush.msra.mxu0 %v2678
      %3343 = vmatpush.msra.mxu0 %v2674
      %3344 = vmatpush.msra.mxu0 %v2670
      %3345 = vmatpush.msra.mxu0 %v2666
      %3346 = vmatpush.msra.mxu0 %v2662
      %3347 = vmatpush.msra.mxu0 %v2658
      %3348 = vmatpush.msra.mxu0 %v2654
      %3349 = vmatpush.msra.mxu0 %v2650
      %3350 = vmatpush.msra.mxu0 %v2646
      %3351 = vmatpush.msra.mxu0 %v2642
      %3352 = vmatpush.msra.mxu0 %v2638
      %3353 = vmatmul.f32.gmra.mxu0 %v3035
      %v3354 = vpop.f32.mrf.mxu0
      %v3355 = vadd.f32 %v3335, %v3354
      %3356 = vdwg.mxu0
      %v3357 = vand.u32 2147483647, %v3115
      %vm3358 = vcmp.le.f32.partialorder %v3357, 0.7853982
      %vm3359 = vcmp.lt.s32.totalorder %v3115, 0
      %v3360 = vand.u32 %v3115, 2139095040
      %v3361 = vshrl.u32 %v3360, 23
      %v3362 = vsub.s32 %v3361, 127
      %v3363 = vand.u32 2147483647, %v3115
      %v3364 = vand.u32 %v3363, 8388607
      %v3365 = vor.u32 %v3364, 8388608
      %v3366 = vsub.s32 0, %v3365
      %v3367 = vadd.s32 %v3362, 1
      %vm3368 = vcmp.gt.s32.totalorder %v3367, 0
      %v3369 = vsel %vm3368, %v3367, 0
      %v3370 = vshrl.u32 %v3369, 5
      %v3371 = vand.u32 %v3369, 31
      %v3372 = vsub.s32 32, %v3371
      %v3373 = vshrl.u32 683565275, %v3372
      %v3374 = vshll.u32 683565275, %v3371
      %v3375 = vshrl.u32 2475754826, %v3372
      %v3376 = vor.u32 %v3374, %v3375
      %v3377 = vshll.u32 2475754826, %v3371
      %v3378 = vshrl.u32 2131351028, %v3372
      %v3379 = vor.u32 %v3377, %v3378
      %v3380 = vshll.u32 2131351028, %v3371
      %v3381 = vshrl.u32 2102212464, %v3372
      %v3382 = vor.u32 %v3380, %v3381
      %v3383 = vshll.u32 2102212464, %v3371
      %v3384 = vshrl.u32 920167782, %v3372
      %v3385 = vor.u32 %v3383, %v3384
      %v3386 = vshll.u32 920167782, %v3371
      %v3387 = vshrl.u32 1326507024, %v3372
      %v3388 = vor.u32 %v3386, %v3387
      %vm3389 = vcmp.lt.s32.totalorder %v3370, 1
      %vm3390 = vcmp.lt.s32.totalorder %v3370, 2
      %vm3391 = vcmp.lt.s32.totalorder %v3370, 3
      %vm3392 = vcmp.lt.s32.totalorder %v3370, 4
      %v3393 = vsel %vm3389, %v3373, %v3376
      %v3394 = vsel %vm3392, %v3382, 2102212464
      %v3395 = vsel %vm3391, %v3379, %v3394
      %v3396 = vsel %vm3390, %v3393, %v3395
      %v3397 = vsel %vm3389, %v3376, %v3379
      %v3398 = vsel %vm3392, %v3385, 920167782
      %v3399 = vsel %vm3391, %v3382, %v3398
      %v3400 = vsel %vm3390, %v3397, %v3399
      %v3401 = vsel %vm3389, %v3379, %v3382
      %v3402 = vsel %vm3392, %v3388, 1326507024
      %v3403 = vsel %vm3391, %v3385, %v3402
      %v3404 = vsel %vm3390, %v3401, %v3403
      %v3405 = vshll.u32 %v3365, 8
      %v3406 = vand.u32 %v3405, 65535
      %v3407 = vshrl.u32 %v3405, 16
      %v3408 = vand.u32 %v3404, 65535
      %v3409 = vshrl.u32 %v3404, 16
      %v3410 = vmul.u32 %v3406, %v3408
      %v3411 = vmul.u32 %v3406, %v3409
      %v3412 = vmul.u32 %v3407, %v3408
      %v3413 = vmul.u32 %v3407, %v3409
      %v3414 = vshll.u32 %v3411, 16
      %v3415 = vshrl.u32 %v3411, 16
      %v3416 = vshll.u32 %v3412, 16
      %v3417 = vshrl.u32 %v3412, 16
      %vm3418 = vc.u32 %v3410, %v3414
      %v3419 = vsel %vm3418, 1, 0
      %v3420 = vadd.s32 %v3410, %v3414
      %v3421 = vadd.s32 %v3413, %v3419
      %vm3422 = vc.u32 %v3420, %v3416
      %v3423 = vsel %vm3422, 1, 0
      %v3424 = vadd.s32 %v3420, %v3416
      %v3425 = vadd.s32 %v3421, %v3423
      %v3426 = vadd.s32 %v3425, %v3415
      %v3427 = vadd.s32 %v3426, %v3417
      %v3428 = vand.u32 %v3405, 65535
      %v3429 = vshrl.u32 %v3405, 16
      %v3430 = vand.u32 %v3400, 65535
      %v3431 = vshrl.u32 %v3400, 16
      %v3432 = vmul.u32 %v3428, %v3430
      %v3433 = vmul.u32 %v3428, %v3431
      %v3434 = vmul.u32 %v3429, %v3430
      %v3435 = vmul.u32 %v3429, %v3431
      %v3436 = vshll.u32 %v3433, 16
      %v3437 = vshrl.u32 %v3433, 16
      %v3438 = vshll.u32 %v3434, 16
      %v3439 = vshrl.u32 %v3434, 16
      %vm3440 = vc.u32 %v3432, %v3436
      %v3441 = vsel %vm3440, 1, 0
      %v3442 = vadd.s32 %v3432, %v3436
      %v3443 = vadd.s32 %v3435, %v3441
      %vm3444 = vc.u32 %v3442, %v3438
      %v3445 = vsel %vm3444, 1, 0
      %v3446 = vadd.s32 %v3442, %v3438
      %v3447 = vadd.s32 %v3443, %v3445
      %v3448 = vadd.s32 %v3447, %v3437
      %v3449 = vadd.s32 %v3448, %v3439
      %v3450 = vmul.u32 %v3405, %v3396
      %v3451 = vadd.s32 %v3427, %v3446
      %vm3452 = vc.u32 %v3427, %v3446
      %v3453 = vadd.s32 %v3449, 1
      %v3454 = vsel %vm3452, %v3453, %v3449
      %v3455 = vadd.s32 %v3450, %v3454
      %v3456 = vadd.s32 %v3455, 536870912
      %v3457 = vshrl.u32 %v3456, 30
      %v3458 = vshll.u32 %v3457, 30
      %v3459 = vsub.s32 %v3455, %v3458
      %vm3460 = vcmp.lt.s32.totalorder %v3459, 0
      %v3461 = vsub.s32 0, %v3459
      %v3462 = vsel %vm3460, %v3461, %v3459
      %v3463 = vclz %v3462
      %v3464 = vsub.s32 %v3463, 2
      %vm3465 = vcmp.gt.s32.totalorder 0, %v3464
      %v3466 = vsel %vm3465, 0, %v3464
      %v3467 = vsub.s32 32, %v3466
      %v3468 = vshll.u32 %v3459, %v3466
      %v3469 = vshrl.u32 %v3451, %v3467
      %v3470 = vor.u32 %v3468, %v3469
      %v3471 = vsub.s32 4294967266, %v3466
      %v3472 = vadd.s32 %v3471, 127
      %v3473 = vshll.u32 %v3472, 23
      %v3474 = vor.u32 4788187, %v3473
      %v3475 = vand.u32 2147483647, %v3474
      %v3477 = vcvt.s32.f32 %v3470
      %v3478 = vmul.f32 %v3477, %v3475
      %v3479 = vxor.u32 %v3478, 2147483648
      %v3480 = vsel %vm3359, %v3479, %v3478
      %v3481 = vsub.s32 4, %v3457
      %v3482 = vsel %vm3359, %v3481, %v3457
      %v3483 = vsel %vm3358, %v3115, %v3480
      %v3484 = vsel %vm3358, 0, %v3482
      %v3485 = vmul.f32 %v3483, %v3483
      %v3486 = vmul.f32 %v3485, -0.001358992
      %v3487 = vadd.f32 %v3486, 0.041655596
      %v3488 = vmul.f32 %v3485, %v3487
      %v3489 = vadd.f32 %v3488, -0.4999988
      %v3490 = vmul.f32 %v3485, %v3489
      %v3491 = vadd.f32 1.0, %v3490
      %v3492 = vmul.f32 %v3483, %v3483
      %v3493 = vmul.f32 %v3492, -0.00019511016
      %v3494 = vadd.f32 %v3493, 0.008332121
      %v3495 = vmul.f32 %v3492, %v3494
      %v3496 = vadd.f32 %v3495, -0.16666654
      %v3497 = vmul.f32 %v3492, %v3496
      %v3498 = vadd.f32 %v3497, 1.0
      %v3499 = vmul.f32 %v3498, %v3483
      %vm3500 = vweird.f32 %v3115
      %v3501 = vand.u32 %v3484, 3
      %vm3502 = vcmp.lt.s32.totalorder %v3501, 2
      %vm3503 = vcmp.eq.s32.totalorder %v3501, 0
      %v3504 = vxor.u32 %v3499, 2147483648
      %v3505 = vsel %vm3503, %v3491, %v3504
      %vm3506 = vcmp.eq.s32.totalorder %v3501, 2
      %v3507 = vxor.u32 %v3491, 2147483648
      %v3508 = vsel %vm3506, %v3507, %v3499
      %v3509 = vsel %vm3502, %v3505, %v3508
      %v3510 = vsel %vm3500, nan, %v3509
      %v3511 = vand.u32 2147483647, %v3195
      %vm3512 = vcmp.le.f32.partialorder %v3511, 0.7853982
      %vm3513 = vcmp.lt.s32.totalorder %v3195, 0
      %v3514 = vand.u32 %v3195, 2139095040
      %v3515 = vshrl.u32 %v3514, 23
      %v3516 = vsub.s32 %v3515, 127
      %v3517 = vand.u32 2147483647, %v3195
      %v3518 = vand.u32 %v3517, 8388607
      %v3519 = vor.u32 %v3518, 8388608
      %v3520 = vsub.s32 0, %v3519
      %v3521 = vadd.s32 %v3516, 1
      %vm3522 = vcmp.gt.s32.totalorder %v3521, 0
      %v3523 = vsel %vm3522, %v3521, 0
      %v3524 = vshrl.u32 %v3523, 5
      %v3525 = vand.u32 %v3523, 31
      %v3526 = vsub.s32 32, %v3525
      %v3527 = vshrl.u32 683565275, %v3526
      %v3528 = vshll.u32 683565275, %v3525
      %v3529 = vshrl.u32 2475754826, %v3526
      %v3530 = vor.u32 %v3528, %v3529
      %v3531 = vshll.u32 2475754826, %v3525
      %v3532 = vshrl.u32 2131351028, %v3526
      %v3533 = vor.u32 %v3531, %v3532
      %v3534 = vshll.u32 2131351028, %v3525
      %v3535 = vshrl.u32 2102212464, %v3526
      %v3536 = vor.u32 %v3534, %v3535
      %v3537 = vshll.u32 2102212464, %v3525
      %v3538 = vshrl.u32 920167782, %v3526
      %v3539 = vor.u32 %v3537, %v3538
      %v3540 = vshll.u32 920167782, %v3525
      %v3541 = vshrl.u32 1326507024, %v3526
      %v3542 = vor.u32 %v3540, %v3541
      %vm3543 = vcmp.lt.s32.totalorder %v3524, 1
      %vm3544 = vcmp.lt.s32.totalorder %v3524, 2
      %vm3545 = vcmp.lt.s32.totalorder %v3524, 3
      %vm3546 = vcmp.lt.s32.totalorder %v3524, 4
      %v3547 = vsel %vm3543, %v3527, %v3530
      %v3548 = vsel %vm3546, %v3536, 2102212464
      %v3549 = vsel %vm3545, %v3533, %v3548
      %v3550 = vsel %vm3544, %v3547, %v3549
      %v3551 = vsel %vm3543, %v3530, %v3533
      %v3552 = vsel %vm3546, %v3539, 920167782
      %v3553 = vsel %vm3545, %v3536, %v3552
      %v3554 = vsel %vm3544, %v3551, %v3553
      %v3555 = vsel %vm3543, %v3533, %v3536
      %v3556 = vsel %vm3546, %v3542, 1326507024
      %v3557 = vsel %vm3545, %v3539, %v3556
      %v3558 = vsel %vm3544, %v3555, %v3557
      %v3559 = vshll.u32 %v3519, 8
      %v3560 = vand.u32 %v3559, 65535
      %v3561 = vshrl.u32 %v3559, 16
      %v3562 = vand.u32 %v3558, 65535
      %v3563 = vshrl.u32 %v3558, 16
      %v3564 = vmul.u32 %v3560, %v3562
      %v3565 = vmul.u32 %v3560, %v3563
      %v3566 = vmul.u32 %v3561, %v3562
      %v3567 = vmul.u32 %v3561, %v3563
      %v3568 = vshll.u32 %v3565, 16
      %v3569 = vshrl.u32 %v3565, 16
      %v3570 = vshll.u32 %v3566, 16
      %v3571 = vshrl.u32 %v3566, 16
      %vm3572 = vc.u32 %v3564, %v3568
      %v3573 = vsel %vm3572, 1, 0
      %v3574 = vadd.s32 %v3564, %v3568
      %v3575 = vadd.s32 %v3567, %v3573
      %vm3576 = vc.u32 %v3574, %v3570
      %v3577 = vsel %vm3576, 1, 0
      %v3578 = vadd.s32 %v3574, %v3570
      %v3579 = vadd.s32 %v3575, %v3577
      %v3580 = vadd.s32 %v3579, %v3569
      %v3581 = vadd.s32 %v3580, %v3571
      %v3582 = vand.u32 %v3559, 65535
      %v3583 = vshrl.u32 %v3559, 16
      %v3584 = vand.u32 %v3554, 65535
      %v3585 = vshrl.u32 %v3554, 16
      %v3586 = vmul.u32 %v3582, %v3584
      %v3587 = vmul.u32 %v3582, %v3585
      %v3588 = vmul.u32 %v3583, %v3584
      %v3589 = vmul.u32 %v3583, %v3585
      %v3590 = vshll.u32 %v3587, 16
      %v3591 = vshrl.u32 %v3587, 16
      %v3592 = vshll.u32 %v3588, 16
      %v3593 = vshrl.u32 %v3588, 16
      %vm3594 = vc.u32 %v3586, %v3590
      %v3595 = vsel %vm3594, 1, 0
      %v3596 = vadd.s32 %v3586, %v3590
      %v3597 = vadd.s32 %v3589, %v3595
      %vm3598 = vc.u32 %v3596, %v3592
      %v3599 = vsel %vm3598, 1, 0
      %v3600 = vadd.s32 %v3596, %v3592
      %v3601 = vadd.s32 %v3597, %v3599
      %v3602 = vadd.s32 %v3601, %v3591
      %v3603 = vadd.s32 %v3602, %v3593
      %v3604 = vmul.u32 %v3559, %v3550
      %v3605 = vadd.s32 %v3581, %v3600
      %vm3606 = vc.u32 %v3581, %v3600
      %v3607 = vadd.s32 %v3603, 1
      %v3608 = vsel %vm3606, %v3607, %v3603
      %v3609 = vadd.s32 %v3604, %v3608
      %v3610 = vadd.s32 %v3609, 536870912
      %v3611 = vshrl.u32 %v3610, 30
      %v3612 = vshll.u32 %v3611, 30
      %v3613 = vsub.s32 %v3609, %v3612
      %vm3614 = vcmp.lt.s32.totalorder %v3613, 0
      %v3615 = vsub.s32 0, %v3613
      %v3616 = vsel %vm3614, %v3615, %v3613
      %v3617 = vclz %v3616
      %v3618 = vsub.s32 %v3617, 2
      %vm3619 = vcmp.gt.s32.totalorder 0, %v3618
      %v3620 = vsel %vm3619, 0, %v3618
      %v3621 = vsub.s32 32, %v3620
      %v3622 = vshll.u32 %v3613, %v3620
      %v3623 = vshrl.u32 %v3605, %v3621
      %v3624 = vor.u32 %v3622, %v3623
      %v3625 = vsub.s32 4294967266, %v3620
      %v3626 = vadd.s32 %v3625, 127
      %v3627 = vshll.u32 %v3626, 23
      %v3628 = vor.u32 4788187, %v3627
      %v3629 = vand.u32 2147483647, %v3628
      %v3631 = vcvt.s32.f32 %v3624
      %v3632 = vmul.f32 %v3631, %v3629
      %v3633 = vxor.u32 %v3632, 2147483648
      %v3634 = vsel %vm3513, %v3633, %v3632
      %v3635 = vsub.s32 4, %v3611
      %v3636 = vsel %vm3513, %v3635, %v3611
      %v3637 = vsel %vm3512, %v3195, %v3634
      %v3638 = vsel %vm3512, 0, %v3636
      %v3639 = vmul.f32 %v3637, %v3637
      %v3640 = vmul.f32 %v3639, -0.001358992
      %v3641 = vadd.f32 %v3640, 0.041655596
      %v3642 = vmul.f32 %v3639, %v3641
      %v3643 = vadd.f32 %v3642, -0.4999988
      %v3644 = vmul.f32 %v3639, %v3643
      %v3645 = vadd.f32 1.0, %v3644
      %v3646 = vmul.f32 %v3637, %v3637
      %v3647 = vmul.f32 %v3646, -0.00019511016
      %v3648 = vadd.f32 %v3647, 0.008332121
      %v3649 = vmul.f32 %v3646, %v3648
      %v3650 = vadd.f32 %v3649, -0.16666654
      %v3651 = vmul.f32 %v3646, %v3650
      %v3652 = vadd.f32 %v3651, 1.0
      %v3653 = vmul.f32 %v3652, %v3637
      %vm3654 = vweird.f32 %v3195
      %v3655 = vand.u32 %v3638, 3
      %vm3656 = vcmp.lt.s32.totalorder %v3655, 2
      %vm3657 = vcmp.eq.s32.totalorder %v3655, 0
      %v3658 = vxor.u32 %v3653, 2147483648
      %v3659 = vsel %vm3657, %v3645, %v3658
      %vm3660 = vcmp.eq.s32.totalorder %v3655, 2
      %v3661 = vxor.u32 %v3645, 2147483648
      %v3662 = vsel %vm3660, %v3661, %v3653
      %v3663 = vsel %vm3656, %v3659, %v3662
      %v3664 = vsel %vm3654, nan, %v3663
      %v3665 = vand.u32 2147483647, %v3275
      %vm3666 = vcmp.le.f32.partialorder %v3665, 0.7853982
      %vm3667 = vcmp.lt.s32.totalorder %v3275, 0
      %v3668 = vand.u32 %v3275, 2139095040
      %v3669 = vshrl.u32 %v3668, 23
      %v3670 = vsub.s32 %v3669, 127
      %v3671 = vand.u32 2147483647, %v3275
      %v3672 = vand.u32 %v3671, 8388607
      %v3673 = vor.u32 %v3672, 8388608
      %v3674 = vsub.s32 0, %v3673
      %v3675 = vadd.s32 %v3670, 1
      %vm3676 = vcmp.gt.s32.totalorder %v3675, 0
      %v3677 = vsel %vm3676, %v3675, 0
      %v3678 = vshrl.u32 %v3677, 5
      %v3679 = vand.u32 %v3677, 31
      %v3680 = vsub.s32 32, %v3679
      %v3681 = vshrl.u32 683565275, %v3680
      %v3682 = vshll.u32 683565275, %v3679
      %v3683 = vshrl.u32 2475754826, %v3680
      %v3684 = vor.u32 %v3682, %v3683
      %v3685 = vshll.u32 2475754826, %v3679
      %v3686 = vshrl.u32 2131351028, %v3680
      %v3687 = vor.u32 %v3685, %v3686
      %v3688 = vshll.u32 2131351028, %v3679
      %v3689 = vshrl.u32 2102212464, %v3680
      %v3690 = vor.u32 %v3688, %v3689
      %v3691 = vshll.u32 2102212464, %v3679
      %v3692 = vshrl.u32 920167782, %v3680
      %v3693 = vor.u32 %v3691, %v3692
      %v3694 = vshll.u32 920167782, %v3679
      %v3695 = vshrl.u32 1326507024, %v3680
      %v3696 = vor.u32 %v3694, %v3695
      %vm3697 = vcmp.lt.s32.totalorder %v3678, 1
      %vm3698 = vcmp.lt.s32.totalorder %v3678, 2
      %vm3699 = vcmp.lt.s32.totalorder %v3678, 3
      %vm3700 = vcmp.lt.s32.totalorder %v3678, 4
      %v3701 = vsel %vm3697, %v3681, %v3684
      %v3702 = vsel %vm3700, %v3690, 2102212464
      %v3703 = vsel %vm3699, %v3687, %v3702
      %v3704 = vsel %vm3698, %v3701, %v3703
      %v3705 = vsel %vm3697, %v3684, %v3687
      %v3706 = vsel %vm3700, %v3693, 920167782
      %v3707 = vsel %vm3699, %v3690, %v3706
      %v3708 = vsel %vm3698, %v3705, %v3707
      %v3709 = vsel %vm3697, %v3687, %v3690
      %v3710 = vsel %vm3700, %v3696, 1326507024
      %v3711 = vsel %vm3699, %v3693, %v3710
      %v3712 = vsel %vm3698, %v3709, %v3711
      %v3713 = vshll.u32 %v3673, 8
      %v3714 = vand.u32 %v3713, 65535
      %v3715 = vshrl.u32 %v3713, 16
      %v3716 = vand.u32 %v3712, 65535
      %v3717 = vshrl.u32 %v3712, 16
      %v3718 = vmul.u32 %v3714, %v3716
      %v3719 = vmul.u32 %v3714, %v3717
      %v3720 = vmul.u32 %v3715, %v3716
      %v3721 = vmul.u32 %v3715, %v3717
      %v3722 = vshll.u32 %v3719, 16
      %v3723 = vshrl.u32 %v3719, 16
      %v3724 = vshll.u32 %v3720, 16
      %v3725 = vshrl.u32 %v3720, 16
      %vm3726 = vc.u32 %v3718, %v3722
      %v3727 = vsel %vm3726, 1, 0
      %v3728 = vadd.s32 %v3718, %v3722
      %v3729 = vadd.s32 %v3721, %v3727
      %vm3730 = vc.u32 %v3728, %v3724
      %v3731 = vsel %vm3730, 1, 0
      %v3732 = vadd.s32 %v3728, %v3724
      %v3733 = vadd.s32 %v3729, %v3731
      %v3734 = vadd.s32 %v3733, %v3723
      %v3735 = vadd.s32 %v3734, %v3725
      %v3736 = vand.u32 %v3713, 65535
      %v3737 = vshrl.u32 %v3713, 16
      %v3738 = vand.u32 %v3708, 65535
      %v3739 = vshrl.u32 %v3708, 16
      %v3740 = vmul.u32 %v3736, %v3738
      %v3741 = vmul.u32 %v3736, %v3739
      %v3742 = vmul.u32 %v3737, %v3738
      %v3743 = vmul.u32 %v3737, %v3739
      %v3744 = vshll.u32 %v3741, 16
      %v3745 = vshrl.u32 %v3741, 16
      %v3746 = vshll.u32 %v3742, 16
      %v3747 = vshrl.u32 %v3742, 16
      %vm3748 = vc.u32 %v3740, %v3744
      %v3749 = vsel %vm3748, 1, 0
      %v3750 = vadd.s32 %v3740, %v3744
      %v3751 = vadd.s32 %v3743, %v3749
      %vm3752 = vc.u32 %v3750, %v3746
      %v3753 = vsel %vm3752, 1, 0
      %v3754 = vadd.s32 %v3750, %v3746
      %v3755 = vadd.s32 %v3751, %v3753
      %v3756 = vadd.s32 %v3755, %v3745
      %v3757 = vadd.s32 %v3756, %v3747
      %v3758 = vmul.u32 %v3713, %v3704
      %v3759 = vadd.s32 %v3735, %v3754
      %vm3760 = vc.u32 %v3735, %v3754
      %v3761 = vadd.s32 %v3757, 1
      %v3762 = vsel %vm3760, %v3761, %v3757
      %v3763 = vadd.s32 %v3758, %v3762
      %v3764 = vadd.s32 %v3763, 536870912
      %v3765 = vshrl.u32 %v3764, 30
      %v3766 = vshll.u32 %v3765, 30
      %v3767 = vsub.s32 %v3763, %v3766
      %vm3768 = vcmp.lt.s32.totalorder %v3767, 0
      %v3769 = vsub.s32 0, %v3767
      %v3770 = vsel %vm3768, %v3769, %v3767
      %v3771 = vclz %v3770
      %v3772 = vsub.s32 %v3771, 2
      %vm3773 = vcmp.gt.s32.totalorder 0, %v3772
      %v3774 = vsel %vm3773, 0, %v3772
      %v3775 = vsub.s32 32, %v3774
      %v3776 = vshll.u32 %v3767, %v3774
      %v3777 = vshrl.u32 %v3759, %v3775
      %v3778 = vor.u32 %v3776, %v3777
      %v3779 = vsub.s32 4294967266, %v3774
      %v3780 = vadd.s32 %v3779, 127
      %v3781 = vshll.u32 %v3780, 23
      %v3782 = vor.u32 4788187, %v3781
      %v3783 = vand.u32 2147483647, %v3782
      %v3785 = vcvt.s32.f32 %v3778
      %v3786 = vmul.f32 %v3785, %v3783
      %v3787 = vxor.u32 %v3786, 2147483648
      %v3788 = vsel %vm3667, %v3787, %v3786
      %v3789 = vsub.s32 4, %v3765
      %v3790 = vsel %vm3667, %v3789, %v3765
      %v3791 = vsel %vm3666, %v3275, %v3788
      %v3792 = vsel %vm3666, 0, %v3790
      %v3793 = vmul.f32 %v3791, %v3791
      %v3794 = vmul.f32 %v3793, -0.001358992
      %v3795 = vadd.f32 %v3794, 0.041655596
      %v3796 = vmul.f32 %v3793, %v3795
      %v3797 = vadd.f32 %v3796, -0.4999988
      %v3798 = vmul.f32 %v3793, %v3797
      %v3799 = vadd.f32 1.0, %v3798
      %v3800 = vmul.f32 %v3791, %v3791
      %v3801 = vmul.f32 %v3800, -0.00019511016
      %v3802 = vadd.f32 %v3801, 0.008332121
      %v3803 = vmul.f32 %v3800, %v3802
      %v3804 = vadd.f32 %v3803, -0.16666654
      %v3805 = vmul.f32 %v3800, %v3804
      %v3806 = vadd.f32 %v3805, 1.0
      %v3807 = vmul.f32 %v3806, %v3791
      %vm3808 = vweird.f32 %v3275
      %v3809 = vand.u32 %v3792, 3
      %vm3810 = vcmp.lt.s32.totalorder %v3809, 2
      %vm3811 = vcmp.eq.s32.totalorder %v3809, 0
      %v3812 = vxor.u32 %v3807, 2147483648
      %v3813 = vsel %vm3811, %v3799, %v3812
      %vm3814 = vcmp.eq.s32.totalorder %v3809, 2
      %v3815 = vxor.u32 %v3799, 2147483648
      %v3816 = vsel %vm3814, %v3815, %v3807
      %v3817 = vsel %vm3810, %v3813, %v3816
      %v3818 = vsel %vm3808, nan, %v3817
      %v3819 = vand.u32 2147483647, %v3355
      %vm3820 = vcmp.le.f32.partialorder %v3819, 0.7853982
      %vm3821 = vcmp.lt.s32.totalorder %v3355, 0
      %v3822 = vand.u32 %v3355, 2139095040
      %v3823 = vshrl.u32 %v3822, 23
      %v3824 = vsub.s32 %v3823, 127
      %v3825 = vand.u32 2147483647, %v3355
      %v3826 = vand.u32 %v3825, 8388607
      %v3827 = vor.u32 %v3826, 8388608
      %v3828 = vsub.s32 0, %v3827
      %v3829 = vadd.s32 %v3824, 1
      %vm3830 = vcmp.gt.s32.totalorder %v3829, 0
      %v3831 = vsel %vm3830, %v3829, 0
      %v3832 = vshrl.u32 %v3831, 5
      %v3833 = vand.u32 %v3831, 31
      %v3834 = vsub.s32 32, %v3833
      %v3835 = vshrl.u32 683565275, %v3834
      %v3836 = vshll.u32 683565275, %v3833
      %v3837 = vshrl.u32 2475754826, %v3834
      %v3838 = vor.u32 %v3836, %v3837
      %v3839 = vshll.u32 2475754826, %v3833
      %v3840 = vshrl.u32 2131351028, %v3834
      %v3841 = vor.u32 %v3839, %v3840
      %v3842 = vshll.u32 2131351028, %v3833
      %v3843 = vshrl.u32 2102212464, %v3834
      %v3844 = vor.u32 %v3842, %v3843
      %v3845 = vshll.u32 2102212464, %v3833
      %v3846 = vshrl.u32 920167782, %v3834
      %v3847 = vor.u32 %v3845, %v3846
      %v3848 = vshll.u32 920167782, %v3833
      %v3849 = vshrl.u32 1326507024, %v3834
      %v3850 = vor.u32 %v3848, %v3849
      %vm3851 = vcmp.lt.s32.totalorder %v3832, 1
      %vm3852 = vcmp.lt.s32.totalorder %v3832, 2
      %vm3853 = vcmp.lt.s32.totalorder %v3832, 3
      %vm3854 = vcmp.lt.s32.totalorder %v3832, 4
      %v3855 = vsel %vm3851, %v3835, %v3838
      %v3856 = vsel %vm3854, %v3844, 2102212464
      %v3857 = vsel %vm3853, %v3841, %v3856
      %v3858 = vsel %vm3852, %v3855, %v3857
      %v3859 = vsel %vm3851, %v3838, %v3841
      %v3860 = vsel %vm3854, %v3847, 920167782
      %v3861 = vsel %vm3853, %v3844, %v3860
      %v3862 = vsel %vm3852, %v3859, %v3861
      %v3863 = vsel %vm3851, %v3841, %v3844
      %v3864 = vsel %vm3854, %v3850, 1326507024
      %v3865 = vsel %vm3853, %v3847, %v3864
      %v3866 = vsel %vm3852, %v3863, %v3865
      %v3867 = vshll.u32 %v3827, 8
      %v3868 = vand.u32 %v3867, 65535
      %v3869 = vshrl.u32 %v3867, 16
      %v3870 = vand.u32 %v3866, 65535
      %v3871 = vshrl.u32 %v3866, 16
      %v3872 = vmul.u32 %v3868, %v3870
      %v3873 = vmul.u32 %v3868, %v3871
      %v3874 = vmul.u32 %v3869, %v3870
      %v3875 = vmul.u32 %v3869, %v3871
      %v3876 = vshll.u32 %v3873, 16
      %v3877 = vshrl.u32 %v3873, 16
      %v3878 = vshll.u32 %v3874, 16
      %v3879 = vshrl.u32 %v3874, 16
      %vm3880 = vc.u32 %v3872, %v3876
      %v3881 = vsel %vm3880, 1, 0
      %v3882 = vadd.s32 %v3872, %v3876
      %v3883 = vadd.s32 %v3875, %v3881
      %vm3884 = vc.u32 %v3882, %v3878
      %v3885 = vsel %vm3884, 1, 0
      %v3886 = vadd.s32 %v3882, %v3878
      %v3887 = vadd.s32 %v3883, %v3885
      %v3888 = vadd.s32 %v3887, %v3877
      %v3889 = vadd.s32 %v3888, %v3879
      %v3890 = vand.u32 %v3867, 65535
      %v3891 = vshrl.u32 %v3867, 16
      %v3892 = vand.u32 %v3862, 65535
      %v3893 = vshrl.u32 %v3862, 16
      %v3894 = vmul.u32 %v3890, %v3892
      %v3895 = vmul.u32 %v3890, %v3893
      %v3896 = vmul.u32 %v3891, %v3892
      %v3897 = vmul.u32 %v3891, %v3893
      %v3898 = vshll.u32 %v3895, 16
      %v3899 = vshrl.u32 %v3895, 16
      %v3900 = vshll.u32 %v3896, 16
      %v3901 = vshrl.u32 %v3896, 16
      %vm3902 = vc.u32 %v3894, %v3898
      %v3903 = vsel %vm3902, 1, 0
      %v3904 = vadd.s32 %v3894, %v3898
      %v3905 = vadd.s32 %v3897, %v3903
      %vm3906 = vc.u32 %v3904, %v3900
      %v3907 = vsel %vm3906, 1, 0
      %v3908 = vadd.s32 %v3904, %v3900
      %v3909 = vadd.s32 %v3905, %v3907
      %v3910 = vadd.s32 %v3909, %v3899
      %v3911 = vadd.s32 %v3910, %v3901
      %v3912 = vmul.u32 %v3867, %v3858
      %v3913 = vadd.s32 %v3889, %v3908
      %vm3914 = vc.u32 %v3889, %v3908
      %v3915 = vadd.s32 %v3911, 1
      %v3916 = vsel %vm3914, %v3915, %v3911
      %v3917 = vadd.s32 %v3912, %v3916
      %v3918 = vadd.s32 %v3917, 536870912
      %v3919 = vshrl.u32 %v3918, 30
      %v3920 = vshll.u32 %v3919, 30
      %v3921 = vsub.s32 %v3917, %v3920
      %vm3922 = vcmp.lt.s32.totalorder %v3921, 0
      %v3923 = vsub.s32 0, %v3921
      %v3924 = vsel %vm3922, %v3923, %v3921
      %v3925 = vclz %v3924
      %v3926 = vsub.s32 %v3925, 2
      %vm3927 = vcmp.gt.s32.totalorder 0, %v3926
      %v3928 = vsel %vm3927, 0, %v3926
      %v3929 = vsub.s32 32, %v3928
      %v3930 = vshll.u32 %v3921, %v3928
      %v3931 = vshrl.u32 %v3913, %v3929
      %v3932 = vor.u32 %v3930, %v3931
      %v3933 = vsub.s32 4294967266, %v3928
      %v3934 = vadd.s32 %v3933, 127
      %v3935 = vshll.u32 %v3934, 23
      %v3936 = vor.u32 4788187, %v3935
      %v3937 = vand.u32 2147483647, %v3936
      %v3939 = vcvt.s32.f32 %v3932
      %v3940 = vmul.f32 %v3939, %v3937
      %v3941 = vxor.u32 %v3940, 2147483648
      %v3942 = vsel %vm3821, %v3941, %v3940
      %v3943 = vsub.s32 4, %v3919
      %v3944 = vsel %vm3821, %v3943, %v3919
      %v3945 = vsel %vm3820, %v3355, %v3942
      %v3946 = vsel %vm3820, 0, %v3944
      %v3947 = vmul.f32 %v3945, %v3945
      %v3948 = vmul.f32 %v3947, -0.001358992
      %v3949 = vadd.f32 %v3948, 0.041655596
      %v3950 = vmul.f32 %v3947, %v3949
      %v3951 = vadd.f32 %v3950, -0.4999988
      %v3952 = vmul.f32 %v3947, %v3951
      %v3953 = vadd.f32 1.0, %v3952
      %v3954 = vmul.f32 %v3945, %v3945
      %v3955 = vmul.f32 %v3954, -0.00019511016
      %v3956 = vadd.f32 %v3955, 0.008332121
      %v3957 = vmul.f32 %v3954, %v3956
      %v3958 = vadd.f32 %v3957, -0.16666654
      %v3959 = vmul.f32 %v3954, %v3958
      %v3960 = vadd.f32 %v3959, 1.0
      %v3961 = vmul.f32 %v3960, %v3945
      %vm3962 = vweird.f32 %v3355
      %v3963 = vand.u32 %v3946, 3
      %vm3964 = vcmp.lt.s32.totalorder %v3963, 2
      %vm3965 = vcmp.eq.s32.totalorder %v3963, 0
      %v3966 = vxor.u32 %v3961, 2147483648
      %v3967 = vsel %vm3965, %v3953, %v3966
      %vm3968 = vcmp.eq.s32.totalorder %v3963, 2
      %v3969 = vxor.u32 %v3953, 2147483648
      %v3970 = vsel %vm3968, %v3969, %v3961
      %v3971 = vsel %vm3964, %v3967, %v3970
      %v3972 = vsel %vm3962, nan, %v3971
      %v3973 = vand.u32 2147483647, %v3115
      %vm3974 = vcmp.le.f32.partialorder %v3973, 0.7853982
      %vm3975 = vcmp.lt.s32.totalorder %v3115, 0
      %v3976 = vand.u32 %v3115, 2139095040
      %v3977 = vshrl.u32 %v3976, 23
      %v3978 = vsub.s32 %v3977, 127
      %v3979 = vand.u32 2147483647, %v3115
      %v3980 = vand.u32 %v3979, 8388607
      %v3981 = vor.u32 %v3980, 8388608
      %v3982 = vsub.s32 0, %v3981
      %v3983 = vadd.s32 %v3978, 1
      %vm3984 = vcmp.gt.s32.totalorder %v3983, 0
      %v3985 = vsel %vm3984, %v3983, 0
      %v3986 = vshrl.u32 %v3985, 5
      %v3987 = vand.u32 %v3985, 31
      %v3988 = vsub.s32 32, %v3987
      %v3989 = vshrl.u32 683565275, %v3988
      %v3990 = vshll.u32 683565275, %v3987
      %v3991 = vshrl.u32 2475754826, %v3988
      %v3992 = vor.u32 %v3990, %v3991
      %v3993 = vshll.u32 2475754826, %v3987
      %v3994 = vshrl.u32 2131351028, %v3988
      %v3995 = vor.u32 %v3993, %v3994
      %v3996 = vshll.u32 2131351028, %v3987
      %v3997 = vshrl.u32 2102212464, %v3988
      %v3998 = vor.u32 %v3996, %v3997
      %v3999 = vshll.u32 2102212464, %v3987
      %v4000 = vshrl.u32 920167782, %v3988
      %v4001 = vor.u32 %v3999, %v4000
      %v4002 = vshll.u32 920167782, %v3987
      %v4003 = vshrl.u32 1326507024, %v3988
      %v4004 = vor.u32 %v4002, %v4003
      %vm4005 = vcmp.lt.s32.totalorder %v3986, 1
      %vm4006 = vcmp.lt.s32.totalorder %v3986, 2
      %vm4007 = vcmp.lt.s32.totalorder %v3986, 3
      %vm4008 = vcmp.lt.s32.totalorder %v3986, 4
      %v4009 = vsel %vm4005, %v3989, %v3992
      %v4010 = vsel %vm4008, %v3998, 2102212464
      %v4011 = vsel %vm4007, %v3995, %v4010
      %v4012 = vsel %vm4006, %v4009, %v4011
      %v4013 = vsel %vm4005, %v3992, %v3995
      %v4014 = vsel %vm4008, %v4001, 920167782
      %v4015 = vsel %vm4007, %v3998, %v4014
      %v4016 = vsel %vm4006, %v4013, %v4015
      %v4017 = vsel %vm4005, %v3995, %v3998
      %v4018 = vsel %vm4008, %v4004, 1326507024
      %v4019 = vsel %vm4007, %v4001, %v4018
      %v4020 = vsel %vm4006, %v4017, %v4019
      %v4021 = vshll.u32 %v3981, 8
      %v4022 = vand.u32 %v4021, 65535
      %v4023 = vshrl.u32 %v4021, 16
      %v4024 = vand.u32 %v4020, 65535
      %v4025 = vshrl.u32 %v4020, 16
      %v4026 = vmul.u32 %v4022, %v4024
      %v4027 = vmul.u32 %v4022, %v4025
      %v4028 = vmul.u32 %v4023, %v4024
      %v4029 = vmul.u32 %v4023, %v4025
      %v4030 = vshll.u32 %v4027, 16
      %v4031 = vshrl.u32 %v4027, 16
      %v4032 = vshll.u32 %v4028, 16
      %v4033 = vshrl.u32 %v4028, 16
      %vm4034 = vc.u32 %v4026, %v4030
      %v4035 = vsel %vm4034, 1, 0
      %v4036 = vadd.s32 %v4026, %v4030
      %v4037 = vadd.s32 %v4029, %v4035
      %vm4038 = vc.u32 %v4036, %v4032
      %v4039 = vsel %vm4038, 1, 0
      %v4040 = vadd.s32 %v4036, %v4032
      %v4041 = vadd.s32 %v4037, %v4039
      %v4042 = vadd.s32 %v4041, %v4031
      %v4043 = vadd.s32 %v4042, %v4033
      %v4044 = vand.u32 %v4021, 65535
      %v4045 = vshrl.u32 %v4021, 16
      %v4046 = vand.u32 %v4016, 65535
      %v4047 = vshrl.u32 %v4016, 16
      %v4048 = vmul.u32 %v4044, %v4046
      %v4049 = vmul.u32 %v4044, %v4047
      %v4050 = vmul.u32 %v4045, %v4046
      %v4051 = vmul.u32 %v4045, %v4047
      %v4052 = vshll.u32 %v4049, 16
      %v4053 = vshrl.u32 %v4049, 16
      %v4054 = vshll.u32 %v4050, 16
      %v4055 = vshrl.u32 %v4050, 16
      %vm4056 = vc.u32 %v4048, %v4052
      %v4057 = vsel %vm4056, 1, 0
      %v4058 = vadd.s32 %v4048, %v4052
      %v4059 = vadd.s32 %v4051, %v4057
      %vm4060 = vc.u32 %v4058, %v4054
      %v4061 = vsel %vm4060, 1, 0
      %v4062 = vadd.s32 %v4058, %v4054
      %v4063 = vadd.s32 %v4059, %v4061
      %v4064 = vadd.s32 %v4063, %v4053
      %v4065 = vadd.s32 %v4064, %v4055
      %v4066 = vmul.u32 %v4021, %v4012
      %v4067 = vadd.s32 %v4043, %v4062
      %vm4068 = vc.u32 %v4043, %v4062
      %v4069 = vadd.s32 %v4065, 1
      %v4070 = vsel %vm4068, %v4069, %v4065
      %v4071 = vadd.s32 %v4066, %v4070
      %v4072 = vadd.s32 %v4071, 536870912
      %v4073 = vshrl.u32 %v4072, 30
      %v4074 = vshll.u32 %v4073, 30
      %v4075 = vsub.s32 %v4071, %v4074
      %vm4076 = vcmp.lt.s32.totalorder %v4075, 0
      %v4077 = vsub.s32 0, %v4075
      %v4078 = vsel %vm4076, %v4077, %v4075
      %v4079 = vclz %v4078
      %v4080 = vsub.s32 %v4079, 2
      %vm4081 = vcmp.gt.s32.totalorder 0, %v4080
      %v4082 = vsel %vm4081, 0, %v4080
      %v4083 = vsub.s32 32, %v4082
      %v4084 = vshll.u32 %v4075, %v4082
      %v4085 = vshrl.u32 %v4067, %v4083
      %v4086 = vor.u32 %v4084, %v4085
      %v4087 = vsub.s32 4294967266, %v4082
      %v4088 = vadd.s32 %v4087, 127
      %v4089 = vshll.u32 %v4088, 23
      %v4090 = vor.u32 4788187, %v4089
      %v4091 = vand.u32 2147483647, %v4090
      %v4093 = vcvt.s32.f32 %v4086
      %v4094 = vmul.f32 %v4093, %v4091
      %v4095 = vxor.u32 %v4094, 2147483648
      %v4096 = vsel %vm3975, %v4095, %v4094
      %v4097 = vsub.s32 4, %v4073
      %v4098 = vsel %vm3975, %v4097, %v4073
      %v4099 = vsel %vm3974, %v3115, %v4096
      %v4100 = vsel %vm3974, 0, %v4098
      %v4101 = vmul.f32 %v4099, %v4099
      %v4102 = vmul.f32 %v4101, -0.001358992
      %v4103 = vadd.f32 %v4102, 0.041655596
      %v4104 = vmul.f32 %v4101, %v4103
      %v4105 = vadd.f32 %v4104, -0.4999988
      %v4106 = vmul.f32 %v4101, %v4105
      %v4107 = vadd.f32 1.0, %v4106
      %v4108 = vmul.f32 %v4099, %v4099
      %v4109 = vmul.f32 %v4108, -0.00019511016
      %v4110 = vadd.f32 %v4109, 0.008332121
      %v4111 = vmul.f32 %v4108, %v4110
      %v4112 = vadd.f32 %v4111, -0.16666654
      %v4113 = vmul.f32 %v4108, %v4112
      %v4114 = vadd.f32 %v4113, 1.0
      %v4115 = vmul.f32 %v4114, %v4099
      %vm4116 = vweird.f32 %v3115
      %v4117 = vadd.s32 %v4100, 3
      %v4118 = vand.u32 %v4117, 3
      %vm4119 = vcmp.lt.s32.totalorder %v4118, 2
      %vm4120 = vcmp.eq.s32.totalorder %v4118, 0
      %v4121 = vxor.u32 %v4115, 2147483648
      %v4122 = vsel %vm4120, %v4107, %v4121
      %vm4123 = vcmp.eq.s32.totalorder %v4118, 2
      %v4124 = vxor.u32 %v4107, 2147483648
      %v4125 = vsel %vm4123, %v4124, %v4115
      %v4126 = vsel %vm4119, %v4122, %v4125
      %v4127 = vsel %vm4116, nan, %v4126
      %v4128 = vand.u32 2147483647, %v3195
      %vm4129 = vcmp.le.f32.partialorder %v4128, 0.7853982
      %vm4130 = vcmp.lt.s32.totalorder %v3195, 0
      %v4131 = vand.u32 %v3195, 2139095040
      %v4132 = vshrl.u32 %v4131, 23
      %v4133 = vsub.s32 %v4132, 127
      %v4134 = vand.u32 2147483647, %v3195
      %v4135 = vand.u32 %v4134, 8388607
      %v4136 = vor.u32 %v4135, 8388608
      %v4137 = vsub.s32 0, %v4136
      %v4138 = vadd.s32 %v4133, 1
      %vm4139 = vcmp.gt.s32.totalorder %v4138, 0
      %v4140 = vsel %vm4139, %v4138, 0
      %v4141 = vshrl.u32 %v4140, 5
      %v4142 = vand.u32 %v4140, 31
      %v4143 = vsub.s32 32, %v4142
      %v4144 = vshrl.u32 683565275, %v4143
      %v4145 = vshll.u32 683565275, %v4142
      %v4146 = vshrl.u32 2475754826, %v4143
      %v4147 = vor.u32 %v4145, %v4146
      %v4148 = vshll.u32 2475754826, %v4142
      %v4149 = vshrl.u32 2131351028, %v4143
      %v4150 = vor.u32 %v4148, %v4149
      %v4151 = vshll.u32 2131351028, %v4142
      %v4152 = vshrl.u32 2102212464, %v4143
      %v4153 = vor.u32 %v4151, %v4152
      %v4154 = vshll.u32 2102212464, %v4142
      %v4155 = vshrl.u32 920167782, %v4143
      %v4156 = vor.u32 %v4154, %v4155
      %v4157 = vshll.u32 920167782, %v4142
      %v4158 = vshrl.u32 1326507024, %v4143
      %v4159 = vor.u32 %v4157, %v4158
      %vm4160 = vcmp.lt.s32.totalorder %v4141, 1
      %vm4161 = vcmp.lt.s32.totalorder %v4141, 2
      %vm4162 = vcmp.lt.s32.totalorder %v4141, 3
      %vm4163 = vcmp.lt.s32.totalorder %v4141, 4
      %v4164 = vsel %vm4160, %v4144, %v4147
      %v4165 = vsel %vm4163, %v4153, 2102212464
      %v4166 = vsel %vm4162, %v4150, %v4165
      %v4167 = vsel %vm4161, %v4164, %v4166
      %v4168 = vsel %vm4160, %v4147, %v4150
      %v4169 = vsel %vm4163, %v4156, 920167782
      %v4170 = vsel %vm4162, %v4153, %v4169
      %v4171 = vsel %vm4161, %v4168, %v4170
      %v4172 = vsel %vm4160, %v4150, %v4153
      %v4173 = vsel %vm4163, %v4159, 1326507024
      %v4174 = vsel %vm4162, %v4156, %v4173
      %v4175 = vsel %vm4161, %v4172, %v4174
      %v4176 = vshll.u32 %v4136, 8
      %v4177 = vand.u32 %v4176, 65535
      %v4178 = vshrl.u32 %v4176, 16
      %v4179 = vand.u32 %v4175, 65535
      %v4180 = vshrl.u32 %v4175, 16
      %v4181 = vmul.u32 %v4177, %v4179
      %v4182 = vmul.u32 %v4177, %v4180
      %v4183 = vmul.u32 %v4178, %v4179
      %v4184 = vmul.u32 %v4178, %v4180
      %v4185 = vshll.u32 %v4182, 16
      %v4186 = vshrl.u32 %v4182, 16
      %v4187 = vshll.u32 %v4183, 16
      %v4188 = vshrl.u32 %v4183, 16
      %vm4189 = vc.u32 %v4181, %v4185
      %v4190 = vsel %vm4189, 1, 0
      %v4191 = vadd.s32 %v4181, %v4185
      %v4192 = vadd.s32 %v4184, %v4190
      %vm4193 = vc.u32 %v4191, %v4187
      %v4194 = vsel %vm4193, 1, 0
      %v4195 = vadd.s32 %v4191, %v4187
      %v4196 = vadd.s32 %v4192, %v4194
      %v4197 = vadd.s32 %v4196, %v4186
      %v4198 = vadd.s32 %v4197, %v4188
      %v4199 = vand.u32 %v4176, 65535
      %v4200 = vshrl.u32 %v4176, 16
      %v4201 = vand.u32 %v4171, 65535
      %v4202 = vshrl.u32 %v4171, 16
      %v4203 = vmul.u32 %v4199, %v4201
      %v4204 = vmul.u32 %v4199, %v4202
      %v4205 = vmul.u32 %v4200, %v4201
      %v4206 = vmul.u32 %v4200, %v4202
      %v4207 = vshll.u32 %v4204, 16
      %v4208 = vshrl.u32 %v4204, 16
      %v4209 = vshll.u32 %v4205, 16
      %v4210 = vshrl.u32 %v4205, 16
      %vm4211 = vc.u32 %v4203, %v4207
      %v4212 = vsel %vm4211, 1, 0
      %v4213 = vadd.s32 %v4203, %v4207
      %v4214 = vadd.s32 %v4206, %v4212
      %vm4215 = vc.u32 %v4213, %v4209
      %v4216 = vsel %vm4215, 1, 0
      %v4217 = vadd.s32 %v4213, %v4209
      %v4218 = vadd.s32 %v4214, %v4216
      %v4219 = vadd.s32 %v4218, %v4208
      %v4220 = vadd.s32 %v4219, %v4210
      %v4221 = vmul.u32 %v4176, %v4167
      %v4222 = vadd.s32 %v4198, %v4217
      %vm4223 = vc.u32 %v4198, %v4217
      %v4224 = vadd.s32 %v4220, 1
      %v4225 = vsel %vm4223, %v4224, %v4220
      %v4226 = vadd.s32 %v4221, %v4225
      %v4227 = vadd.s32 %v4226, 536870912
      %v4228 = vshrl.u32 %v4227, 30
      %v4229 = vshll.u32 %v4228, 30
      %v4230 = vsub.s32 %v4226, %v4229
      %vm4231 = vcmp.lt.s32.totalorder %v4230, 0
      %v4232 = vsub.s32 0, %v4230
      %v4233 = vsel %vm4231, %v4232, %v4230
      %v4234 = vclz %v4233
      %v4235 = vsub.s32 %v4234, 2
      %vm4236 = vcmp.gt.s32.totalorder 0, %v4235
      %v4237 = vsel %vm4236, 0, %v4235
      %v4238 = vsub.s32 32, %v4237
      %v4239 = vshll.u32 %v4230, %v4237
      %v4240 = vshrl.u32 %v4222, %v4238
      %v4241 = vor.u32 %v4239, %v4240
      %v4242 = vsub.s32 4294967266, %v4237
      %v4243 = vadd.s32 %v4242, 127
      %v4244 = vshll.u32 %v4243, 23
      %v4245 = vor.u32 4788187, %v4244
      %v4246 = vand.u32 2147483647, %v4245
      %v4248 = vcvt.s32.f32 %v4241
      %v4249 = vmul.f32 %v4248, %v4246
      %v4250 = vxor.u32 %v4249, 2147483648
      %v4251 = vsel %vm4130, %v4250, %v4249
      %v4252 = vsub.s32 4, %v4228
      %v4253 = vsel %vm4130, %v4252, %v4228
      %v4254 = vsel %vm4129, %v3195, %v4251
      %v4255 = vsel %vm4129, 0, %v4253
      %v4256 = vmul.f32 %v4254, %v4254
      %v4257 = vmul.f32 %v4256, -0.001358992
      %v4258 = vadd.f32 %v4257, 0.041655596
      %v4259 = vmul.f32 %v4256, %v4258
      %v4260 = vadd.f32 %v4259, -0.4999988
      %v4261 = vmul.f32 %v4256, %v4260
      %v4262 = vadd.f32 1.0, %v4261
      %v4263 = vmul.f32 %v4254, %v4254
      %v4264 = vmul.f32 %v4263, -0.00019511016
      %v4265 = vadd.f32 %v4264, 0.008332121
      %v4266 = vmul.f32 %v4263, %v4265
      %v4267 = vadd.f32 %v4266, -0.16666654
      %v4268 = vmul.f32 %v4263, %v4267
      %v4269 = vadd.f32 %v4268, 1.0
      %v4270 = vmul.f32 %v4269, %v4254
      %vm4271 = vweird.f32 %v3195
      %v4272 = vadd.s32 %v4255, 3
      %v4273 = vand.u32 %v4272, 3
      %vm4274 = vcmp.lt.s32.totalorder %v4273, 2
      %vm4275 = vcmp.eq.s32.totalorder %v4273, 0
      %v4276 = vxor.u32 %v4270, 2147483648
      %v4277 = vsel %vm4275, %v4262, %v4276
      %vm4278 = vcmp.eq.s32.totalorder %v4273, 2
      %v4279 = vxor.u32 %v4262, 2147483648
      %v4280 = vsel %vm4278, %v4279, %v4270
      %v4281 = vsel %vm4274, %v4277, %v4280
      %v4282 = vsel %vm4271, nan, %v4281
      %v4283 = vand.u32 2147483647, %v3275
      %vm4284 = vcmp.le.f32.partialorder %v4283, 0.7853982
      %vm4285 = vcmp.lt.s32.totalorder %v3275, 0
      %v4286 = vand.u32 %v3275, 2139095040
      %v4287 = vshrl.u32 %v4286, 23
      %v4288 = vsub.s32 %v4287, 127
      %v4289 = vand.u32 2147483647, %v3275
      %v4290 = vand.u32 %v4289, 8388607
      %v4291 = vor.u32 %v4290, 8388608
      %v4292 = vsub.s32 0, %v4291
      %v4293 = vadd.s32 %v4288, 1
      %vm4294 = vcmp.gt.s32.totalorder %v4293, 0
      %v4295 = vsel %vm4294, %v4293, 0
      %v4296 = vshrl.u32 %v4295, 5
      %v4297 = vand.u32 %v4295, 31
      %v4298 = vsub.s32 32, %v4297
      %v4299 = vshrl.u32 683565275, %v4298
      %v4300 = vshll.u32 683565275, %v4297
      %v4301 = vshrl.u32 2475754826, %v4298
      %v4302 = vor.u32 %v4300, %v4301
      %v4303 = vshll.u32 2475754826, %v4297
      %v4304 = vshrl.u32 2131351028, %v4298
      %v4305 = vor.u32 %v4303, %v4304
      %v4306 = vshll.u32 2131351028, %v4297
      %v4307 = vshrl.u32 2102212464, %v4298
      %v4308 = vor.u32 %v4306, %v4307
      %v4309 = vshll.u32 2102212464, %v4297
      %v4310 = vshrl.u32 920167782, %v4298
      %v4311 = vor.u32 %v4309, %v4310
      %v4312 = vshll.u32 920167782, %v4297
      %v4313 = vshrl.u32 1326507024, %v4298
      %v4314 = vor.u32 %v4312, %v4313
      %vm4315 = vcmp.lt.s32.totalorder %v4296, 1
      %vm4316 = vcmp.lt.s32.totalorder %v4296, 2
      %vm4317 = vcmp.lt.s32.totalorder %v4296, 3
      %vm4318 = vcmp.lt.s32.totalorder %v4296, 4
      %v4319 = vsel %vm4315, %v4299, %v4302
      %v4320 = vsel %vm4318, %v4308, 2102212464
      %v4321 = vsel %vm4317, %v4305, %v4320
      %v4322 = vsel %vm4316, %v4319, %v4321
      %v4323 = vsel %vm4315, %v4302, %v4305
      %v4324 = vsel %vm4318, %v4311, 920167782
      %v4325 = vsel %vm4317, %v4308, %v4324
      %v4326 = vsel %vm4316, %v4323, %v4325
      %v4327 = vsel %vm4315, %v4305, %v4308
      %v4328 = vsel %vm4318, %v4314, 1326507024
      %v4329 = vsel %vm4317, %v4311, %v4328
      %v4330 = vsel %vm4316, %v4327, %v4329
      %v4331 = vshll.u32 %v4291, 8
      %v4332 = vand.u32 %v4331, 65535
      %v4333 = vshrl.u32 %v4331, 16
      %v4334 = vand.u32 %v4330, 65535
      %v4335 = vshrl.u32 %v4330, 16
      %v4336 = vmul.u32 %v4332, %v4334
      %v4337 = vmul.u32 %v4332, %v4335
      %v4338 = vmul.u32 %v4333, %v4334
      %v4339 = vmul.u32 %v4333, %v4335
      %v4340 = vshll.u32 %v4337, 16
      %v4341 = vshrl.u32 %v4337, 16
      %v4342 = vshll.u32 %v4338, 16
      %v4343 = vshrl.u32 %v4338, 16
      %vm4344 = vc.u32 %v4336, %v4340
      %v4345 = vsel %vm4344, 1, 0
      %v4346 = vadd.s32 %v4336, %v4340
      %v4347 = vadd.s32 %v4339, %v4345
      %vm4348 = vc.u32 %v4346, %v4342
      %v4349 = vsel %vm4348, 1, 0
      %v4350 = vadd.s32 %v4346, %v4342
      %v4351 = vadd.s32 %v4347, %v4349
      %v4352 = vadd.s32 %v4351, %v4341
      %v4353 = vadd.s32 %v4352, %v4343
      %v4354 = vand.u32 %v4331, 65535
      %v4355 = vshrl.u32 %v4331, 16
      %v4356 = vand.u32 %v4326, 65535
      %v4357 = vshrl.u32 %v4326, 16
      %v4358 = vmul.u32 %v4354, %v4356
      %v4359 = vmul.u32 %v4354, %v4357
      %v4360 = vmul.u32 %v4355, %v4356
      %v4361 = vmul.u32 %v4355, %v4357
      %v4362 = vshll.u32 %v4359, 16
      %v4363 = vshrl.u32 %v4359, 16
      %v4364 = vshll.u32 %v4360, 16
      %v4365 = vshrl.u32 %v4360, 16
      %vm4366 = vc.u32 %v4358, %v4362
      %v4367 = vsel %vm4366, 1, 0
      %v4368 = vadd.s32 %v4358, %v4362
      %v4369 = vadd.s32 %v4361, %v4367
      %vm4370 = vc.u32 %v4368, %v4364
      %v4371 = vsel %vm4370, 1, 0
      %v4372 = vadd.s32 %v4368, %v4364
      %v4373 = vadd.s32 %v4369, %v4371
      %v4374 = vadd.s32 %v4373, %v4363
      %v4375 = vadd.s32 %v4374, %v4365
      %v4376 = vmul.u32 %v4331, %v4322
      %v4377 = vadd.s32 %v4353, %v4372
      %vm4378 = vc.u32 %v4353, %v4372
      %v4379 = vadd.s32 %v4375, 1
      %v4380 = vsel %vm4378, %v4379, %v4375
      %v4381 = vadd.s32 %v4376, %v4380
      %v4382 = vadd.s32 %v4381, 536870912
      %v4383 = vshrl.u32 %v4382, 30
      %v4384 = vshll.u32 %v4383, 30
      %v4385 = vsub.s32 %v4381, %v4384
      %vm4386 = vcmp.lt.s32.totalorder %v4385, 0
      %v4387 = vsub.s32 0, %v4385
      %v4388 = vsel %vm4386, %v4387, %v4385
      %v4389 = vclz %v4388
      %v4390 = vsub.s32 %v4389, 2
      %vm4391 = vcmp.gt.s32.totalorder 0, %v4390
      %v4392 = vsel %vm4391, 0, %v4390
      %v4393 = vsub.s32 32, %v4392
      %v4394 = vshll.u32 %v4385, %v4392
      %v4395 = vshrl.u32 %v4377, %v4393
      %v4396 = vor.u32 %v4394, %v4395
      %v4397 = vsub.s32 4294967266, %v4392
      %v4398 = vadd.s32 %v4397, 127
      %v4399 = vshll.u32 %v4398, 23
      %v4400 = vor.u32 4788187, %v4399
      %v4401 = vand.u32 2147483647, %v4400
      %v4403 = vcvt.s32.f32 %v4396
      %v4404 = vmul.f32 %v4403, %v4401
      %v4405 = vxor.u32 %v4404, 2147483648
      %v4406 = vsel %vm4285, %v4405, %v4404
      %v4407 = vsub.s32 4, %v4383
      %v4408 = vsel %vm4285, %v4407, %v4383
      %v4409 = vsel %vm4284, %v3275, %v4406
      %v4410 = vsel %vm4284, 0, %v4408
      %v4411 = vmul.f32 %v4409, %v4409
      %v4412 = vmul.f32 %v4411, -0.001358992
      %v4413 = vadd.f32 %v4412, 0.041655596
      %v4414 = vmul.f32 %v4411, %v4413
      %v4415 = vadd.f32 %v4414, -0.4999988
      %v4416 = vmul.f32 %v4411, %v4415
      %v4417 = vadd.f32 1.0, %v4416
      %v4418 = vmul.f32 %v4409, %v4409
      %v4419 = vmul.f32 %v4418, -0.00019511016
      %v4420 = vadd.f32 %v4419, 0.008332121
      %v4421 = vmul.f32 %v4418, %v4420
      %v4422 = vadd.f32 %v4421, -0.16666654
      %v4423 = vmul.f32 %v4418, %v4422
      %v4424 = vadd.f32 %v4423, 1.0
      %v4425 = vmul.f32 %v4424, %v4409
      %vm4426 = vweird.f32 %v3275
      %v4427 = vadd.s32 %v4410, 3
      %v4428 = vand.u32 %v4427, 3
      %vm4429 = vcmp.lt.s32.totalorder %v4428, 2
      %vm4430 = vcmp.eq.s32.totalorder %v4428, 0
      %v4431 = vxor.u32 %v4425, 2147483648
      %v4432 = vsel %vm4430, %v4417, %v4431
      %vm4433 = vcmp.eq.s32.totalorder %v4428, 2
      %v4434 = vxor.u32 %v4417, 2147483648
      %v4435 = vsel %vm4433, %v4434, %v4425
      %v4436 = vsel %vm4429, %v4432, %v4435
      %v4437 = vsel %vm4426, nan, %v4436
      %v4438 = vand.u32 2147483647, %v3355
      %vm4439 = vcmp.le.f32.partialorder %v4438, 0.7853982
      %vm4440 = vcmp.lt.s32.totalorder %v3355, 0
      %v4441 = vand.u32 %v3355, 2139095040
      %v4442 = vshrl.u32 %v4441, 23
      %v4443 = vsub.s32 %v4442, 127
      %v4444 = vand.u32 2147483647, %v3355
      %v4445 = vand.u32 %v4444, 8388607
      %v4446 = vor.u32 %v4445, 8388608
      %v4447 = vsub.s32 0, %v4446
      %v4448 = vadd.s32 %v4443, 1
      %vm4449 = vcmp.gt.s32.totalorder %v4448, 0
      %v4450 = vsel %vm4449, %v4448, 0
      %v4451 = vshrl.u32 %v4450, 5
      %v4452 = vand.u32 %v4450, 31
      %v4453 = vsub.s32 32, %v4452
      %v4454 = vshrl.u32 683565275, %v4453
      %v4455 = vshll.u32 683565275, %v4452
      %v4456 = vshrl.u32 2475754826, %v4453
      %v4457 = vor.u32 %v4455, %v4456
      %v4458 = vshll.u32 2475754826, %v4452
      %v4459 = vshrl.u32 2131351028, %v4453
      %v4460 = vor.u32 %v4458, %v4459
      %v4461 = vshll.u32 2131351028, %v4452
      %v4462 = vshrl.u32 2102212464, %v4453
      %v4463 = vor.u32 %v4461, %v4462
      %v4464 = vshll.u32 2102212464, %v4452
      %v4465 = vshrl.u32 920167782, %v4453
      %v4466 = vor.u32 %v4464, %v4465
      %v4467 = vshll.u32 920167782, %v4452
      %v4468 = vshrl.u32 1326507024, %v4453
      %v4469 = vor.u32 %v4467, %v4468
      %vm4470 = vcmp.lt.s32.totalorder %v4451, 1
      %vm4471 = vcmp.lt.s32.totalorder %v4451, 2
      %vm4472 = vcmp.lt.s32.totalorder %v4451, 3
      %vm4473 = vcmp.lt.s32.totalorder %v4451, 4
      %v4474 = vsel %vm4470, %v4454, %v4457
      %v4475 = vsel %vm4473, %v4463, 2102212464
      %v4476 = vsel %vm4472, %v4460, %v4475
      %v4477 = vsel %vm4471, %v4474, %v4476
      %v4478 = vsel %vm4470, %v4457, %v4460
      %v4479 = vsel %vm4473, %v4466, 920167782
      %v4480 = vsel %vm4472, %v4463, %v4479
      %v4481 = vsel %vm4471, %v4478, %v4480
      %v4482 = vsel %vm4470, %v4460, %v4463
      %v4483 = vsel %vm4473, %v4469, 1326507024
      %v4484 = vsel %vm4472, %v4466, %v4483
      %v4485 = vsel %vm4471, %v4482, %v4484
      %v4486 = vshll.u32 %v4446, 8
      %v4487 = vand.u32 %v4486, 65535
      %v4488 = vshrl.u32 %v4486, 16
      %v4489 = vand.u32 %v4485, 65535
      %v4490 = vshrl.u32 %v4485, 16
      %v4491 = vmul.u32 %v4487, %v4489
      %v4492 = vmul.u32 %v4487, %v4490
      %v4493 = vmul.u32 %v4488, %v4489
      %v4494 = vmul.u32 %v4488, %v4490
      %v4495 = vshll.u32 %v4492, 16
      %v4496 = vshrl.u32 %v4492, 16
      %v4497 = vshll.u32 %v4493, 16
      %v4498 = vshrl.u32 %v4493, 16
      %vm4499 = vc.u32 %v4491, %v4495
      %v4500 = vsel %vm4499, 1, 0
      %v4501 = vadd.s32 %v4491, %v4495
      %v4502 = vadd.s32 %v4494, %v4500
      %vm4503 = vc.u32 %v4501, %v4497
      %v4504 = vsel %vm4503, 1, 0
      %v4505 = vadd.s32 %v4501, %v4497
      %v4506 = vadd.s32 %v4502, %v4504
      %v4507 = vadd.s32 %v4506, %v4496
      %v4508 = vadd.s32 %v4507, %v4498
      %v4509 = vand.u32 %v4486, 65535
      %v4510 = vshrl.u32 %v4486, 16
      %v4511 = vand.u32 %v4481, 65535
      %v4512 = vshrl.u32 %v4481, 16
      %v4513 = vmul.u32 %v4509, %v4511
      %v4514 = vmul.u32 %v4509, %v4512
      %v4515 = vmul.u32 %v4510, %v4511
      %v4516 = vmul.u32 %v4510, %v4512
      %v4517 = vshll.u32 %v4514, 16
      %v4518 = vshrl.u32 %v4514, 16
      %v4519 = vshll.u32 %v4515, 16
      %v4520 = vshrl.u32 %v4515, 16
      %vm4521 = vc.u32 %v4513, %v4517
      %v4522 = vsel %vm4521, 1, 0
      %v4523 = vadd.s32 %v4513, %v4517
      %v4524 = vadd.s32 %v4516, %v4522
      %vm4525 = vc.u32 %v4523, %v4519
      %v4526 = vsel %vm4525, 1, 0
      %v4527 = vadd.s32 %v4523, %v4519
      %v4528 = vadd.s32 %v4524, %v4526
      %v4529 = vadd.s32 %v4528, %v4518
      %v4530 = vadd.s32 %v4529, %v4520
      %v4531 = vmul.u32 %v4486, %v4477
      %v4532 = vadd.s32 %v4508, %v4527
      %vm4533 = vc.u32 %v4508, %v4527
      %v4534 = vadd.s32 %v4530, 1
      %v4535 = vsel %vm4533, %v4534, %v4530
      %v4536 = vadd.s32 %v4531, %v4535
      %v4537 = vadd.s32 %v4536, 536870912
      %v4538 = vshrl.u32 %v4537, 30
      %v4539 = vshll.u32 %v4538, 30
      %v4540 = vsub.s32 %v4536, %v4539
      %vm4541 = vcmp.lt.s32.totalorder %v4540, 0
      %v4542 = vsub.s32 0, %v4540
      %v4543 = vsel %vm4541, %v4542, %v4540
      %v4544 = vclz %v4543
      %v4545 = vsub.s32 %v4544, 2
      %vm4546 = vcmp.gt.s32.totalorder 0, %v4545
      %v4547 = vsel %vm4546, 0, %v4545
      %v4548 = vsub.s32 32, %v4547
      %v4549 = vshll.u32 %v4540, %v4547
      %v4550 = vshrl.u32 %v4532, %v4548
      %v4551 = vor.u32 %v4549, %v4550
      %v4552 = vsub.s32 4294967266, %v4547
      %v4553 = vadd.s32 %v4552, 127
      %v4554 = vshll.u32 %v4553, 23
      %v4555 = vor.u32 4788187, %v4554
      %v4556 = vand.u32 2147483647, %v4555
      %v4558 = vcvt.s32.f32 %v4551
      %v4559 = vmul.f32 %v4558, %v4556
      %v4560 = vxor.u32 %v4559, 2147483648
      %v4561 = vsel %vm4440, %v4560, %v4559
      %v4562 = vsub.s32 4, %v4538
      %v4563 = vsel %vm4440, %v4562, %v4538
      %v4564 = vsel %vm4439, %v3355, %v4561
      %v4565 = vsel %vm4439, 0, %v4563
      %v4566 = vmul.f32 %v4564, %v4564
      %v4567 = vmul.f32 %v4566, -0.001358992
      %v4568 = vadd.f32 %v4567, 0.041655596
      %v4569 = vmul.f32 %v4566, %v4568
      %v4570 = vadd.f32 %v4569, -0.4999988
      %v4571 = vmul.f32 %v4566, %v4570
      %v4572 = vadd.f32 1.0, %v4571
      %v4573 = vmul.f32 %v4564, %v4564
      %v4574 = vmul.f32 %v4573, -0.00019511016
      %v4575 = vadd.f32 %v4574, 0.008332121
      %v4576 = vmul.f32 %v4573, %v4575
      %v4577 = vadd.f32 %v4576, -0.16666654
      %v4578 = vmul.f32 %v4573, %v4577
      %v4579 = vadd.f32 %v4578, 1.0
      %v4580 = vmul.f32 %v4579, %v4564
      %vm4581 = vweird.f32 %v3355
      %v4582 = vadd.s32 %v4565, 3
      %v4583 = vand.u32 %v4582, 3
      %vm4584 = vcmp.lt.s32.totalorder %v4583, 2
      %vm4585 = vcmp.eq.s32.totalorder %v4583, 0
      %v4586 = vxor.u32 %v4580, 2147483648
      %v4587 = vsel %vm4585, %v4572, %v4586
      %vm4588 = vcmp.eq.s32.totalorder %v4583, 2
      %v4589 = vxor.u32 %v4572, 2147483648
      %v4590 = vsel %vm4588, %v4589, %v4580
      %v4591 = vsel %vm4584, %v4587, %v4590
      %v4592 = vsel %vm4581, nan, %v4591
      %v4593 = vmul.f32 %v3510, %v2408
      %v4594 = vmul.f32 %v3664, %v2418
      %v4595 = vmul.f32 %v3818, %v2428
      %v4596 = vmul.f32 %v3972, %v2438
      %v4597 = vmul.f32 %v4127, %v2439
      %v4598 = vmul.f32 %v4282, %v2440
      %v4599 = vmul.f32 %v4437, %v2441
      %v4600 = vmul.f32 %v4592, %v2442
      %v4601 = vsub.f32 %v4593, %v4597
      %v4602 = vsub.f32 %v4594, %v4598
      %v4603 = vsub.f32 %v4595, %v4599
      %v4604 = vsub.f32 %v4596, %v4600
      %v4605 = vmul.f32 %v4127, %v2408
      %v4606 = vmul.f32 %v4282, %v2418
      %v4607 = vmul.f32 %v4437, %v2428
      %v4608 = vmul.f32 %v4592, %v2438
      %v4609 = vmul.f32 %v3510, %v2439
      %v4610 = vmul.f32 %v3664, %v2440
      %v4611 = vmul.f32 %v3818, %v2441
      %v4612 = vmul.f32 %v3972, %v2442
      %v4613 = vadd.f32 %v4605, %v4609
      %v4614 = vadd.f32 %v4606, %v4610
      %v4615 = vadd.f32 %v4607, %v4611
      %v4616 = vadd.f32 %v4608, %v4612
      %v4617 = vmul.f32 %v3016, %v4601
      %v4618 = vmul.f32 %v3017, %v4602
      %v4619 = vmul.f32 %v3018, %v4603
      %v4620 = vmul.f32 %v3019, %v4604
      %v4621 = vmul.f32 %v4617, 0.1
      %v4622 = vmul.f32 %v4618, 0.1
      %v4623 = vmul.f32 %v4619, 0.1
      %v4624 = vmul.f32 %v4620, 0.1
      %v4626 = vsel %vm2683, %v4624, 0
      %4628 = vmatpush.msra.mxu0 %v2503
      %4629 = vmatpush.msra.mxu0 %v2499
      %4630 = vmatpush.msra.mxu0 %v2495
      %4631 = vmatpush.msra.mxu0 %v2491
      %4632 = vmatpush.msra.mxu0 %v2487
      %4633 = vmatpush.msra.mxu0 %v2483
      %4634 = vmatpush.msra.mxu0 %v2479
      %4635 = vmatpush.msra.mxu0 %v2475
      %4636 = vmatpush.msra.mxu0 %v2471
      %4637 = vmatpush.msra.mxu0 %v2467
      %4638 = vmatpush.msra.mxu0 %v2463
      %4639 = vmatpush.msra.mxu0 %v2459
      %4640 = vmatpush.msra.mxu0 %v2455
      %4641 = vmatpush.msra.mxu0 %v2451
      %4642 = vmatpush.msra.mxu0 %v2447
      %4643 = vmatpush.msra.mxu0 %v2443
      %4644 = vmatmul.f32.gmra.mxu0 %v4621
      %v4645 = vpop.f32.mrf.mxu0
      %v4646 = vadd.f32 0.0, %v4645
      %4647 = vdwg.mxu0
      %4648 = vmatpush.msra.mxu0 %v2567
      %4649 = vmatpush.msra.mxu0 %v2563
      %4650 = vmatpush.msra.mxu0 %v2559
      %4651 = vmatpush.msra.mxu0 %v2555
      %4652 = vmatpush.msra.mxu0 %v2551
      %4653 = vmatpush.msra.mxu0 %v2547
      %4654 = vmatpush.msra.mxu0 %v2543
      %4655 = vmatpush.msra.mxu0 %v2539
      %4656 = vmatpush.msra.mxu0 %v2535
      %4657 = vmatpush.msra.mxu0 %v2531
      %4658 = vmatpush.msra.mxu0 %v2527
      %4659 = vmatpush.msra.mxu0 %v2523
      %4660 = vmatpush.msra.mxu0 %v2519
      %4661 = vmatpush.msra.mxu0 %v2515
      %4662 = vmatpush.msra.mxu0 %v2511
      %4663 = vmatpush.msra.mxu0 %v2507
      %4664 = vmatmul.f32.gmra.mxu0 %v4622
      %v4665 = vpop.f32.mrf.mxu0
      %v4666 = vadd.f32 %v4646, %v4665
      %4667 = vdwg.mxu0
      %4668 = vmatpush.msra.mxu0 %v2631
      %4669 = vmatpush.msra.mxu0 %v2627
      %4670 = vmatpush.msra.mxu0 %v2623
      %4671 = vmatpush.msra.mxu0 %v2619
      %4672 = vmatpush.msra.mxu0 %v2615
      %4673 = vmatpush.msra.mxu0 %v2611
      %4674 = vmatpush.msra.mxu0 %v2607
      %4675 = vmatpush.msra.mxu0 %v2603
      %4676 = vmatpush.msra.mxu0 %v2599
      %4677 = vmatpush.msra.mxu0 %v2595
      %4678 = vmatpush.msra.mxu0 %v2591
      %4679 = vmatpush.msra.mxu0 %v2587
      %4680 = vmatpush.msra.mxu0 %v2583
      %4681 = vmatpush.msra.mxu0 %v2579
      %4682 = vmatpush.msra.mxu0 %v2575
      %4683 = vmatpush.msra.mxu0 %v2571
      %4684 = vmatmul.f32.gmra.mxu0 %v4623
      %v4685 = vpop.f32.mrf.mxu0
      %v4686 = vadd.f32 %v4666, %v4685
      %4687 = vdwg.mxu0
      %4688 = vmatpush.msra.mxu0 0.0
      %4689 = vmatpush.msra.mxu0 0.0
      %4690 = vmatpush.msra.mxu0 0.0
      %4691 = vmatpush.msra.mxu0 0.0
      %4692 = vmatpush.msra.mxu0 %v2679
      %4693 = vmatpush.msra.mxu0 %v2675
      %4694 = vmatpush.msra.mxu0 %v2671
      %4695 = vmatpush.msra.mxu0 %v2667
      %4696 = vmatpush.msra.mxu0 %v2663
      %4697 = vmatpush.msra.mxu0 %v2659
      %4698 = vmatpush.msra.mxu0 %v2655
      %4699 = vmatpush.msra.mxu0 %v2651
      %4700 = vmatpush.msra.mxu0 %v2647
      %4701 = vmatpush.msra.mxu0 %v2643
      %4702 = vmatpush.msra.mxu0 %v2639
      %4703 = vmatpush.msra.mxu0 %v2635
      %4704 = vmatmul.f32.gmra.mxu0 %v4626
      %v4705 = vpop.f32.mrf.mxu0
      %v4706 = vadd.f32 %v4686, %v4705
      %4707 = vdwg.mxu0
      %4708 = vmatpush.msra.mxu0 %v2504
      %4709 = vmatpush.msra.mxu0 %v2500
      %4710 = vmatpush.msra.mxu0 %v2496
      %4711 = vmatpush.msra.mxu0 %v2492
      %4712 = vmatpush.msra.mxu0 %v2488
      %4713 = vmatpush.msra.mxu0 %v2484
      %4714 = vmatpush.msra.mxu0 %v2480
      %4715 = vmatpush.msra.mxu0 %v2476
      %4716 = vmatpush.msra.mxu0 %v2472
      %4717 = vmatpush.msra.mxu0 %v2468
      %4718 = vmatpush.msra.mxu0 %v2464
      %4719 = vmatpush.msra.mxu0 %v2460
      %4720 = vmatpush.msra.mxu0 %v2456
      %4721 = vmatpush.msra.mxu0 %v2452
      %4722 = vmatpush.msra.mxu0 %v2448
      %4723 = vmatpush.msra.mxu0 %v2444
      %4724 = vmatmul.f32.gmra.mxu0 %v4621
      %v4725 = vpop.f32.mrf.mxu0
      %v4726 = vadd.f32 0.0, %v4725
      %4727 = vdwg.mxu0
      %4728 = vmatpush.msra.mxu0 %v2568
      %4729 = vmatpush.msra.mxu0 %v2564
      %4730 = vmatpush.msra.mxu0 %v2560
      %4731 = vmatpush.msra.mxu0 %v2556
      %4732 = vmatpush.msra.mxu0 %v2552
      %4733 = vmatpush.msra.mxu0 %v2548
      %4734 = vmatpush.msra.mxu0 %v2544
      %4735 = vmatpush.msra.mxu0 %v2540
      %4736 = vmatpush.msra.mxu0 %v2536
      %4737 = vmatpush.msra.mxu0 %v2532
      %4738 = vmatpush.msra.mxu0 %v2528
      %4739 = vmatpush.msra.mxu0 %v2524
      %4740 = vmatpush.msra.mxu0 %v2520
      %4741 = vmatpush.msra.mxu0 %v2516
      %4742 = vmatpush.msra.mxu0 %v2512
      %4743 = vmatpush.msra.mxu0 %v2508
      %4744 = vmatmul.f32.gmra.mxu0 %v4622
      %v4745 = vpop.f32.mrf.mxu0
      %v4746 = vadd.f32 %v4726, %v4745
      %4747 = vdwg.mxu0
      %4748 = vmatpush.msra.mxu0 %v2632
      %4749 = vmatpush.msra.mxu0 %v2628
      %4750 = vmatpush.msra.mxu0 %v2624
      %4751 = vmatpush.msra.mxu0 %v2620
      %4752 = vmatpush.msra.mxu0 %v2616
      %4753 = vmatpush.msra.mxu0 %v2612
      %4754 = vmatpush.msra.mxu0 %v2608
      %4755 = vmatpush.msra.mxu0 %v2604
      %4756 = vmatpush.msra.mxu0 %v2600
      %4757 = vmatpush.msra.mxu0 %v2596
      %4758 = vmatpush.msra.mxu0 %v2592
      %4759 = vmatpush.msra.mxu0 %v2588
      %4760 = vmatpush.msra.mxu0 %v2584
      %4761 = vmatpush.msra.mxu0 %v2580
      %4762 = vmatpush.msra.mxu0 %v2576
      %4763 = vmatpush.msra.mxu0 %v2572
      %4764 = vmatmul.f32.gmra.mxu0 %v4623
      %v4765 = vpop.f32.mrf.mxu0
      %v4766 = vadd.f32 %v4746, %v4765
      %4767 = vdwg.mxu0
      %4768 = vmatpush.msra.mxu0 0.0
      %4769 = vmatpush.msra.mxu0 0.0
      %4770 = vmatpush.msra.mxu0 0.0
      %4771 = vmatpush.msra.mxu0 0.0
      %4772 = vmatpush.msra.mxu0 %v2680
      %4773 = vmatpush.msra.mxu0 %v2676
      %4774 = vmatpush.msra.mxu0 %v2672
      %4775 = vmatpush.msra.mxu0 %v2668
      %4776 = vmatpush.msra.mxu0 %v2664
      %4777 = vmatpush.msra.mxu0 %v2660
      %4778 = vmatpush.msra.mxu0 %v2656
      %4779 = vmatpush.msra.mxu0 %v2652
      %4780 = vmatpush.msra.mxu0 %v2648
      %4781 = vmatpush.msra.mxu0 %v2644
      %4782 = vmatpush.msra.mxu0 %v2640
      %4783 = vmatpush.msra.mxu0 %v2636
      %4784 = vmatmul.f32.gmra.mxu0 %v4626
      %v4785 = vpop.f32.mrf.mxu0
      %v4786 = vadd.f32 %v4766, %v4785
      %4787 = vdwg.mxu0
      %4788 = vmatpush.msra.mxu0 %v2505
      %4789 = vmatpush.msra.mxu0 %v2501
      %4790 = vmatpush.msra.mxu0 %v2497
      %4791 = vmatpush.msra.mxu0 %v2493
      %4792 = vmatpush.msra.mxu0 %v2489
      %4793 = vmatpush.msra.mxu0 %v2485
      %4794 = vmatpush.msra.mxu0 %v2481
      %4795 = vmatpush.msra.mxu0 %v2477
      %4796 = vmatpush.msra.mxu0 %v2473
      %4797 = vmatpush.msra.mxu0 %v2469
      %4798 = vmatpush.msra.mxu0 %v2465
      %4799 = vmatpush.msra.mxu0 %v2461
      %4800 = vmatpush.msra.mxu0 %v2457
      %4801 = vmatpush.msra.mxu0 %v2453
      %4802 = vmatpush.msra.mxu0 %v2449
      %4803 = vmatpush.msra.mxu0 %v2445
      %4804 = vmatmul.f32.gmra.mxu0 %v4621
      %v4805 = vpop.f32.mrf.mxu0
      %v4806 = vadd.f32 0.0, %v4805
      %4807 = vdwg.mxu0
      %4808 = vmatpush.msra.mxu0 %v2569
      %4809 = vmatpush.msra.mxu0 %v2565
      %4810 = vmatpush.msra.mxu0 %v2561
      %4811 = vmatpush.msra.mxu0 %v2557
      %4812 = vmatpush.msra.mxu0 %v2553
      %4813 = vmatpush.msra.mxu0 %v2549
      %4814 = vmatpush.msra.mxu0 %v2545
      %4815 = vmatpush.msra.mxu0 %v2541
      %4816 = vmatpush.msra.mxu0 %v2537
      %4817 = vmatpush.msra.mxu0 %v2533
      %4818 = vmatpush.msra.mxu0 %v2529
      %4819 = vmatpush.msra.mxu0 %v2525
      %4820 = vmatpush.msra.mxu0 %v2521
      %4821 = vmatpush.msra.mxu0 %v2517
      %4822 = vmatpush.msra.mxu0 %v2513
      %4823 = vmatpush.msra.mxu0 %v2509
      %4824 = vmatmul.f32.gmra.mxu0 %v4622
      %v4825 = vpop.f32.mrf.mxu0
      %v4826 = vadd.f32 %v4806, %v4825
      %4827 = vdwg.mxu0
      %4828 = vmatpush.msra.mxu0 %v2633
      %4829 = vmatpush.msra.mxu0 %v2629
      %4830 = vmatpush.msra.mxu0 %v2625
      %4831 = vmatpush.msra.mxu0 %v2621
      %4832 = vmatpush.msra.mxu0 %v2617
      %4833 = vmatpush.msra.mxu0 %v2613
      %4834 = vmatpush.msra.mxu0 %v2609
      %4835 = vmatpush.msra.mxu0 %v2605
      %4836 = vmatpush.msra.mxu0 %v2601
      %4837 = vmatpush.msra.mxu0 %v2597
      %4838 = vmatpush.msra.mxu0 %v2593
      %4839 = vmatpush.msra.mxu0 %v2589
      %4840 = vmatpush.msra.mxu0 %v2585
      %4841 = vmatpush.msra.mxu0 %v2581
      %4842 = vmatpush.msra.mxu0 %v2577
      %4843 = vmatpush.msra.mxu0 %v2573
      %4844 = vmatmul.f32.gmra.mxu0 %v4623
      %v4845 = vpop.f32.mrf.mxu0
      %v4846 = vadd.f32 %v4826, %v4845
      %4847 = vdwg.mxu0
      %4848 = vmatpush.msra.mxu0 0.0
      %4849 = vmatpush.msra.mxu0 0.0
      %4850 = vmatpush.msra.mxu0 0.0
      %4851 = vmatpush.msra.mxu0 0.0
      %4852 = vmatpush.msra.mxu0 %v2681
      %4853 = vmatpush.msra.mxu0 %v2677
      %4854 = vmatpush.msra.mxu0 %v2673
      %4855 = vmatpush.msra.mxu0 %v2669
      %4856 = vmatpush.msra.mxu0 %v2665
      %4857 = vmatpush.msra.mxu0 %v2661
      %4858 = vmatpush.msra.mxu0 %v2657
      %4859 = vmatpush.msra.mxu0 %v2653
      %4860 = vmatpush.msra.mxu0 %v2649
      %4861 = vmatpush.msra.mxu0 %v2645
      %4862 = vmatpush.msra.mxu0 %v2641
      %4863 = vmatpush.msra.mxu0 %v2637
      %4864 = vmatmul.f32.gmra.mxu0 %v4626
      %v4865 = vpop.f32.mrf.mxu0
      %v4866 = vadd.f32 %v4846, %v4865
      %4867 = vdwg.mxu0
      %4868 = vmatpush.msra.mxu0 %v2506
      %4869 = vmatpush.msra.mxu0 %v2502
      %4870 = vmatpush.msra.mxu0 %v2498
      %4871 = vmatpush.msra.mxu0 %v2494
      %4872 = vmatpush.msra.mxu0 %v2490
      %4873 = vmatpush.msra.mxu0 %v2486
      %4874 = vmatpush.msra.mxu0 %v2482
      %4875 = vmatpush.msra.mxu0 %v2478
      %4876 = vmatpush.msra.mxu0 %v2474
      %4877 = vmatpush.msra.mxu0 %v2470
      %4878 = vmatpush.msra.mxu0 %v2466
      %4879 = vmatpush.msra.mxu0 %v2462
      %4880 = vmatpush.msra.mxu0 %v2458
      %4881 = vmatpush.msra.mxu0 %v2454
      %4882 = vmatpush.msra.mxu0 %v2450
      %4883 = vmatpush.msra.mxu0 %v2446
      %4884 = vmatmul.f32.gmra.mxu0 %v4621
      %v4885 = vpop.f32.mrf.mxu0
      %v4886 = vadd.f32 0.0, %v4885
      %4887 = vdwg.mxu0
      %4888 = vmatpush.msra.mxu0 %v2570
      %4889 = vmatpush.msra.mxu0 %v2566
      %4890 = vmatpush.msra.mxu0 %v2562
      %4891 = vmatpush.msra.mxu0 %v2558
      %4892 = vmatpush.msra.mxu0 %v2554
      %4893 = vmatpush.msra.mxu0 %v2550
      %4894 = vmatpush.msra.mxu0 %v2546
      %4895 = vmatpush.msra.mxu0 %v2542
      %4896 = vmatpush.msra.mxu0 %v2538
      %4897 = vmatpush.msra.mxu0 %v2534
      %4898 = vmatpush.msra.mxu0 %v2530
      %4899 = vmatpush.msra.mxu0 %v2526
      %4900 = vmatpush.msra.mxu0 %v2522
      %4901 = vmatpush.msra.mxu0 %v2518
      %4902 = vmatpush.msra.mxu0 %v2514
      %4903 = vmatpush.msra.mxu0 %v2510
      %4904 = vmatmul.f32.gmra.mxu0 %v4622
      %v4905 = vpop.f32.mrf.mxu0
      %v4906 = vadd.f32 %v4886, %v4905
      %4907 = vdwg.mxu0
      %4908 = vmatpush.msra.mxu0 %v2634
      %4909 = vmatpush.msra.mxu0 %v2630
      %4910 = vmatpush.msra.mxu0 %v2626
      %4911 = vmatpush.msra.mxu0 %v2622
      %4912 = vmatpush.msra.mxu0 %v2618
      %4913 = vmatpush.msra.mxu0 %v2614
      %4914 = vmatpush.msra.mxu0 %v2610
      %4915 = vmatpush.msra.mxu0 %v2606
      %4916 = vmatpush.msra.mxu0 %v2602
      %4917 = vmatpush.msra.mxu0 %v2598
      %4918 = vmatpush.msra.mxu0 %v2594
      %4919 = vmatpush.msra.mxu0 %v2590
      %4920 = vmatpush.msra.mxu0 %v2586
      %4921 = vmatpush.msra.mxu0 %v2582
      %4922 = vmatpush.msra.mxu0 %v2578
      %4923 = vmatpush.msra.mxu0 %v2574
      %4924 = vmatmul.f32.gmra.mxu0 %v4623
      %v4925 = vpop.f32.mrf.mxu0
      %v4926 = vadd.f32 %v4906, %v4925
      %4927 = vdwg.mxu0
      %4928 = vmatpush.msra.mxu0 0.0
      %4929 = vmatpush.msra.mxu0 0.0
      %4930 = vmatpush.msra.mxu0 0.0
      %4931 = vmatpush.msra.mxu0 0.0
      %4932 = vmatpush.msra.mxu0 %v2682
      %4933 = vmatpush.msra.mxu0 %v2678
      %4934 = vmatpush.msra.mxu0 %v2674
      %4935 = vmatpush.msra.mxu0 %v2670
      %4936 = vmatpush.msra.mxu0 %v2666
      %4937 = vmatpush.msra.mxu0 %v2662
      %4938 = vmatpush.msra.mxu0 %v2658
      %4939 = vmatpush.msra.mxu0 %v2654
      %4940 = vmatpush.msra.mxu0 %v2650
      %4941 = vmatpush.msra.mxu0 %v2646
      %4942 = vmatpush.msra.mxu0 %v2642
      %4943 = vmatpush.msra.mxu0 %v2638
      %4944 = vmatmul.f32.gmra.mxu0 %v4626
      %v4945 = vpop.f32.mrf.mxu0
      %v4946 = vadd.f32 %v4926, %v4945
      %4947 = vdwg.mxu0
      %4948 = vst [vmem:[%s470] sm:$0xff] %v4706
      %4949 = vst [vmem:[%s470 + $0x8] sm:$0xff] %v4786
      %4950 = vst [vmem:[%s470 + $0x10] sm:$0xff] %v4866
      %4951 = vst.msk [vmem:[%s470 + $0x18] sm:$0xff] %vm2683, %v4946
      %v4952 = vmul.f32 %v3016, %v4613
      %v4953 = vmul.f32 %v3017, %v4614
      %v4954 = vmul.f32 %v3018, %v4615
      %v4955 = vmul.f32 %v3019, %v4616
      %v4956 = vmul.f32 %v4952, 0.1
      %v4957 = vmul.f32 %v4953, 0.1
      %v4958 = vmul.f32 %v4954, 0.1
      %v4959 = vmul.f32 %v4955, 0.1
      %v4961 = vsel %vm2683, %v4959, 0
      %4963 = vmatpush.msra.mxu0 %v2503
      %4964 = vmatpush.msra.mxu0 %v2499
      %4965 = vmatpush.msra.mxu0 %v2495
      %4966 = vmatpush.msra.mxu0 %v2491
      %4967 = vmatpush.msra.mxu0 %v2487
      %4968 = vmatpush.msra.mxu0 %v2483
      %4969 = vmatpush.msra.mxu0 %v2479
      %4970 = vmatpush.msra.mxu0 %v2475
      %4971 = vmatpush.msra.mxu0 %v2471
      %4972 = vmatpush.msra.mxu0 %v2467
      %4973 = vmatpush.msra.mxu0 %v2463
      %4974 = vmatpush.msra.mxu0 %v2459
      %4975 = vmatpush.msra.mxu0 %v2455
      %4976 = vmatpush.msra.mxu0 %v2451
      %4977 = vmatpush.msra.mxu0 %v2447
      %4978 = vmatpush.msra.mxu0 %v2443
      %4979 = vmatmul.f32.gmra.mxu0 %v4956
      %v4980 = vpop.f32.mrf.mxu0
      %v4981 = vadd.f32 0.0, %v4980
      %4982 = vdwg.mxu0
      %4983 = vmatpush.msra.mxu0 %v2567
      %4984 = vmatpush.msra.mxu0 %v2563
      %4985 = vmatpush.msra.mxu0 %v2559
      %4986 = vmatpush.msra.mxu0 %v2555
      %4987 = vmatpush.msra.mxu0 %v2551
      %4988 = vmatpush.msra.mxu0 %v2547
      %4989 = vmatpush.msra.mxu0 %v2543
      %4990 = vmatpush.msra.mxu0 %v2539
      %4991 = vmatpush.msra.mxu0 %v2535
      %4992 = vmatpush.msra.mxu0 %v2531
      %4993 = vmatpush.msra.mxu0 %v2527
      %4994 = vmatpush.msra.mxu0 %v2523
      %4995 = vmatpush.msra.mxu0 %v2519
      %4996 = vmatpush.msra.mxu0 %v2515
      %4997 = vmatpush.msra.mxu0 %v2511
      %4998 = vmatpush.msra.mxu0 %v2507
      %4999 = vmatmul.f32.gmra.mxu0 %v4957
      %v5000 = vpop.f32.mrf.mxu0
      %v5001 = vadd.f32 %v4981, %v5000
      %5002 = vdwg.mxu0
      %5003 = vmatpush.msra.mxu0 %v2631
      %5004 = vmatpush.msra.mxu0 %v2627
      %5005 = vmatpush.msra.mxu0 %v2623
      %5006 = vmatpush.msra.mxu0 %v2619
      %5007 = vmatpush.msra.mxu0 %v2615
      %5008 = vmatpush.msra.mxu0 %v2611
      %5009 = vmatpush.msra.mxu0 %v2607
      %5010 = vmatpush.msra.mxu0 %v2603
      %5011 = vmatpush.msra.mxu0 %v2599
      %5012 = vmatpush.msra.mxu0 %v2595
      %5013 = vmatpush.msra.mxu0 %v2591
      %5014 = vmatpush.msra.mxu0 %v2587
      %5015 = vmatpush.msra.mxu0 %v2583
      %5016 = vmatpush.msra.mxu0 %v2579
      %5017 = vmatpush.msra.mxu0 %v2575
      %5018 = vmatpush.msra.mxu0 %v2571
      %5019 = vmatmul.f32.gmra.mxu0 %v4958
      %v5020 = vpop.f32.mrf.mxu0
      %v5021 = vadd.f32 %v5001, %v5020
      %5022 = vdwg.mxu0
      %5023 = vmatpush.msra.mxu0 0.0
      %5024 = vmatpush.msra.mxu0 0.0
      %5025 = vmatpush.msra.mxu0 0.0
      %5026 = vmatpush.msra.mxu0 0.0
      %5027 = vmatpush.msra.mxu0 %v2679
      %5028 = vmatpush.msra.mxu0 %v2675
      %5029 = vmatpush.msra.mxu0 %v2671
      %5030 = vmatpush.msra.mxu0 %v2667
      %5031 = vmatpush.msra.mxu0 %v2663
      %5032 = vmatpush.msra.mxu0 %v2659
      %5033 = vmatpush.msra.mxu0 %v2655
      %5034 = vmatpush.msra.mxu0 %v2651
      %5035 = vmatpush.msra.mxu0 %v2647
      %5036 = vmatpush.msra.mxu0 %v2643
      %5037 = vmatpush.msra.mxu0 %v2639
      %5038 = vmatpush.msra.mxu0 %v2635
      %5039 = vmatmul.f32.gmra.mxu0 %v4961
      %v5040 = vpop.f32.mrf.mxu0
      %v5041 = vadd.f32 %v5021, %v5040
      %5042 = vdwg.mxu0
      %5043 = vmatpush.msra.mxu0 %v2504
      %5044 = vmatpush.msra.mxu0 %v2500
      %5045 = vmatpush.msra.mxu0 %v2496
      %5046 = vmatpush.msra.mxu0 %v2492
      %5047 = vmatpush.msra.mxu0 %v2488
      %5048 = vmatpush.msra.mxu0 %v2484
      %5049 = vmatpush.msra.mxu0 %v2480
      %5050 = vmatpush.msra.mxu0 %v2476
      %5051 = vmatpush.msra.mxu0 %v2472
      %5052 = vmatpush.msra.mxu0 %v2468
      %5053 = vmatpush.msra.mxu0 %v2464
      %5054 = vmatpush.msra.mxu0 %v2460
      %5055 = vmatpush.msra.mxu0 %v2456
      %5056 = vmatpush.msra.mxu0 %v2452
      %5057 = vmatpush.msra.mxu0 %v2448
      %5058 = vmatpush.msra.mxu0 %v2444
      %5059 = vmatmul.f32.gmra.mxu0 %v4956
      %v5060 = vpop.f32.mrf.mxu0
      %v5061 = vadd.f32 0.0, %v5060
      %5062 = vdwg.mxu0
      %5063 = vmatpush.msra.mxu0 %v2568
      %5064 = vmatpush.msra.mxu0 %v2564
      %5065 = vmatpush.msra.mxu0 %v2560
      %5066 = vmatpush.msra.mxu0 %v2556
      %5067 = vmatpush.msra.mxu0 %v2552
      %5068 = vmatpush.msra.mxu0 %v2548
      %5069 = vmatpush.msra.mxu0 %v2544
      %5070 = vmatpush.msra.mxu0 %v2540
      %5071 = vmatpush.msra.mxu0 %v2536
      %5072 = vmatpush.msra.mxu0 %v2532
      %5073 = vmatpush.msra.mxu0 %v2528
      %5074 = vmatpush.msra.mxu0 %v2524
      %5075 = vmatpush.msra.mxu0 %v2520
      %5076 = vmatpush.msra.mxu0 %v2516
      %5077 = vmatpush.msra.mxu0 %v2512
      %5078 = vmatpush.msra.mxu0 %v2508
      %5079 = vmatmul.f32.gmra.mxu0 %v4957
      %v5080 = vpop.f32.mrf.mxu0
      %v5081 = vadd.f32 %v5061, %v5080
      %5082 = vdwg.mxu0
      %5083 = vmatpush.msra.mxu0 %v2632
      %5084 = vmatpush.msra.mxu0 %v2628
      %5085 = vmatpush.msra.mxu0 %v2624
      %5086 = vmatpush.msra.mxu0 %v2620
      %5087 = vmatpush.msra.mxu0 %v2616
      %5088 = vmatpush.msra.mxu0 %v2612
      %5089 = vmatpush.msra.mxu0 %v2608
      %5090 = vmatpush.msra.mxu0 %v2604
      %5091 = vmatpush.msra.mxu0 %v2600
      %5092 = vmatpush.msra.mxu0 %v2596
      %5093 = vmatpush.msra.mxu0 %v2592
      %5094 = vmatpush.msra.mxu0 %v2588
      %5095 = vmatpush.msra.mxu0 %v2584
      %5096 = vmatpush.msra.mxu0 %v2580
      %5097 = vmatpush.msra.mxu0 %v2576
      %5098 = vmatpush.msra.mxu0 %v2572
      %5099 = vmatmul.f32.gmra.mxu0 %v4958
      %v5100 = vpop.f32.mrf.mxu0
      %v5101 = vadd.f32 %v5081, %v5100
      %5102 = vdwg.mxu0
      %5103 = vmatpush.msra.mxu0 0.0
      %5104 = vmatpush.msra.mxu0 0.0
      %5105 = vmatpush.msra.mxu0 0.0
      %5106 = vmatpush.msra.mxu0 0.0
      %5107 = vmatpush.msra.mxu0 %v2680
      %5108 = vmatpush.msra.mxu0 %v2676
      %5109 = vmatpush.msra.mxu0 %v2672
      %5110 = vmatpush.msra.mxu0 %v2668
      %5111 = vmatpush.msra.mxu0 %v2664
      %5112 = vmatpush.msra.mxu0 %v2660
      %5113 = vmatpush.msra.mxu0 %v2656
      %5114 = vmatpush.msra.mxu0 %v2652
      %5115 = vmatpush.msra.mxu0 %v2648
      %5116 = vmatpush.msra.mxu0 %v2644
      %5117 = vmatpush.msra.mxu0 %v2640
      %5118 = vmatpush.msra.mxu0 %v2636
      %5119 = vmatmul.f32.gmra.mxu0 %v4961
      %v5120 = vpop.f32.mrf.mxu0
      %v5121 = vadd.f32 %v5101, %v5120
      %5122 = vdwg.mxu0
      %5123 = vmatpush.msra.mxu0 %v2505
      %5124 = vmatpush.msra.mxu0 %v2501
      %5125 = vmatpush.msra.mxu0 %v2497
      %5126 = vmatpush.msra.mxu0 %v2493
      %5127 = vmatpush.msra.mxu0 %v2489
      %5128 = vmatpush.msra.mxu0 %v2485
      %5129 = vmatpush.msra.mxu0 %v2481
      %5130 = vmatpush.msra.mxu0 %v2477
      %5131 = vmatpush.msra.mxu0 %v2473
      %5132 = vmatpush.msra.mxu0 %v2469
      %5133 = vmatpush.msra.mxu0 %v2465
      %5134 = vmatpush.msra.mxu0 %v2461
      %5135 = vmatpush.msra.mxu0 %v2457
      %5136 = vmatpush.msra.mxu0 %v2453
      %5137 = vmatpush.msra.mxu0 %v2449
      %5138 = vmatpush.msra.mxu0 %v2445
      %5139 = vmatmul.f32.gmra.mxu0 %v4956
      %v5140 = vpop.f32.mrf.mxu0
      %v5141 = vadd.f32 0.0, %v5140
      %5142 = vdwg.mxu0
      %5143 = vmatpush.msra.mxu0 %v2569
      %5144 = vmatpush.msra.mxu0 %v2565
      %5145 = vmatpush.msra.mxu0 %v2561
      %5146 = vmatpush.msra.mxu0 %v2557
      %5147 = vmatpush.msra.mxu0 %v2553
      %5148 = vmatpush.msra.mxu0 %v2549
      %5149 = vmatpush.msra.mxu0 %v2545
      %5150 = vmatpush.msra.mxu0 %v2541
      %5151 = vmatpush.msra.mxu0 %v2537
      %5152 = vmatpush.msra.mxu0 %v2533
      %5153 = vmatpush.msra.mxu0 %v2529
      %5154 = vmatpush.msra.mxu0 %v2525
      %5155 = vmatpush.msra.mxu0 %v2521
      %5156 = vmatpush.msra.mxu0 %v2517
      %5157 = vmatpush.msra.mxu0 %v2513
      %5158 = vmatpush.msra.mxu0 %v2509
      %5159 = vmatmul.f32.gmra.mxu0 %v4957
      %v5160 = vpop.f32.mrf.mxu0
      %v5161 = vadd.f32 %v5141, %v5160
      %5162 = vdwg.mxu0
      %5163 = vmatpush.msra.mxu0 %v2633
      %5164 = vmatpush.msra.mxu0 %v2629
      %5165 = vmatpush.msra.mxu0 %v2625
      %5166 = vmatpush.msra.mxu0 %v2621
      %5167 = vmatpush.msra.mxu0 %v2617
      %5168 = vmatpush.msra.mxu0 %v2613
      %5169 = vmatpush.msra.mxu0 %v2609
      %5170 = vmatpush.msra.mxu0 %v2605
      %5171 = vmatpush.msra.mxu0 %v2601
      %5172 = vmatpush.msra.mxu0 %v2597
      %5173 = vmatpush.msra.mxu0 %v2593
      %5174 = vmatpush.msra.mxu0 %v2589
      %5175 = vmatpush.msra.mxu0 %v2585
      %5176 = vmatpush.msra.mxu0 %v2581
      %5177 = vmatpush.msra.mxu0 %v2577
      %5178 = vmatpush.msra.mxu0 %v2573
      %5179 = vmatmul.f32.gmra.mxu0 %v4958
      %v5180 = vpop.f32.mrf.mxu0
      %v5181 = vadd.f32 %v5161, %v5180
      %5182 = vdwg.mxu0
      %5183 = vmatpush.msra.mxu0 0.0
      %5184 = vmatpush.msra.mxu0 0.0
      %5185 = vmatpush.msra.mxu0 0.0
      %5186 = vmatpush.msra.mxu0 0.0
      %5187 = vmatpush.msra.mxu0 %v2681
      %5188 = vmatpush.msra.mxu0 %v2677
      %5189 = vmatpush.msra.mxu0 %v2673
      %5190 = vmatpush.msra.mxu0 %v2669
      %5191 = vmatpush.msra.mxu0 %v2665
      %5192 = vmatpush.msra.mxu0 %v2661
      %5193 = vmatpush.msra.mxu0 %v2657
      %5194 = vmatpush.msra.mxu0 %v2653
      %5195 = vmatpush.msra.mxu0 %v2649
      %5196 = vmatpush.msra.mxu0 %v2645
      %5197 = vmatpush.msra.mxu0 %v2641
      %5198 = vmatpush.msra.mxu0 %v2637
      %5199 = vmatmul.f32.gmra.mxu0 %v4961
      %v5200 = vpop.f32.mrf.mxu0
      %v5201 = vadd.f32 %v5181, %v5200
      %5202 = vdwg.mxu0
      %5203 = vmatpush.msra.mxu0 %v2506
      %5204 = vmatpush.msra.mxu0 %v2502
      %5205 = vmatpush.msra.mxu0 %v2498
      %5206 = vmatpush.msra.mxu0 %v2494
      %5207 = vmatpush.msra.mxu0 %v2490
      %5208 = vmatpush.msra.mxu0 %v2486
      %5209 = vmatpush.msra.mxu0 %v2482
      %5210 = vmatpush.msra.mxu0 %v2478
      %5211 = vmatpush.msra.mxu0 %v2474
      %5212 = vmatpush.msra.mxu0 %v2470
      %5213 = vmatpush.msra.mxu0 %v2466
      %5214 = vmatpush.msra.mxu0 %v2462
      %5215 = vmatpush.msra.mxu0 %v2458
      %5216 = vmatpush.msra.mxu0 %v2454
      %5217 = vmatpush.msra.mxu0 %v2450
      %5218 = vmatpush.msra.mxu0 %v2446
      %5219 = vmatmul.f32.gmra.mxu0 %v4956
      %v5220 = vpop.f32.mrf.mxu0
      %v5221 = vadd.f32 0.0, %v5220
      %5222 = vdwg.mxu0
      %5223 = vmatpush.msra.mxu0 %v2570
      %5224 = vmatpush.msra.mxu0 %v2566
      %5225 = vmatpush.msra.mxu0 %v2562
      %5226 = vmatpush.msra.mxu0 %v2558
      %5227 = vmatpush.msra.mxu0 %v2554
      %5228 = vmatpush.msra.mxu0 %v2550
      %5229 = vmatpush.msra.mxu0 %v2546
      %5230 = vmatpush.msra.mxu0 %v2542
      %5231 = vmatpush.msra.mxu0 %v2538
      %5232 = vmatpush.msra.mxu0 %v2534
      %5233 = vmatpush.msra.mxu0 %v2530
      %5234 = vmatpush.msra.mxu0 %v2526
      %5235 = vmatpush.msra.mxu0 %v2522
      %5236 = vmatpush.msra.mxu0 %v2518
      %5237 = vmatpush.msra.mxu0 %v2514
      %5238 = vmatpush.msra.mxu0 %v2510
      %5239 = vmatmul.f32.gmra.mxu0 %v4957
      %v5240 = vpop.f32.mrf.mxu0
      %v5241 = vadd.f32 %v5221, %v5240
      %5242 = vdwg.mxu0
      %5243 = vmatpush.msra.mxu0 %v2634
      %5244 = vmatpush.msra.mxu0 %v2630
      %5245 = vmatpush.msra.mxu0 %v2626
      %5246 = vmatpush.msra.mxu0 %v2622
      %5247 = vmatpush.msra.mxu0 %v2618
      %5248 = vmatpush.msra.mxu0 %v2614
      %5249 = vmatpush.msra.mxu0 %v2610
      %5250 = vmatpush.msra.mxu0 %v2606
      %5251 = vmatpush.msra.mxu0 %v2602
      %5252 = vmatpush.msra.mxu0 %v2598
      %5253 = vmatpush.msra.mxu0 %v2594
      %5254 = vmatpush.msra.mxu0 %v2590
      %5255 = vmatpush.msra.mxu0 %v2586
      %5256 = vmatpush.msra.mxu0 %v2582
      %5257 = vmatpush.msra.mxu0 %v2578
      %5258 = vmatpush.msra.mxu0 %v2574
      %5259 = vmatmul.f32.gmra.mxu0 %v4958
      %v5260 = vpop.f32.mrf.mxu0
      %v5261 = vadd.f32 %v5241, %v5260
      %5262 = vdwg.mxu0
      %5263 = vmatpush.msra.mxu0 0.0
      %5264 = vmatpush.msra.mxu0 0.0
      %5265 = vmatpush.msra.mxu0 0.0
      %5266 = vmatpush.msra.mxu0 0.0
      %5267 = vmatpush.msra.mxu0 %v2682
      %5268 = vmatpush.msra.mxu0 %v2678
      %5269 = vmatpush.msra.mxu0 %v2674
      %5270 = vmatpush.msra.mxu0 %v2670
      %5271 = vmatpush.msra.mxu0 %v2666
      %5272 = vmatpush.msra.mxu0 %v2662
      %5273 = vmatpush.msra.mxu0 %v2658
      %5274 = vmatpush.msra.mxu0 %v2654
      %5275 = vmatpush.msra.mxu0 %v2650
      %5276 = vmatpush.msra.mxu0 %v2646
      %5277 = vmatpush.msra.mxu0 %v2642
      %5278 = vmatpush.msra.mxu0 %v2638
      %5279 = vmatmul.f32.gmra.mxu0 %v4961
      %v5280 = vpop.f32.mrf.mxu0
      %v5281 = vadd.f32 %v5261, %v5280
      %5282 = vdwg.mxu0
      %5283 = vst [vmem:[%s475] sm:$0xff] %v5041
      %5284 = vst [vmem:[%s475 + $0x8] sm:$0xff] %v5121
      %5285 = vst [vmem:[%s475 + $0x10] sm:$0xff] %v5201
      %5286 = vst.msk [vmem:[%s475 + $0x18] sm:$0xff] %vm2683, %v5281
      %p5287 = scmp.lt.s32.totalorder %s24, 1
      %s5288 = scalar_select %p5287, %s24, 1
      %s5289 = smul.addr %s5288, 8
      %s5290 = scalar_lea.vmem %s10, %s5289
      %p5291 = scmp.lt.s32.totalorder %s24, 1
      %s5292 = scalar_select %p5291, %s24, 1
      %s5293 = smul.addr %s5292, 4
      %s5294 = smul.addr %s5293, 8
      %s5295 = scalar_lea.vmem %s11, %s5294
      %p5296 = scmp.lt.s32.totalorder %s24, 1
      %s5297 = scalar_select %p5296, %s24, 1
      %s5298 = smul.addr %s5297, 4
      %s5299 = smul.addr %s5298, 8
      %s5300 = scalar_lea.vmem %s12, %s5299
      // Predicated region
      $region61: #{model_forward.1} parent=59 // pred_check
        %p5301 = pneg %p267
      $region62: #{model_forward.1} parent=59 // pred_check_branch
        %5303 = sbr.rel (%p5301) target = $region64
      $region63: #{model_forward.1} parent=59 // pred_region
        _
      $region64: #{model_forward.1} parent=59 // pred_fallthru
        _
      // Predicated region
      $region65: #{model_forward.1} parent=59 // pred_check
        %p5304 = pneg %p293
      $region66: #{model_forward.1} parent=59 // pred_check_branch
        %5306 = sbr.rel (%p5304) target = $region68
      $region67: #{model_forward.1} parent=59 // pred_region
        _
      $region68: #{model_forward.1} parent=59 // pred_fallthru
        _
      // Predicated region
      $region69: #{model_forward.1} parent=59 // pred_check
        %p5307 = pneg %p319
      $region70: #{model_forward.1} parent=59 // pred_check_branch
        %5309 = sbr.rel (%p5307) target = $region72
      $region71: #{model_forward.1} parent=59 // pred_region
        _
      $region72: #{model_forward.1} parent=59 // pred_fallthru
        _
    $region60: #{model_forward.1} parent=5 // pred_fallthru
      _
    %p5310 = scmp.le.s32.totalorder 2, %s19
    // Predicated region
    $region73: #{model_forward.1} parent=5 // pred_check
      %p5311 = pneg %p5310
    $region74: #{model_forward.1} parent=5 // pred_check_branch
      %5313 = sbr.rel (%p5311) target = $region76
    $region75: #{model_forward.1} parent=5 // pred_region
      %s5314 = ssub.s32 %s19, 2
      // Predicated region
      $region77: #{model_forward.1} parent=75 // pred_check
        %p5315 = pneg %p273
      $region78: #{model_forward.1} parent=75 // pred_check_branch
        %5317 = sbr.rel (%p5315) target = $region80
      $region79: #{model_forward.1} parent=75 // pred_region
        %p5318 = scmp.lt.s32.totalorder %s25, 1
        %s5319 = scalar_select %p5318, %s25, 1
        %s5320 = smul.addr %s5319, 8
        %s5321 = scalar_lea.vmem %s10, %s5320
      $region80: #{model_forward.1} parent=75 // pred_fallthru
        _
      // Predicated region
      $region81: #{model_forward.1} parent=75 // pred_check
        %p5322 = pneg %p299
      $region82: #{model_forward.1} parent=75 // pred_check_branch
        %5324 = sbr.rel (%p5322) target = $region84
      $region83: #{model_forward.1} parent=75 // pred_region
        %p5325 = scmp.lt.s32.totalorder %s25, 1
        %s5326 = scalar_select %p5325, %s25, 1
        %s5327 = smul.addr %s5326, 4
        %s5328 = smul.addr %s5327, 8
        %s5329 = scalar_lea.vmem %s11, %s5328
      $region84: #{model_forward.1} parent=75 // pred_fallthru
        _
      // Predicated region
      $region85: #{model_forward.1} parent=75 // pred_check
        %p5330 = pneg %p325
      $region86: #{model_forward.1} parent=75 // pred_check_branch
        %5332 = sbr.rel (%p5330) target = $region88
      $region87: #{model_forward.1} parent=75 // pred_region
        %p5333 = scmp.lt.s32.totalorder %s25, 1
        %s5334 = scalar_select %p5333, %s25, 1
        %s5335 = smul.addr %s5334, 4
        %s5336 = smul.addr %s5335, 8
        %s5337 = scalar_lea.vmem %s12, %s5336
      $region88: #{model_forward.1} parent=75 // pred_fallthru
        _
    $region76: #{model_forward.1} parent=5 // pred_fallthru
      _
  $region6: #{model_forward.1} parent=0 // loop_footer
    %s23 = sadd.s32 1, %s19
  $region7: #{model_forward.1} parent=0 // loop_footer_branch
    %18 = sbr.rel target = $region3
  $region8: #{model_forward.1} parent=0 // loop_exit
    _

</llo_original>
